<compile_context>
chip_gen: v6e
topology: v6e:2x2x1
jax: 0.10.0
libtpu: 0.0.40
codegen_flags: <defaults>
</compile_context>

<pallas_src>
import functools

import numpy as np
import jax
import jax.numpy as jnp
from jax import lax
from jax.experimental import pallas as pl
from jax.experimental.pallas import tpu as pltpu  # noqa: F401  (see scaling note above)

PAD = 32  # common padded channel width for the packed backbone weight slab


# --------------------------- fused backbone kernel ---------------------------

def _backbone_kernel(x_ref, w_ref, b_ref, o_ref, *, n_img, p, cout):
    """layer0..layer3 (1x1 conv + bias + ReLU) + down_conv for ALL images at once.

    x_ref : (n_img * p, PAD)  channel-zero-padded input rows (image-major order)
    w_ref : (6, PAD, PAD)     [w0, w1, w2, w3, wd3, wd2] zero-padded
    b_ref : (5, PAD)          [b0, b1, b2, b3, bd] zero-padded
    o_ref : (p, n_img * cout) lane-dense output (per-image blocks along lanes)

    Padded channels stay exactly zero through every stage (zero weights, zero
    bias, ReLU(0)=0), so the padded matmul chain equals the unpadded one.
    down_conv on the channel concat [f3, f2] is f3 @ wd3 + f2 @ wd2 (no concat).
    Dropout in down_conv is identity at eval.
    """
    relu = lambda v: jnp.maximum(v, 0.0)
    w = w_ref[...]                                   # (6, PAD, PAD)
    b = b_ref[...]                                   # (5, PAD)
    x = x_ref[...]                                   # (M, PAD)

    f0 = relu(jnp.dot(x,  w[0], preferred_element_type=jnp.float32) + b[0:1, :])
    f1 = relu(jnp.dot(f0, w[1], preferred_element_type=jnp.float32) + b[1:2, :])
    f2 = relu(jnp.dot(f1, w[2], preferred_element_type=jnp.float32) + b[2:3, :])
    f3 = relu(jnp.dot(f2, w[3], preferred_element_type=jnp.float32) + b[3:4, :])
    down = relu(jnp.dot(f3, w[4], preferred_element_type=jnp.float32)
                + jnp.dot(f2, w[5], preferred_element_type=jnp.float32)
                + b[4:5, :])                         # (M, PAD)

    # lane-dense store: concatenate the per-image (p, cout) blocks along lanes.
    parts = [down[i * p:(i + 1) * p, :cout] for i in range(n_img)]
    o_ref[...] = jnp.concatenate(parts, axis=-1)     # (p, n_img * cout)


def pack_backbone_params(params):
    """Pack the 5 conv weights/biases into one weight slab + one bias slab."""
    wslab = np.zeros((6, PAD, PAD), np.float32)
    bslab = np.zeros((5, PAD), np.float32)
    for i, name in enumerate(("layer0", "layer1", "layer2", "layer3")):
        w, bias = params[name]
        w = np.asarray(w); bias = np.asarray(bias)
        assert w.shape[0] <= PAD and w.shape[1] <= PAD
        wslab[i, :w.shape[0], :w.shape[1]] = w
        bslab[i, :w.shape[1]] = bias[0]
    wd, bd = params["down_conv"]
    wd = np.asarray(wd); bd = np.asarray(bd)
    split = int(params["layer3"][0].shape[1])        # concat order is [f3, f2]
    assert split <= PAD and (wd.shape[0] - split) <= PAD and wd.shape[1] <= PAD
    wslab[4, :split, :wd.shape[1]] = wd[:split]                      # wd3
    wslab[5, :wd.shape[0] - split, :wd.shape[1]] = wd[split:]        # wd2
    bslab[4, :wd.shape[1]] = bd[0]
    return jnp.asarray(wslab), jnp.asarray(bslab), int(wd.shape[1])


def _run_backbone(wslab, bslab, imgs_nhwc, cout):
    """Whole backbone + down_conv for ALL images in ONE grid-less pallas_call."""
    xd = imgs_nhwc[:, ::8, ::8, :]        # /4 (layer0) * /2 (layer2) applied up-front
    n, hp, wp, cin = xd.shape
    p = hp * wp
    xp = jnp.pad(xd.reshape(n * p, cin), ((0, 0), (0, PAD - cin)))
    kernel = functools.partial(_backbone_kernel, n_img=n, p=p, cout=cout)
    out = pl.pallas_call(
        kernel,
        out_shape=jax.ShapeDtypeStruct((p, n * cout), jnp.float32),
    )(xp, wslab, bslab)
    feats = jnp.transpose(out.reshape(p, n, cout), (1, 0, 2)).reshape(n, hp, wp, cout)
    return feats, (hp, wp)


# ----------------- fused superpixel-center / Weighted-GAP kernel -------------

def _sp_center_kernel(packed_ref, seed_ref, gap_ref, out_ref, *,
                      n_iter, max_sp, c_feat):
    """ALL (bs, shot, fg/bg) instances in one grid step.

    packed_ref: (NF, P, C+3)   features, coords/10 (2 ch), fg mask (1 ch)
    seed_ref  : (NF, 2*max_sp) int32 flat seed pixel index (r*W + c); fg cols
                first, bg cols second
    gap_ref   : (NF, 2*max_sp, 1) 1.0 where the instance falls back to
                Weighted_GAP (num_sp <= 1), else 0.0
    out_ref   : (max_sp, 2*NF*c_feat) lane-dense; instance order
                (f0-fg, f0-bg, f1-fg, ...)
    """
    packed = packed_ref[...]                                        # (NF,P,C+3)
    nf, p, _ = packed.shape
    caug = c_feat + 2
    aug = packed[:, :, :caug]                                       # feat + xy/10
    fg = packed[:, :, caug:caug + 1]                                # (NF,P,1)

    # ---- loop invariants (hoisted out of the unrolled iteration) ----
    colmask = jnp.concatenate(
        [jnp.broadcast_to(fg, (nf, p, max_sp)),
         jnp.broadcast_to(1.0 - fg, (nf, p, max_sp))], axis=-1)     # (NF,P,2S)
    pad_pen = (1.0 - colmask) * jnp.float32(1e30)                   # off-ROI penalty
    f_sq = jnp.sum(aug * aug, axis=-1, keepdims=True)               # (NF,P,1)

    # ---- initial centers: one-hot seed gather rides the MXU ----
    pix = lax.broadcasted_iota(jnp.int32, (1, 1, p), 2)
    onehot = (seed_ref[...][:, :, None] == pix).astype(jnp.float32)  # (NF,2S,P)
    cen0 = jnp.einsum('nsp,npc->nsc', onehot, aug,
                      preferred_element_type=jnp.float32)            # (NF,2S,Caug)

    def one_iter(_, cen):
        # ||a-c||^2 = ||a||^2 - 2ab + ||c||^2  (coords/10 => spat_dist/100 folded in)
        cross = jnp.einsum('npc,nsc->nps', aug, cen,
                           preferred_element_type=jnp.float32)       # (NF,P,2S)
        c_sq = jnp.sum(cen * cen, axis=-1)[:, None, :]               # (NF,1,2S)
        total = jnp.sqrt(jnp.maximum(f_sq - 2.0 * cross + c_sq, 0.0))
        t = total + pad_pen                       # off-ROI pixels pushed to ~1e30
        t_min = jnp.min(t, axis=1, keepdims=True)                    # (NF,1,2S)
        assoc = jnp.exp(t_min - t)                # in [0,1]; ~0 off-ROI, no inf/NaN
        assoc = assoc / jnp.sum(assoc, axis=1, keepdims=True)        # denom >= 1
        return jnp.einsum('nps,npc->nsc', assoc, aug,
                          preferred_element_type=jnp.float32)         # (NF,2S,Caug)

    cen = lax.fori_loop(0, n_iter, one_iter, cen0, unroll=True)
    cen_feat = cen[:, :, :c_feat]                                     # (NF,2S,C)

    # ---- Weighted_GAP fallback (num_sp <= 1), fused as a per-column select ----
    feat = aug[:, :, :c_feat]
    area_fg = jnp.sum(fg, axis=1, keepdims=True) + 0.0005             # (NF,1,1)
    area_bg = jnp.sum(1.0 - fg, axis=1, keepdims=True) + 0.0005
    gap_fg = jnp.sum(feat * fg, axis=1, keepdims=True) / area_fg      # (NF,1,C)
    gap_bg = jnp.sum(feat * (1.0 - fg), axis=1, keepdims=True) / area_bg
    gap = jnp.concatenate(
        [jnp.broadcast_to(gap_fg, (nf, max_sp, c_feat)),
         jnp.broadcast_to(gap_bg, (nf, max_sp, c_feat))], axis=1)     # (NF,2S,C)
    sel = gap_ref[...]                                                # (NF,2S,1)
    res = sel * gap + (1.0 - sel) * cen_feat

    # ---- lane-dense store: (max_sp, NI*C) ----
    parts = []
    for f in range(nf):
        parts.append(res[f, :max_sp, :])     # fg instance of feature f
        parts.append(res[f, max_sp:, :])     # bg instance of feature f
    out_ref[...] = jnp.concatenate(parts, axis=-1)


# ----------------------------- plain-JAX glue -------------------------------

def bilinear_resize_align_corners(img, out_h, out_w):
    """F.interpolate(mode='bilinear', align_corners=True) on NHWC (tiny, glue)."""
    n, h, w, c = img.shape
    ys = (jnp.zeros((out_h,), jnp.float32) if out_h == 1
          else jnp.arange(out_h, dtype=jnp.float32) * (h - 1) / (out_h - 1))
    xs = (jnp.zeros((out_w,), jnp.float32) if out_w == 1
          else jnp.arange(out_w, dtype=jnp.float32) * (w - 1) / (out_w - 1))
    y0 = jnp.floor(ys).astype(jnp.int32)
    x0 = jnp.floor(xs).astype(jnp.int32)
    y1 = jnp.minimum(y0 + 1, h - 1)
    x1 = jnp.minimum(x0 + 1, w - 1)
    wy = (ys - y0)[None, :, None, None]
    wx = (xs - x0)[None, None, :, None]
    top = img[:, y0][:, :, x0] * (1 - wx) + img[:, y0][:, :, x1] * wx
    bot = img[:, y1][:, :, x0] * (1 - wx) + img[:, y1][:, :, x1] * wx
    return top * (1 - wy) + bot * wy


def init_params(key):
    dims = dict(layer0=(3, 8), layer1=(8, 16), layer2=(16, 16),
                layer3=(16, 32), down_conv=(16 + 32, 32))
    params = {}
    for (name, (cin, cout)), k in zip(dims.items(), jax.random.split(key, len(dims))):
        w = jax.random.normal(k, (cin, cout), jnp.float32) * (1.0 / np.sqrt(cin))
        params[name] = (w, jnp.zeros((1, cout), jnp.float32))
    return params


@functools.partial(jax.jit, static_argnames=("shot", "eval_iter", "cout"))
def _device_forward(wslab, bslab, all_imgs, s_y, seed_flat, gap_col, *,
                    shot, eval_iter, cout):
    """All device-side compute in one jitted call: 2 pallas_calls + thin glue."""
    b = s_y.shape[0]
    hin, win = s_y.shape[-2], s_y.shape[-1]

    feats_all, (hp, wp) = _run_backbone(wslab, bslab, all_imgs, cout)  # (N,hp,wp,C)
    # feats_all[:b] is the query branch: computed (as in the reference forward)
    # but unused in the returned tuple; merged here so its marginal cost is ~0.
    supp = feats_all[b:].reshape(b, shot, hp, wp, cout)

    mask = (s_y == 1).astype(jnp.float32).reshape(b * shot, hin, win, 1)
    mask_feat = bilinear_resize_align_corners(mask, hp, wp)            # (B*shot,hp,wp,1)

    nf = b * shot
    p = hp * wp
    feats_flat = supp.reshape(nf, p, cout)
    rr = jnp.broadcast_to(jnp.arange(hp, dtype=jnp.float32)[:, None], (hp, wp))
    cc = jnp.broadcast_to(jnp.arange(wp, dtype=jnp.float32)[None, :], (hp, wp))
    coords = jnp.stack([rr, cc], axis=-1).reshape(1, p, 2) * 0.1       # /10 folding
    packed = jnp.concatenate([feats_flat,
                              jnp.broadcast_to(coords, (nf, p, 2)),
                              mask_feat.reshape(nf, p, 1)], axis=2)    # (NF,P,C+3)

    max_sp = seed_flat.shape[1] // 2
    kernel = functools.partial(_sp_center_kernel, n_iter=eval_iter,
                               max_sp=max_sp, c_feat=cout)
    centers = pl.pallas_call(
        kernel,
        out_shape=jax.ShapeDtypeStruct((max_sp, 2 * nf * cout), jnp.float32),
    )(packed, seed_flat, gap_col)

    return supp, mask_feat.reshape(b, shot, hp, wp, 1), centers


def spnet_forward(params, x, s_x, s_y, s_fg_seed, s_bg_seed, *,
                  shot=1, eval_iter=5, zoom_factor=8):
    b, _, hin, win = x.shape
    assert (hin - 1) % 8 == 0 and (win - 1) % 8 == 0
    _ = int((hin - 1) / 8 * zoom_factor + 1)   # h (unused downstream, as in ref)
    _ = int((win - 1) / 8 * zoom_factor + 1)   # w

    hp = (hin - 1) // 8 + 1                    # stand-in backbone: one /8 slice
    wp = (win - 1) // 8 + 1

    wslab, bslab, cout = pack_backbone_params(params)

    # stack query + all support shots into ONE backbone batch
    x_nhwc = jnp.transpose(x, (0, 2, 3, 1))
    sx_nhwc = jnp.transpose(s_x.reshape(b * shot, 3, hin, win), (0, 2, 3, 1))
    all_imgs = jnp.concatenate([x_nhwc, sx_nhwc], axis=0)              # (B+B*shot,H,W,3)

    # host-side seed / num_sp prep (static, mirrors the reference's python logic)
    max_sp = int(s_fg_seed.shape[2])
    nf = b * shot
    s_fg_np = np.asarray(s_fg_seed)
    s_bg_np = np.asarray(s_bg_seed)
    seed_flat_np = np.zeros((nf, 2 * max_sp), np.int32)
    gap_col_np = np.zeros((nf, 2 * max_sp, 1), np.float32)
    nsp_np = np.zeros((2 * nf,), np.int32)
    for bs_ in range(b):
        for sh_ in range(shot):
            f = bs_ * shot + sh_
            for k, seed_np in enumerate((s_fg_np[bs_, sh_], s_bg_np[bs_, sh_])):
                nsp = max(int(np.count_nonzero(seed_np[:, 0])),
                          int(np.count_nonzero(seed_np[:, 1])))
                nsp_np[2 * f + k] = nsp
                cols = slice(k * max_sp, (k + 1) * max_sp)
                seed_flat_np[f, cols] = (seed_np[:max_sp, 0].astype(np.int64) * wp
                                         + seed_np[:max_sp, 1]).astype(np.int32)
                if nsp <= 1:                       # Weighted_GAP fallback
                    gap_col_np[f, cols, 0] = 1.0

    supp, mask_feat, centers = _device_forward(
        wslab, bslab, all_imgs, s_y,
        jnp.asarray(seed_flat_np), jnp.asarray(gap_col_np),
        shot=shot, eval_iter=eval_iter, cout=cout)

    supp_feat_list = [supp[:, i] for i in range(shot)]      # NHWC per shot
    mask_list = [mask_feat[:, i] for i in range(shot)]

    # final slicing / transposes in NumPy after ONE device_get
    ni = 2 * nf
    centers_np = (np.asarray(centers)
                  .reshape(max_sp, ni, cout).transpose(1, 2, 0))       # (NI,C,S)
    all_fg_center, all_bg_center = [], []
    for bs_ in range(b):
        fg_cols, bg_cols = [], []
        for sh_ in range(shot):
            inst = (bs_ * shot + sh_) * 2
            for k, dst in ((0, fg_cols), (1, bg_cols)):
                ncols = max(int(nsp_np[inst + k]), 1)
                dst.append(centers_np[inst + k, :, :ncols])            # (C, ncols)
        all_fg_center.append(np.concatenate(fg_cols, axis=1))
        all_bg_center.append(np.concatenate(bg_cols, axis=1))
    return all_fg_center, all_bg_center, supp_feat_list, mask_list


# --------------------------------- main -------------------------------------

if __name__ == "__main__":
    key = jax.random.PRNGKey(0)
    kp, kx, ks = jax.random.split(key, 3)
    params = init_params(kp)

    B, SHOT, HIN, WIN = 2, 1, 33, 33            # (HIN-1) % 8 == 0
    x = jax.random.normal(kx, (B, 3, HIN, WIN), jnp.float32)
    s_x = jax.random.normal(ks, (B, SHOT, 3, HIN, WIN), jnp.float32)

    # support mask: central square of ones -> exact 1s / 0s after interpolation
    s_y_np = np.zeros((B, SHOT, HIN, WIN), np.float32)
    s_y_np[:, :, 8:28, 8:28] = 1.0
    s_y = jnp.asarray(s_y_np)

    # seeds in the 5x5 feature grid; zero rows are "unused" (reference semantics)
    MAX_SP = 5
    s_fg_seed = np.zeros((B, SHOT, MAX_SP, 2), np.int32)
    s_bg_seed = np.zeros((B, SHOT, MAX_SP, 2), np.int32)
    s_fg_seed[0, 0, 0] = [2, 2]; s_fg_seed[0, 0, 1] = [3, 2]; s_fg_seed[0, 0, 2] = [2, 3]
    s_fg_seed[1, 0, 0] = [2, 2]                 # single seed -> Weighted_GAP path
    s_bg_seed[0, 0, 0] = [4, 4]; s_bg_seed[0, 0, 1] = [1, 4]
    s_bg_seed[0, 0, 2] = [4, 1]; s_bg_seed[0, 0, 3] = [4, 2]
    s_bg_seed[1, 0, 0] = [4, 4]; s_bg_seed[1, 0, 1] = [1, 4]; s_bg_seed[1, 0, 2] = [4, 1]

    out = spnet_forward(params, x, s_x, s_y, s_fg_seed, s_bg_seed,
                        shot=SHOT, eval_iter=5, zoom_factor=8)
    out = jax.block_until_ready(jax.tree_util.tree_map(jnp.asarray,
                                                       (out[2], out[3])))

    all_fg, all_bg, supp_feats, masks = (out[0] if False else None,) * 0 or None, None, None, None  # placeholder (unused)
    all_fg, all_bg = spnet_forward(params, x, s_x, s_y, s_fg_seed, s_bg_seed,
                                   shot=SHOT, eval_iter=5, zoom_factor=8)[:2] if False else (None, None)

    # (re-unpack cleanly; the calls above were only to block on device results)
    all_fg, all_bg, supp_feats, masks = spnet_forward(
        params, x, s_x, s_y, s_fg_seed, s_bg_seed,
        shot=SHOT, eval_iter=5, zoom_factor=8)
    jax.block_until_ready((supp_feats, masks))

    for arr in all_fg + all_bg:
        assert np.all(np.isfinite(np.asarray(arr)))
    for arr in supp_feats + masks:
        assert np.all(np.isfinite(np.asarray(arr)))
    assert all_fg[0].shape == (32, 3) and all_fg[1].shape == (32, 1)
    assert all_bg[0].shape == (32, 4) and all_bg[1].shape == (32, 3)
    print("KERNEL_OK")
</pallas_src>

<mosaic_0001>
module attributes {stable_mosaic.version = 11 : i64} {
  func.func @_backbone_kernel(%arg0: memref<100x32xf32, #tpu.memory_space<vmem>>, %arg1: memref<6x32x32xf32, #tpu.memory_space<vmem>>, %arg2: memref<5x32xf32, #tpu.memory_space<vmem>>, %arg3: memref<25x128xf32, #tpu.memory_space<vmem>>) attributes {dimension_semantics = [], scalar_prefetch = 0 : i64, scratch_operands = 0 : i64, tpu.core_type = #tpu.core_type<tc>} {
    %c0 = arith.constant 0 : index
    %c0_0 = arith.constant 0 : index
    %c0_1 = arith.constant 0 : index
    %0 = vector.load %arg1[%c0, %c0_0, %c0_1] : memref<6x32x32xf32, #tpu.memory_space<vmem>>, vector<6x32x32xf32>
    %c0_2 = arith.constant 0 : index
    %c0_3 = arith.constant 0 : index
    %1 = vector.load %arg2[%c0_2, %c0_3] : memref<5x32xf32, #tpu.memory_space<vmem>>, vector<5x32xf32>
    %c0_4 = arith.constant 0 : index
    %c0_5 = arith.constant 0 : index
    %2 = vector.load %arg0[%c0_4, %c0_5] : memref<100x32xf32, #tpu.memory_space<vmem>>, vector<100x32xf32>
    %3 = vector.extract_strided_slice %0 {offsets = [0, 0, 0], sizes = [1, 32, 32], strides = [1, 1, 1]} : vector<6x32x32xf32> to vector<1x32x32xf32>
    %4 = vector.shape_cast %3 : vector<1x32x32xf32> to vector<32x32xf32>
    %cst = arith.constant dense<0.000000e+00> : vector<100x32xf32>
    %5 = tpu.matmul %2, %4, %cst {dimension_numbers = #tpu.dot_dimension_numbers<[1], [0], [0], [1], [0, 0, 1, 1], [], []>} : vector<100x32xf32>, vector<32x32xf32>, vector<100x32xf32> -> vector<100x32xf32>
    %6 = vector.extract_strided_slice %1 {offsets = [0, 0], sizes = [1, 32], strides = [1, 1]} : vector<5x32xf32> to vector<1x32xf32>
    %7 = vector.broadcast %6 : vector<1x32xf32> to vector<100x32xf32>
    %8 = arith.addf %5, %7 : vector<100x32xf32>
    %cst_6 = arith.constant 0.000000e+00 : f32
    %9 = vector.broadcast %cst_6 : f32 to vector<100x32xf32>
    %10 = arith.maximumf %8, %9 : vector<100x32xf32>
    %11 = vector.extract_strided_slice %0 {offsets = [1, 0, 0], sizes = [1, 32, 32], strides = [1, 1, 1]} : vector<6x32x32xf32> to vector<1x32x32xf32>
    %12 = vector.shape_cast %11 : vector<1x32x32xf32> to vector<32x32xf32>
    %cst_7 = arith.constant dense<0.000000e+00> : vector<100x32xf32>
    %13 = tpu.matmul %10, %12, %cst_7 {dimension_numbers = #tpu.dot_dimension_numbers<[1], [0], [0], [1], [0, 0, 1, 1], [], []>} : vector<100x32xf32>, vector<32x32xf32>, vector<100x32xf32> -> vector<100x32xf32>
    %14 = vector.extract_strided_slice %1 {offsets = [1, 0], sizes = [1, 32], strides = [1, 1]} : vector<5x32xf32> to vector<1x32xf32>
    %15 = vector.broadcast %14 : vector<1x32xf32> to vector<100x32xf32>
    %16 = arith.addf %13, %15 : vector<100x32xf32>
    %cst_8 = arith.constant 0.000000e+00 : f32
    %17 = vector.broadcast %cst_8 : f32 to vector<100x32xf32>
    %18 = arith.maximumf %16, %17 : vector<100x32xf32>
    %19 = vector.extract_strided_slice %0 {offsets = [2, 0, 0], sizes = [1, 32, 32], strides = [1, 1, 1]} : vector<6x32x32xf32> to vector<1x32x32xf32>
    %20 = vector.shape_cast %19 : vector<1x32x32xf32> to vector<32x32xf32>
    %cst_9 = arith.constant dense<0.000000e+00> : vector<100x32xf32>
    %21 = tpu.matmul %18, %20, %cst_9 {dimension_numbers = #tpu.dot_dimension_numbers<[1], [0], [0], [1], [0, 0, 1, 1], [], []>} : vector<100x32xf32>, vector<32x32xf32>, vector<100x32xf32> -> vector<100x32xf32>
    %22 = vector.extract_strided_slice %1 {offsets = [2, 0], sizes = [1, 32], strides = [1, 1]} : vector<5x32xf32> to vector<1x32xf32>
    %23 = vector.broadcast %22 : vector<1x32xf32> to vector<100x32xf32>
    %24 = arith.addf %21, %23 : vector<100x32xf32>
    %cst_10 = arith.constant 0.000000e+00 : f32
    %25 = vector.broadcast %cst_10 : f32 to vector<100x32xf32>
    %26 = arith.maximumf %24, %25 : vector<100x32xf32>
    %27 = vector.extract_strided_slice %0 {offsets = [3, 0, 0], sizes = [1, 32, 32], strides = [1, 1, 1]} : vector<6x32x32xf32> to vector<1x32x32xf32>
    %28 = vector.shape_cast %27 : vector<1x32x32xf32> to vector<32x32xf32>
    %cst_11 = arith.constant dense<0.000000e+00> : vector<100x32xf32>
    %29 = tpu.matmul %26, %28, %cst_11 {dimension_numbers = #tpu.dot_dimension_numbers<[1], [0], [0], [1], [0, 0, 1, 1], [], []>} : vector<100x32xf32>, vector<32x32xf32>, vector<100x32xf32> -> vector<100x32xf32>
    %30 = vector.extract_strided_slice %1 {offsets = [3, 0], sizes = [1, 32], strides = [1, 1]} : vector<5x32xf32> to vector<1x32xf32>
    %31 = vector.broadcast %30 : vector<1x32xf32> to vector<100x32xf32>
    %32 = arith.addf %29, %31 : vector<100x32xf32>
    %cst_12 = arith.constant 0.000000e+00 : f32
    %33 = vector.broadcast %cst_12 : f32 to vector<100x32xf32>
    %34 = arith.maximumf %32, %33 : vector<100x32xf32>
    %35 = vector.extract_strided_slice %0 {offsets = [4, 0, 0], sizes = [1, 32, 32], strides = [1, 1, 1]} : vector<6x32x32xf32> to vector<1x32x32xf32>
    %36 = vector.shape_cast %35 : vector<1x32x32xf32> to vector<32x32xf32>
    %cst_13 = arith.constant dense<0.000000e+00> : vector<100x32xf32>
    %37 = tpu.matmul %34, %36, %cst_13 {dimension_numbers = #tpu.dot_dimension_numbers<[1], [0], [0], [1], [0, 0, 1, 1], [], []>} : vector<100x32xf32>, vector<32x32xf32>, vector<100x32xf32> -> vector<100x32xf32>
    %38 = vector.extract_strided_slice %0 {offsets = [5, 0, 0], sizes = [1, 32, 32], strides = [1, 1, 1]} : vector<6x32x32xf32> to vector<1x32x32xf32>
    %39 = vector.shape_cast %38 : vector<1x32x32xf32> to vector<32x32xf32>
    %cst_14 = arith.constant dense<0.000000e+00> : vector<100x32xf32>
    %40 = tpu.matmul %26, %39, %cst_14 {dimension_numbers = #tpu.dot_dimension_numbers<[1], [0], [0], [1], [0, 0, 1, 1], [], []>} : vector<100x32xf32>, vector<32x32xf32>, vector<100x32xf32> -> vector<100x32xf32>
    %41 = arith.addf %37, %40 : vector<100x32xf32>
    %42 = vector.extract_strided_slice %1 {offsets = [4, 0], sizes = [1, 32], strides = [1, 1]} : vector<5x32xf32> to vector<1x32xf32>
    %43 = vector.broadcast %42 : vector<1x32xf32> to vector<100x32xf32>
    %44 = arith.addf %41, %43 : vector<100x32xf32>
    %cst_15 = arith.constant 0.000000e+00 : f32
    %45 = vector.broadcast %cst_15 : f32 to vector<100x32xf32>
    %46 = arith.maximumf %44, %45 : vector<100x32xf32>
    %47 = vector.extract_strided_slice %46 {offsets = [0, 0], sizes = [25, 32], strides = [1, 1]} : vector<100x32xf32> to vector<25x32xf32>
    %48 = vector.extract_strided_slice %46 {offsets = [25, 0], sizes = [25, 32], strides = [1, 1]} : vector<100x32xf32> to vector<25x32xf32>
    %49 = vector.extract_strided_slice %46 {offsets = [50, 0], sizes = [25, 32], strides = [1, 1]} : vector<100x32xf32> to vector<25x32xf32>
    %50 = vector.extract_strided_slice %46 {offsets = [75, 0], sizes = [25, 32], strides = [1, 1]} : vector<100x32xf32> to vector<25x32xf32>
    %51 = tpu.concatenate %47, %48, %49, %50 in 1 : vector<25x32xf32>, vector<25x32xf32>, vector<25x32xf32>, vector<25x32xf32> -> vector<25x128xf32>
    %c0_16 = arith.constant 0 : index
    %c0_17 = arith.constant 0 : index
    %52 = vector.load %arg3[%c0_16, %c0_17] : memref<25x128xf32, #tpu.memory_space<vmem>>, vector<25x128xf32>
    tpu.vector_store %arg3[%c0_16, %c0_17], %51 {strides = array<i32>} : memref<25x128xf32, #tpu.memory_space<vmem>>, vector<25x128xf32>,
    return
  }
}

module attributes {stable_mosaic.version = 11 : i64} {
  func.func @_sp_center_kernel(%arg0: memref<2x25x35xf32, #tpu.memory_space<vmem>>, %arg1: memref<2x10xi32, #tpu.memory_space<vmem>>, %arg2: memref<2x10x1xf32, #tpu.memory_space<vmem>>, %arg3: memref<5x128xf32, #tpu.memory_space<vmem>>) attributes {dimension_semantics = [], scalar_prefetch = 0 : i64, scratch_operands = 0 : i64, tpu.core_type = #tpu.core_type<tc>} {
    %c0 = arith.constant 0 : index
    %c0_0 = arith.constant 0 : index
    %c0_1 = arith.constant 0 : index
    %0 = vector.load %arg0[%c0, %c0_0, %c0_1] : memref<2x25x35xf32, #tpu.memory_space<vmem>>, vector<2x25x35xf32>
    %1 = vector.extract_strided_slice %0 {offsets = [0, 0, 0], sizes = [2, 25, 34], strides = [1, 1, 1]} : vector<2x25x35xf32> to vector<2x25x34xf32>
    %2 = vector.extract_strided_slice %0 {offsets = [0, 0, 34], sizes = [2, 25, 1], strides = [1, 1, 1]} : vector<2x25x35xf32> to vector<2x25x1xf32>
    %3 = vector.shape_cast %2 : vector<2x25x1xf32> to vector<2x25x1xf32>
    %4 = vector.broadcast %3 : vector<2x25x1xf32> to vector<2x25x5xf32>
    %cst = arith.constant 1.000000e+00 : f32
    %5 = vector.broadcast %cst : f32 to vector<2x25x1xf32>
    %6 = arith.subf %5, %2 : vector<2x25x1xf32>
    %7 = vector.shape_cast %6 : vector<2x25x1xf32> to vector<2x25x1xf32>
    %8 = vector.broadcast %7 : vector<2x25x1xf32> to vector<2x25x5xf32>
    %9 = tpu.concatenate %4, %8 in 2 : vector<2x25x5xf32>, vector<2x25x5xf32> -> vector<2x25x10xf32>
    %cst_2 = arith.constant 1.000000e+00 : f32
    %10 = vector.broadcast %cst_2 : f32 to vector<2x25x10xf32>
    %11 = arith.subf %10, %9 : vector<2x25x10xf32>
    %cst_3 = arith.constant 1.000000e+30 : f32
    %12 = vector.broadcast %cst_3 : f32 to vector<2x25x10xf32>
    %13 = arith.mulf %11, %12 : vector<2x25x10xf32>
    %14 = arith.mulf %1, %1 : vector<2x25x34xf32>
    %cst_4 = arith.constant dense<0.000000e+00> : vector<2x25xf32>
    %15 = vector.multi_reduction <add>, %14, %cst_4 [2] : vector<2x25x34xf32> to vector<2x25xf32>
    %16 = vector.shape_cast %15 : vector<2x25xf32> to vector<2x25x1xf32>
    %17 = tpu.iota {dimensions = array<i32: 2>} : vector<1x1x25xi32>
    %c0_5 = arith.constant 0 : index
    %c0_6 = arith.constant 0 : index
    %18 = vector.load %arg1[%c0_5, %c0_6] : memref<2x10xi32, #tpu.memory_space<vmem>>, vector<2x10xi32>
    %19 = vector.shape_cast %18 : vector<2x10xi32> to vector<2x10x1xi32>
    %20 = vector.broadcast %19 : vector<2x10x1xi32> to vector<2x10x25xi32>
    %21 = vector.broadcast %17 : vector<1x1x25xi32> to vector<2x10x25xi32>
    %22 = arith.cmpi eq, %20, %21 : vector<2x10x25xi32>
    %23 = arith.extui %22 : vector<2x10x25xi1> to vector<2x10x25xi32>
    %24 = arith.sitofp %23 : vector<2x10x25xi32> to vector<2x10x25xf32>
    "tpu.trace_start"() <{level = 10 : i32, message = "nsp,npc->nsc"}> : () -> ()
    %cst_7 = arith.constant dense<0.000000e+00> : vector<2x10x34xf32>
    %25 = tpu.matmul %24, %1, %cst_7 {dimension_numbers = #tpu.dot_dimension_numbers<[2], [1], [1], [2], [0, 0, 0, 1, 1, 2], [0], [0]>} : vector<2x10x25xf32>, vector<2x25x34xf32>, vector<2x10x34xf32> -> vector<2x10x34xf32>
    "tpu.trace_stop"() : () -> ()
    %c0_i32 = arith.constant 0 : i32
    "tpu.trace_start"() <{level = 10 : i32, message = "npc,nsc->nps"}> : () -> ()
    %cst_8 = arith.constant dense<0.000000e+00> : vector<2x25x10xf32>
    %26 = tpu.matmul %1, %25, %cst_8 {dimension_numbers = #tpu.dot_dimension_numbers<[2], [2], [1], [1], [0, 0, 0, 1, 1, 1], [0], [0]>} : vector<2x25x34xf32>, vector<2x10x34xf32>, vector<2x25x10xf32> -> vector<2x25x10xf32>
    "tpu.trace_stop"() : () -> ()
    %27 = arith.mulf %25, %25 : vector<2x10x34xf32>
    %cst_9 = arith.constant dense<0.000000e+00> : vector<2x10xf32>
    %28 = vector.multi_reduction <add>, %27, %cst_9 [2] : vector<2x10x34xf32> to vector<2x10xf32>
    %29 = vector.shape_cast %28 : vector<2x10xf32> to vector<2x1x10xf32>
    %cst_10 = arith.constant 2.000000e+00 : f32
    %30 = vector.broadcast %cst_10 : f32 to vector<2x25x10xf32>
    %31 = arith.mulf %30, %26 : vector<2x25x10xf32>
    %32 = vector.broadcast %16 : vector<2x25x1xf32> to vector<2x25x10xf32>
    %33 = arith.subf %32, %31 : vector<2x25x10xf32>
    %34 = vector.broadcast %29 : vector<2x1x10xf32> to vector<2x25x10xf32>
    %35 = arith.addf %33, %34 : vector<2x25x10xf32>
    %cst_11 = arith.constant 0.000000e+00 : f32
    %36 = vector.broadcast %cst_11 : f32 to vector<2x25x10xf32>
    %37 = arith.maximumf %35, %36 : vector<2x25x10xf32>
    %38 = math.sqrt %37 : vector<2x25x10xf32>
    %39 = arith.addf %38, %13 : vector<2x25x10xf32>
    %cst_12 = arith.constant dense<0x7F800000> : vector<2x10xf32>
    %40 = vector.multi_reduction <minimumf>, %39, %cst_12 [1] : vector<2x25x10xf32> to vector<2x10xf32>
    %41 = vector.shape_cast %40 : vector<2x10xf32> to vector<2x1x10xf32>
    %42 = vector.broadcast %41 : vector<2x1x10xf32> to vector<2x25x10xf32>
    %43 = arith.subf %42, %39 : vector<2x25x10xf32>
    %44 = math.exp %43 : vector<2x25x10xf32>
    %cst_13 = arith.constant dense<0.000000e+00> : vector<2x10xf32>
    %45 = vector.multi_reduction <add>, %44, %cst_13 [1] : vector<2x25x10xf32> to vector<2x10xf32>
    %46 = vector.shape_cast %45 : vector<2x10xf32> to vector<2x1x10xf32>
    %47 = vector.broadcast %46 : vector<2x1x10xf32> to vector<2x25x10xf32>
    %48 = arith.divf %44, %47 : vector<2x25x10xf32>
    "tpu.trace_start"() <{level = 10 : i32, message = "nps,npc->nsc"}> : () -> ()
    %cst_14 = arith.constant dense<0.000000e+00> : vector<2x10x34xf32>
    %49 = tpu.matmul %48, %1, %cst_14 {dimension_numbers = #tpu.dot_dimension_numbers<[1], [1], [2], [2], [0, 0, 0, 2, 1, 2], [0], [0]>} : vector<2x25x10xf32>, vector<2x25x34xf32>, vector<2x10x34xf32> -> vector<2x10x34xf32>
    "tpu.trace_stop"() : () -> ()
    %c1_i32 = arith.constant 1 : i32
    "tpu.trace_start"() <{level = 10 : i32, message = "npc,nsc->nps"}> : () -> ()
    %cst_15 = arith.constant dense<0.000000e+00> : vector<2x25x10xf32>
    %50 = tpu.matmul %1, %49, %cst_15 {dimension_numbers = #tpu.dot_dimension_numbers<[2], [2], [1], [1], [0, 0, 0, 1, 1, 1], [0], [0]>} : vector<2x25x34xf32>, vector<2x10x34xf32>, vector<2x25x10xf32> -> vector<2x25x10xf32>
    "tpu.trace_stop"() : () -> ()
    %51 = arith.mulf %49, %49 : vector<2x10x34xf32>
    %cst_16 = arith.constant dense<0.000000e+00> : vector<2x10xf32>
    %52 = vector.multi_reduction <add>, %51, %cst_16 [2] : vector<2x10x34xf32> to vector<2x10xf32>
    %53 = vector.shape_cast %52 : vector<2x10xf32> to vector<2x1x10xf32>
    %cst_17 = arith.constant 2.000000e+00 : f32
    %54 = vector.broadcast %cst_17 : f32 to vector<2x25x10xf32>
    %55 = arith.mulf %54, %50 : vector<2x25x10xf32>
    %56 = vector.broadcast %16 : vector<2x25x1xf32> to vector<2x25x10xf32>
    %57 = arith.subf %56, %55 : vector<2x25x10xf32>
    %58 = vector.broadcast %53 : vector<2x1x10xf32> to vector<2x25x10xf32>
    %59 = arith.addf %57, %58 : vector<2x25x10xf32>
    %cst_18 = arith.constant 0.000000e+00 : f32
    %60 = vector.broadcast %cst_18 : f32 to vector<2x25x10xf32>
    %61 = arith.maximumf %59, %60 : vector<2x25x10xf32>
    %62 = math.sqrt %61 : vector<2x25x10xf32>
    %63 = arith.addf %62, %13 : vector<2x25x10xf32>
    %cst_19 = arith.constant dense<0x7F800000> : vector<2x10xf32>
    %64 = vector.multi_reduction <minimumf>, %63, %cst_19 [1] : vector<2x25x10xf32> to vector<2x10xf32>
    %65 = vector.shape_cast %64 : vector<2x10xf32> to vector<2x1x10xf32>
    %66 = vector.broadcast %65 : vector<2x1x10xf32> to vector<2x25x10xf32>
    %67 = arith.subf %66, %63 : vector<2x25x10xf32>
    %68 = math.exp %67 : vector<2x25x10xf32>
    %cst_20 = arith.constant dense<0.000000e+00> : vector<2x10xf32>
    %69 = vector.multi_reduction <add>, %68, %cst_20 [1] : vector<2x25x10xf32> to vector<2x10xf32>
    %70 = vector.shape_cast %69 : vector<2x10xf32> to vector<2x1x10xf32>
    %71 = vector.broadcast %70 : vector<2x1x10xf32> to vector<2x25x10xf32>
    %72 = arith.divf %68, %71 : vector<2x25x10xf32>
    "tpu.trace_start"() <{level = 10 : i32, message = "nps,npc->nsc"}> : () -> ()
    %cst_21 = arith.constant dense<0.000000e+00> : vector<2x10x34xf32>
    %73 = tpu.matmul %72, %1, %cst_21 {dimension_numbers = #tpu.dot_dimension_numbers<[1], [1], [2], [2], [0, 0, 0, 2, 1, 2], [0], [0]>} : vector<2x25x10xf32>, vector<2x25x34xf32>, vector<2x10x34xf32> -> vector<2x10x34xf32>
    "tpu.trace_stop"() : () -> ()
    %c2_i32 = arith.constant 2 : i32
    "tpu.trace_start"() <{level = 10 : i32, message = "npc,nsc->nps"}> : () -> ()
    %cst_22 = arith.constant dense<0.000000e+00> : vector<2x25x10xf32>
    %74 = tpu.matmul %1, %73, %cst_22 {dimension_numbers = #tpu.dot_dimension_numbers<[2], [2], [1], [1], [0, 0, 0, 1, 1, 1], [0], [0]>} : vector<2x25x34xf32>, vector<2x10x34xf32>, vector<2x25x10xf32> -> vector<2x25x10xf32>
    "tpu.trace_stop"() : () -> ()
    %75 = arith.mulf %73, %73 : vector<2x10x34xf32>
    %cst_23 = arith.constant dense<0.000000e+00> : vector<2x10xf32>
    %76 = vector.multi_reduction <add>, %75, %cst_23 [2] : vector<2x10x34xf32> to vector<2x10xf32>
    %77 = vector.shape_cast %76 : vector<2x10xf32> to vector<2x1x10xf32>
    %cst_24 = arith.constant 2.000000e+00 : f32
    %78 = vector.broadcast %cst_24 : f32 to vector<2x25x10xf32>
    %79 = arith.mulf %78, %74 : vector<2x25x10xf32>
    %80 = vector.broadcast %16 : vector<2x25x1xf32> to vector<2x25x10xf32>
    %81 = arith.subf %80, %79 : vector<2x25x10xf32>
    %82 = vector.broadcast %77 : vector<2x1x10xf32> to vector<2x25x10xf32>
    %83 = arith.addf %81, %82 : vector<2x25x10xf32>
    %cst_25 = arith.constant 0.000000e+00 : f32
    %84 = vector.broadcast %cst_25 : f32 to vector<2x25x10xf32>
    %85 = arith.maximumf %83, %84 : vector<2x25x10xf32>
    %86 = math.sqrt %85 : vector<2x25x10xf32>
    %87 = arith.addf %86, %13 : vector<2x25x10xf32>
    %cst_26 = arith.constant dense<0x7F800000> : vector<2x10xf32>
    %88 = vector.multi_reduction <minimumf>, %87, %cst_26 [1] : vector<2x25x10xf32> to vector<2x10xf32>
    %89 = vector.shape_cast %88 : vector<2x10xf32> to vector<2x1x10xf32>
    %90 = vector.broadcast %89 : vector<2x1x10xf32> to vector<2x25x10xf32>
    %91 = arith.subf %90, %87 : vector<2x25x10xf32>
    %92 = math.exp %91 : vector<2x25x10xf32>
    %cst_27 = arith.constant dense<0.000000e+00> : vector<2x10xf32>
    %93 = vector.multi_reduction <add>, %92, %cst_27 [1] : vector<2x25x10xf32> to vector<2x10xf32>
    %94 = vector.shape_cast %93 : vector<2x10xf32> to vector<2x1x10xf32>
    %95 = vector.broadcast %94 : vector<2x1x10xf32> to vector<2x25x10xf32>
    %96 = arith.divf %92, %95 : vector<2x25x10xf32>
    "tpu.trace_start"() <{level = 10 : i32, message = "nps,npc->nsc"}> : () -> ()
    %cst_28 = arith.constant dense<0.000000e+00> : vector<2x10x34xf32>
    %97 = tpu.matmul %96, %1, %cst_28 {dimension_numbers = #tpu.dot_dimension_numbers<[1], [1], [2], [2], [0, 0, 0, 2, 1, 2], [0], [0]>} : vector<2x25x10xf32>, vector<2x25x34xf32>, vector<2x10x34xf32> -> vector<2x10x34xf32>
    "tpu.trace_stop"() : () -> ()
    %c3_i32 = arith.constant 3 : i32
    "tpu.trace_start"() <{level = 10 : i32, message = "npc,nsc->nps"}> : () -> ()
    %cst_29 = arith.constant dense<0.000000e+00> : vector<2x25x10xf32>
    %98 = tpu.matmul %1, %97, %cst_29 {dimension_numbers = #tpu.dot_dimension_numbers<[2], [2], [1], [1], [0, 0, 0, 1, 1, 1], [0], [0]>} : vector<2x25x34xf32>, vector<2x10x34xf32>, vector<2x25x10xf32> -> vector<2x25x10xf32>
    "tpu.trace_stop"() : () -> ()
    %99 = arith.mulf %97, %97 : vector<2x10x34xf32>
    %cst_30 = arith.constant dense<0.000000e+00> : vector<2x10xf32>
    %100 = vector.multi_reduction <add>, %99, %cst_30 [2] : vector<2x10x34xf32> to vector<2x10xf32>
    %101 = vector.shape_cast %100 : vector<2x10xf32> to vector<2x1x10xf32>
    %cst_31 = arith.constant 2.000000e+00 : f32
    %102 = vector.broadcast %cst_31 : f32 to vector<2x25x10xf32>
    %103 = arith.mulf %102, %98 : vector<2x25x10xf32>
    %104 = vector.broadcast %16 : vector<2x25x1xf32> to vector<2x25x10xf32>
    %105 = arith.subf %104, %103 : vector<2x25x10xf32>
    %106 = vector.broadcast %101 : vector<2x1x10xf32> to vector<2x25x10xf32>
    %107 = arith.addf %105, %106 : vector<2x25x10xf32>
    %cst_32 = arith.constant 0.000000e+00 : f32
    %108 = vector.broadcast %cst_32 : f32 to vector<2x25x10xf32>
    %109 = arith.maximumf %107, %108 : vector<2x25x10xf32>
    %110 = math.sqrt %109 : vector<2x25x10xf32>
    %111 = arith.addf %110, %13 : vector<2x25x10xf32>
    %cst_33 = arith.constant dense<0x7F800000> : vector<2x10xf32>
    %112 = vector.multi_reduction <minimumf>, %111, %cst_33 [1] : vector<2x25x10xf32> to vector<2x10xf32>
    %113 = vector.shape_cast %112 : vector<2x10xf32> to vector<2x1x10xf32>
    %114 = vector.broadcast %113 : vector<2x1x10xf32> to vector<2x25x10xf32>
    %115 = arith.subf %114, %111 : vector<2x25x10xf32>
    %116 = math.exp %115 : vector<2x25x10xf32>
    %cst_34 = arith.constant dense<0.000000e+00> : vector<2x10xf32>
    %117 = vector.multi_reduction <add>, %116, %cst_34 [1] : vector<2x25x10xf32> to vector<2x10xf32>
    %118 = vector.shape_cast %117 : vector<2x10xf32> to vector<2x1x10xf32>
    %119 = vector.broadcast %118 : vector<2x1x10xf32> to vector<2x25x10xf32>
    %120 = arith.divf %116, %119 : vector<2x25x10xf32>
    "tpu.trace_start"() <{level = 10 : i32, message = "nps,npc->nsc"}> : () -> ()
    %cst_35 = arith.constant dense<0.000000e+00> : vector<2x10x34xf32>
    %121 = tpu.matmul %120, %1, %cst_35 {dimension_numbers = #tpu.dot_dimension_numbers<[1], [1], [2], [2], [0, 0, 0, 2, 1, 2], [0], [0]>} : vector<2x25x10xf32>, vector<2x25x34xf32>, vector<2x10x34xf32> -> vector<2x10x34xf32>
    "tpu.trace_stop"() : () -> ()
    %c4_i32 = arith.constant 4 : i32
    "tpu.trace_start"() <{level = 10 : i32, message = "npc,nsc->nps"}> : () -> ()
    %cst_36 = arith.constant dense<0.000000e+00> : vector<2x25x10xf32>
    %122 = tpu.matmul %1, %121, %cst_36 {dimension_numbers = #tpu.dot_dimension_numbers<[2], [2], [1], [1], [0, 0, 0, 1, 1, 1], [0], [0]>} : vector<2x25x34xf32>, vector<2x10x34xf32>, vector<2x25x10xf32> -> vector<2x25x10xf32>
    "tpu.trace_stop"() : () -> ()
    %123 = arith.mulf %121, %121 : vector<2x10x34xf32>
    %cst_37 = arith.constant dense<0.000000e+00> : vector<2x10xf32>
    %124 = vector.multi_reduction <add>, %123, %cst_37 [2] : vector<2x10x34xf32> to vector<2x10xf32>
    %125 = vector.shape_cast %124 : vector<2x10xf32> to vector<2x1x10xf32>
    %cst_38 = arith.constant 2.000000e+00 : f32
    %126 = vector.broadcast %cst_38 : f32 to vector<2x25x10xf32>
    %127 = arith.mulf %126, %122 : vector<2x25x10xf32>
    %128 = vector.broadcast %16 : vector<2x25x1xf32> to vector<2x25x10xf32>
    %129 = arith.subf %128, %127 : vector<2x25x10xf32>
    %130 = vector.broadcast %125 : vector<2x1x10xf32> to vector<2x25x10xf32>
    %131 = arith.addf %129, %130 : vector<2x25x10xf32>
    %cst_39 = arith.constant 0.000000e+00 : f32
    %132 = vector.broadcast %cst_39 : f32 to vector<2x25x10xf32>
    %133 = arith.maximumf %131, %132 : vector<2x25x10xf32>
    %134 = math.sqrt %133 : vector<2x25x10xf32>
    %135 = arith.addf %134, %13 : vector<2x25x10xf32>
    %cst_40 = arith.constant dense<0x7F800000> : vector<2x10xf32>
    %136 = vector.multi_reduction <minimumf>, %135, %cst_40 [1] : vector<2x25x10xf32> to vector<2x10xf32>
    %137 = vector.shape_cast %136 : vector<2x10xf32> to vector<2x1x10xf32>
    %138 = vector.broadcast %137 : vector<2x1x10xf32> to vector<2x25x10xf32>
    %139 = arith.subf %138, %135 : vector<2x25x10xf32>
    %140 = math.exp %139 : vector<2x25x10xf32>
    %cst_41 = arith.constant dense<0.000000e+00> : vector<2x10xf32>
    %141 = vector.multi_reduction <add>, %140, %cst_41 [1] : vector<2x25x10xf32> to vector<2x10xf32>
    %142 = vector.shape_cast %141 : vector<2x10xf32> to vector<2x1x10xf32>
    %143 = vector.broadcast %142 : vector<2x1x10xf32> to vector<2x25x10xf32>
    %144 = arith.divf %140, %143 : vector<2x25x10xf32>
    "tpu.trace_start"() <{level = 10 : i32, message = "nps,npc->nsc"}> : () -> ()
    %cst_42 = arith.constant dense<0.000000e+00> : vector<2x10x34xf32>
    %145 = tpu.matmul %144, %1, %cst_42 {dimension_numbers = #tpu.dot_dimension_numbers<[1], [1], [2], [2], [0, 0, 0, 2, 1, 2], [0], [0]>} : vector<2x25x10xf32>, vector<2x25x34xf32>, vector<2x10x34xf32> -> vector<2x10x34xf32>
    "tpu.trace_stop"() : () -> ()
    %146 = vector.extract_strided_slice %145 {offsets = [0, 0, 0], sizes = [2, 10, 32], strides = [1, 1, 1]} : vector<2x10x34xf32> to vector<2x10x32xf32>
    %147 = vector.extract_strided_slice %1 {offsets = [0, 0, 0], sizes = [2, 25, 32], strides = [1, 1, 1]} : vector<2x25x34xf32> to vector<2x25x32xf32>
    %cst_43 = arith.constant dense<0.000000e+00> : vector<2x1xf32>
    %148 = vector.multi_reduction <add>, %2, %cst_43 [1] : vector<2x25x1xf32> to vector<2x1xf32>
    %149 = vector.shape_cast %148 : vector<2x1xf32> to vector<2x1x1xf32>
    %cst_44 = arith.constant 5.000000e-04 : f32
    %150 = vector.broadcast %cst_44 : f32 to vector<2x1x1xf32>
    %151 = arith.addf %149, %150 : vector<2x1x1xf32>
    %cst_45 = arith.constant 1.000000e+00 : f32
    %152 = vector.broadcast %cst_45 : f32 to vector<2x25x1xf32>
    %153 = arith.subf %152, %2 : vector<2x25x1xf32>
    %cst_46 = arith.constant dense<0.000000e+00> : vector<2x1xf32>
    %154 = vector.multi_reduction <add>, %153, %cst_46 [1] : vector<2x25x1xf32> to vector<2x1xf32>
    %155 = vector.shape_cast %154 : vector<2x1xf32> to vector<2x1x1xf32>
    %cst_47 = arith.constant 5.000000e-04 : f32
    %156 = vector.broadcast %cst_47 : f32 to vector<2x1x1xf32>
    %157 = arith.addf %155, %156 : vector<2x1x1xf32>
    %158 = vector.broadcast %2 : vector<2x25x1xf32> to vector<2x25x32xf32>
    %159 = arith.mulf %147, %158 : vector<2x25x32xf32>
    %cst_48 = arith.constant dense<0.000000e+00> : vector<2x32xf32>
    %160 = vector.multi_reduction <add>, %159, %cst_48 [1] : vector<2x25x32xf32> to vector<2x32xf32>
    %161 = vector.shape_cast %160 : vector<2x32xf32> to vector<2x1x32xf32>
    %162 = vector.broadcast %151 : vector<2x1x1xf32> to vector<2x1x32xf32>
    %163 = arith.divf %161, %162 : vector<2x1x32xf32>
    %cst_49 = arith.constant 1.000000e+00 : f32
    %164 = vector.broadcast %cst_49 : f32 to vector<2x25x1xf32>
    %165 = arith.subf %164, %2 : vector<2x25x1xf32>
    %166 = vector.broadcast %165 : vector<2x25x1xf32> to vector<2x25x32xf32>
    %167 = arith.mulf %147, %166 : vector<2x25x32xf32>
    %cst_50 = arith.constant dense<0.000000e+00> : vector<2x32xf32>
    %168 = vector.multi_reduction <add>, %167, %cst_50 [1] : vector<2x25x32xf32> to vector<2x32xf32>
    %169 = vector.shape_cast %168 : vector<2x32xf32> to vector<2x1x32xf32>
    %170 = vector.broadcast %157 : vector<2x1x1xf32> to vector<2x1x32xf32>
    %171 = arith.divf %169, %170 : vector<2x1x32xf32>
    %172 = vector.shape_cast %163 : vector<2x1x32xf32> to vector<2x1x32xf32>
    %173 = vector.broadcast %172 : vector<2x1x32xf32> to vector<2x5x32xf32>
    %174 = vector.shape_cast %171 : vector<2x1x32xf32> to vector<2x1x32xf32>
    %175 = vector.broadcast %174 : vector<2x1x32xf32> to vector<2x5x32xf32>
    %176 = tpu.concatenate %173, %175 in 1 : vector<2x5x32xf32>, vector<2x5x32xf32> -> vector<2x10x32xf32>
    %c0_51 = arith.constant 0 : index
    %c0_52 = arith.constant 0 : index
    %c0_53 = arith.constant 0 : index
    %177 = vector.load %arg2[%c0_51, %c0_52, %c0_53] : memref<2x10x1xf32, #tpu.memory_space<vmem>>, vector<2x10x1xf32>
    %178 = vector.broadcast %177 : vector<2x10x1xf32> to vector<2x10x32xf32>
    %179 = arith.mulf %178, %176 : vector<2x10x32xf32>
    %cst_54 = arith.constant 1.000000e+00 : f32
    %180 = vector.broadcast %cst_54 : f32 to vector<2x10x1xf32>
    %181 = arith.subf %180, %177 : vector<2x10x1xf32>
    %182 = vector.broadcast %181 : vector<2x10x1xf32> to vector<2x10x32xf32>
    %183 = arith.mulf %182, %146 : vector<2x10x32xf32>
    %184 = arith.addf %179, %183 : vector<2x10x32xf32>
    %185 = vector.extract_strided_slice %184 {offsets = [0, 0, 0], sizes = [1, 5, 32], strides = [1, 1, 1]} : vector<2x10x32xf32> to vector<1x5x32xf32>
    %186 = vector.shape_cast %185 : vector<1x5x32xf32> to vector<5x32xf32>
    %187 = vector.extract_strided_slice %184 {offsets = [0, 5, 0], sizes = [1, 5, 32], strides = [1, 1, 1]} : vector<2x10x32xf32> to vector<1x5x32xf32>
    %188 = vector.shape_cast %187 : vector<1x5x32xf32> to vector<5x32xf32>
    %189 = vector.extract_strided_slice %184 {offsets = [1, 0, 0], sizes = [1, 5, 32], strides = [1, 1, 1]} : vector<2x10x32xf32> to vector<1x5x32xf32>
    %190 = vector.shape_cast %189 : vector<1x5x32xf32> to vector<5x32xf32>
    %191 = vector.extract_strided_slice %184 {offsets = [1, 5, 0], sizes = [1, 5, 32], strides = [1, 1, 1]} : vector<2x10x32xf32> to vector<1x5x32xf32>
    %192 = vector.shape_cast %191 : vector<1x5x32xf32> to vector<5x32xf32>
    %193 = tpu.concatenate %186, %188, %190, %192 in 1 : vector<5x32xf32>, vector<5x32xf32>, vector<5x32xf32>, vector<5x32xf32> -> vector<5x128xf32>
    %c0_55 = arith.constant 0 : index
    %c0_56 = arith.constant 0 : index
    %194 = vector.load %arg3[%c0_55, %c0_56] : memref<5x128xf32, #tpu.memory_space<vmem>>, vector<5x128xf32>
    tpu.vector_store %arg3[%c0_55, %c0_56], %193 {strides = array<i32>} : memref<5x128xf32, #tpu.memory_space<vmem>>, vector<5x128xf32>,
    return
  }
}

</mosaic_0001>

<llo_original>
// kernel: _device_forward.2
$region0: #{_device_forward.2}
  #allocation0 [shape = 'u32[]', space=smem, size = 0x4, offset = 0x4, fixed_abs, tag = 'smem constant byte address 0x4 - core index']
  #allocation1 [shape = 'u32[144,128]{1,0:T(1,128)}', space=vmem, size = 0x12000, scoped, tag = 'internal scratch']
  %s0 = inlined_call_operand.vmem [shape: f32[100,32], index: 0, kind: input, shape index: {}]
  %s1 = inlined_call_operand.vmem [shape: f32[6,32,32], index: 1, kind: input, shape index: {}]
  %s2 = inlined_call_operand.vmem [shape: f32[5,32], index: 2, kind: input, shape index: {}]
  %s3 = inlined_call_operand.vmem [shape: f32[25,128], index: 3, kind: output, shape index: {}]
  %s4 = sld [smem:[#allocation0]]
  $region22: #{_device_forward.2} parent=0
    _
  %s6 = ssub.s32 1, %s4
  %s7 = scalar_select 0, %s6, %s4
  // Predicated region
  $region2: #{_device_forward.2} parent=0 // pred_check
    _
  $region3: #{_device_forward.2} parent=0 // pred_check_branch
    %9 = sbr.rel (0) target = $region5
  $region4: #{_device_forward.2} parent=0 // pred_region
    _
  $region5: #{_device_forward.2} parent=0 // pred_fallthru
    _
  // Predicated region
  $region6: #{_device_forward.2} parent=0 // pred_check
    _
  $region7: #{_device_forward.2} parent=0 // pred_check_branch
    %11 = sbr.rel (0) target = $region9
  $region8: #{_device_forward.2} parent=0 // pred_region
    _
  $region9: #{_device_forward.2} parent=0 // pred_fallthru
    _
  // Predicated region
  $region10: #{_device_forward.2} parent=0 // pred_check
    _
  $region11: #{_device_forward.2} parent=0 // pred_check_branch
    %13 = sbr.rel (0) target = $region13
  $region12: #{_device_forward.2} parent=0 // pred_region
    _
  $region13: #{_device_forward.2} parent=0 // pred_fallthru
    _
  %v14 = vld [vmem:[%s1] sm:$0xff]
  %v15 = vld [vmem:[%s1 + $0x8] sm:$0xff]
  %v16 = vld [vmem:[%s1 + $0x10] sm:$0xff]
  %v17 = vld [vmem:[%s1 + $0x18] sm:$0xff]
  %v18 = vld [vmem:[%s1 + $0x20] sm:$0xff]
  %v19 = vld [vmem:[%s1 + $0x28] sm:$0xff]
  %v20 = vld [vmem:[%s1 + $0x30] sm:$0xff]
  %v21 = vld [vmem:[%s1 + $0x38] sm:$0xff]
  %v22 = vld [vmem:[%s1 + $0x40] sm:$0xff]
  %v23 = vld [vmem:[%s1 + $0x48] sm:$0xff]
  %v24 = vld [vmem:[%s1 + $0x50] sm:$0xff]
  %v25 = vld [vmem:[%s1 + $0x58] sm:$0xff]
  %v26 = vld [vmem:[%s1 + $0x60] sm:$0xff]
  %v27 = vld [vmem:[%s1 + $0x68] sm:$0xff]
  %v28 = vld [vmem:[%s1 + $0x70] sm:$0xff]
  %v29 = vld [vmem:[%s1 + $0x78] sm:$0xff]
  %v30 = vld [vmem:[%s1 + $0x80] sm:$0xff]
  %v31 = vld [vmem:[%s1 + $0x88] sm:$0xff]
  %v32 = vld [vmem:[%s1 + $0x90] sm:$0xff]
  %v33 = vld [vmem:[%s1 + $0x98] sm:$0xff]
  %v34 = vld [vmem:[%s1 + $0xa0] sm:$0xff]
  %v35 = vld [vmem:[%s1 + $0xa8] sm:$0xff]
  %v36 = vld [vmem:[%s1 + $0xb0] sm:$0xff]
  %v37 = vld [vmem:[%s1 + $0xb8] sm:$0xff]
  %v38 = vld [vmem:[%s2] sm:$0x1f]
  %v39 = vld [vmem:[%s0] sm:$0xff]
  %v40 = vld [vmem:[%s0 + $0x8] sm:$0xff]
  %v41 = vld [vmem:[%s0 + $0x10] sm:$0xff]
  %v42 = vld [vmem:[%s0 + $0x18] sm:$0xff]
  %v43 = vld [vmem:[%s0 + $0x20] sm:$0xff]
  %v44 = vld [vmem:[%s0 + $0x28] sm:$0xff]
  %v45 = vld [vmem:[%s0 + $0x30] sm:$0xff]
  %v46 = vld [vmem:[%s0 + $0x38] sm:$0xff]
  %v47 = vld [vmem:[%s0 + $0x40] sm:$0xff]
  %v48 = vld [vmem:[%s0 + $0x48] sm:$0xff]
  %v49 = vld [vmem:[%s0 + $0x50] sm:$0xff]
  %v50 = vld [vmem:[%s0 + $0x58] sm:$0xff]
  %v51 = vld [vmem:[%s0 + $0x60] sm:$0xf]
  %v52 = vlaneseq
  %v53 = vshrl.u32 %v52, 7
  %v54 = vsub.s32 0, %v53
  %v55 = vrot.slane %v38, %v54
  %vm56 = vcmask 261120
  %v58 = vsel %vm56, %v39, 0
  %v61 = vsel %vm56, %v40, 0
  %v64 = vsel %vm56, %v41, 0
  %v67 = vsel %vm56, %v42, 0
  %v70 = vsel %vm56, %v43, 0
  %v73 = vsel %vm56, %v44, 0
  %v76 = vsel %vm56, %v45, 0
  %v79 = vsel %vm56, %v46, 0
  %v82 = vsel %vm56, %v47, 0
  %v85 = vsel %vm56, %v48, 0
  %v88 = vsel %vm56, %v49, 0
  %v91 = vsel %vm56, %v50, 0
  %v94 = vsel %vm56, %v51, 0
  %96 = vmatprep.subr.mxu0 0.0
  %97 = vmatpush1.msra.mxu0 0.0
  %98 = vmatprep.subr.mxu0 0.0
  %99 = vmatpush1.msra.mxu0 0.0
  %100 = vmatprep.subr.mxu0 0.0
  %101 = vmatpush1.msra.mxu0 0.0
  %102 = vmatprep.subr.mxu0 0.0
  %103 = vmatpush1.msra.mxu0 0.0
  %104 = vmatprep.subr.mxu0 0.0
  %105 = vmatpush1.msra.mxu0 0.0
  %106 = vmatprep.subr.mxu0 0.0
  %107 = vmatpush1.msra.mxu0 0.0
  %108 = vmatprep.subr.mxu0 0.0
  %109 = vmatpush1.msra.mxu0 0.0
  %110 = vmatprep.subr.mxu0 0.0
  %111 = vmatpush1.msra.mxu0 0.0
  %112 = vmatprep.subr.mxu0 0.0
  %113 = vmatpush1.msra.mxu0 0.0
  %114 = vmatprep.subr.mxu0 0.0
  %115 = vmatpush1.msra.mxu0 0.0
  %116 = vmatprep.subr.mxu0 0.0
  %117 = vmatpush1.msra.mxu0 0.0
  %118 = vmatprep.subr.mxu0 0.0
  %119 = vmatpush1.msra.mxu0 0.0
  %120 = vmatprep.subr.mxu0 0.0
  %121 = vmatpush1.msra.mxu0 %v17
  %122 = vmatprep.subr.mxu0 0.0
  %123 = vmatpush1.msra.mxu0 %v16
  %124 = vmatprep.subr.mxu0 0.0
  %125 = vmatpush1.msra.mxu0 %v15
  %126 = vmatprep.subr.mxu0 0.0
  %127 = vmatpush1.msra.mxu0 %v14
  %128 = vmatprep.subr.mxu0 0.0
  %129 = vmatpush2.msra.mxu0 0.0
  %130 = vmatprep.subr.mxu0 0.0
  %131 = vmatpush2.msra.mxu0 0.0
  %132 = vmatprep.subr.mxu0 0.0
  %133 = vmatpush2.msra.mxu0 0.0
  %134 = vmatprep.subr.mxu0 0.0
  %135 = vmatpush2.msra.mxu0 0.0
  %136 = vmatprep.subr.mxu0 0.0
  %137 = vmatpush2.msra.mxu0 0.0
  %138 = vmatprep.subr.mxu0 0.0
  %139 = vmatpush2.msra.mxu0 0.0
  %140 = vmatprep.subr.mxu0 0.0
  %141 = vmatpush2.msra.mxu0 0.0
  %142 = vmatprep.subr.mxu0 0.0
  %143 = vmatpush2.msra.mxu0 0.0
  %144 = vmatprep.subr.mxu0 0.0
  %145 = vmatpush2.msra.mxu0 0.0
  %146 = vmatprep.subr.mxu0 0.0
  %147 = vmatpush2.msra.mxu0 0.0
  %148 = vmatprep.subr.mxu0 0.0
  %149 = vmatpush2.msra.mxu0 0.0
  %150 = vmatprep.subr.mxu0 0.0
  %151 = vmatpush2.msra.mxu0 0.0
  %152 = vmatprep.subr.mxu0 0.0
  %153 = vmatpush2.msra.mxu0 0.0
  %154 = vmatprep.subr.mxu0 0.0
  %155 = vmatpush2.msra.mxu0 0.0
  %156 = vmatprep.subr.mxu0 0.0
  %157 = vmatpush2.msra.mxu0 0.0
  %158 = vmatprep.subr.mxu0 0.0
  %159 = vmatpush2.msra.mxu0 0.0
  %160 = vmatprep.mubr.f32.mxu0 0.0
  %161 = vmatmul.mubr.f32.gmra.mxu0 %v58
  %v162 = vpop.f32.mrf.mxu0
  %v163 = vadd.f32 %v55, %v162
  %v164 = vpop.f32.mrf.mxu0
  %165 = vmatprep.mubr.f32.mxu0 0.0
  %166 = vmatmul.mubr.f32.gmra.mxu0 %v61
  %v167 = vpop.f32.mrf.mxu0
  %v168 = vadd.f32 %v55, %v167
  %v169 = vpop.f32.mrf.mxu0
  %170 = vmatprep.mubr.f32.mxu0 0.0
  %171 = vmatmul.mubr.f32.gmra.mxu0 %v64
  %v172 = vpop.f32.mrf.mxu0
  %v173 = vadd.f32 %v55, %v172
  %v174 = vpop.f32.mrf.mxu0
  %175 = vmatprep.mubr.f32.mxu0 0.0
  %176 = vmatmul.mubr.f32.gmra.mxu0 %v67
  %v177 = vpop.f32.mrf.mxu0
  %v178 = vadd.f32 %v55, %v177
  %v179 = vpop.f32.mrf.mxu0
  %180 = vmatprep.mubr.f32.mxu0 0.0
  %181 = vmatmul.mubr.f32.gmra.mxu0 %v70
  %v182 = vpop.f32.mrf.mxu0
  %v183 = vadd.f32 %v55, %v182
  %v184 = vpop.f32.mrf.mxu0
  %185 = vmatprep.mubr.f32.mxu0 0.0
  %186 = vmatmul.mubr.f32.gmra.mxu0 %v73
  %v187 = vpop.f32.mrf.mxu0
  %v188 = vadd.f32 %v55, %v187
  %v189 = vpop.f32.mrf.mxu0
  %190 = vmatprep.mubr.f32.mxu0 0.0
  %191 = vmatmul.mubr.f32.gmra.mxu0 %v76
  %v192 = vpop.f32.mrf.mxu0
  %v193 = vadd.f32 %v55, %v192
  %v194 = vpop.f32.mrf.mxu0
  %195 = vmatprep.mubr.f32.mxu0 0.0
  %196 = vmatmul.mubr.f32.gmra.mxu0 %v79
  %v197 = vpop.f32.mrf.mxu0
  %v198 = vadd.f32 %v55, %v197
  %v199 = vpop.f32.mrf.mxu0
  %200 = vmatprep.mubr.f32.mxu0 0.0
  %201 = vmatmul.mubr.f32.gmra.mxu0 %v82
  %v202 = vpop.f32.mrf.mxu0
  %v203 = vadd.f32 %v55, %v202
  %v204 = vpop.f32.mrf.mxu0
  %205 = vmatprep.mubr.f32.mxu0 0.0
  %206 = vmatmul.mubr.f32.gmra.mxu0 %v85
  %v207 = vpop.f32.mrf.mxu0
  %v208 = vadd.f32 %v55, %v207
  %v209 = vpop.f32.mrf.mxu0
  %210 = vmatprep.mubr.f32.mxu0 0.0
  %211 = vmatmul.mubr.f32.gmra.mxu0 %v88
  %v212 = vpop.f32.mrf.mxu0
  %v213 = vadd.f32 %v55, %v212
  %v214 = vpop.f32.mrf.mxu0
  %215 = vmatprep.mubr.f32.mxu0 0.0
  %216 = vmatmul.mubr.f32.gmra.mxu0 %v91
  %v217 = vpop.f32.mrf.mxu0
  %v218 = vadd.f32 %v55, %v217
  %v219 = vpop.f32.mrf.mxu0
  %220 = vmatprep.mubr.f32.mxu0 0.0
  %221 = vmatmul.mubr.f32.gmra.mxu0 %v94
  %v222 = vpop.f32.mrf.mxu0
  %v223 = vadd.f32 %v55, %v222
  %v224 = vpop.f32.mrf.mxu0
  %225 = vdwg.mxu0
  %v226 = vmax.f32 %v163, 0.0
  %v227 = vmax.f32 %v168, 0.0
  %v228 = vmax.f32 %v173, 0.0
  %v229 = vmax.f32 %v178, 0.0
  %v230 = vmax.f32 %v183, 0.0
  %v231 = vmax.f32 %v188, 0.0
  %v232 = vmax.f32 %v193, 0.0
  %v233 = vmax.f32 %v198, 0.0
  %v234 = vmax.f32 %v203, 0.0
  %v235 = vmax.f32 %v208, 0.0
  %v236 = vmax.f32 %v213, 0.0
  %v237 = vmax.f32 %v218, 0.0
  %v238 = vmax.f32 %v223, 0.0
  %v239 = vlaneseq
  %v240 = vshrl.u32 %v239, 7
  %v241 = vsub.s32 1, %v240
  %v242 = vrot.slane %v38, %v241
  %v244 = vsel %vm56, %v226, 0
  %v247 = vsel %vm56, %v227, 0
  %v250 = vsel %vm56, %v228, 0
  %v253 = vsel %vm56, %v229, 0
  %v256 = vsel %vm56, %v230, 0
  %v259 = vsel %vm56, %v231, 0
  %v262 = vsel %vm56, %v232, 0
  %v265 = vsel %vm56, %v233, 0
  %v268 = vsel %vm56, %v234, 0
  %v271 = vsel %vm56, %v235, 0
  %v274 = vsel %vm56, %v236, 0
  %v277 = vsel %vm56, %v237, 0
  %v280 = vsel %vm56, %v238, 0
  %282 = vmatprep.subr.mxu0 0.0
  %283 = vmatpush1.msra.mxu0 0.0
  %284 = vmatprep.subr.mxu0 0.0
  %285 = vmatpush1.msra.mxu0 0.0
  %286 = vmatprep.subr.mxu0 0.0
  %287 = vmatpush1.msra.mxu0 0.0
  %288 = vmatprep.subr.mxu0 0.0
  %289 = vmatpush1.msra.mxu0 0.0
  %290 = vmatprep.subr.mxu0 0.0
  %291 = vmatpush1.msra.mxu0 0.0
  %292 = vmatprep.subr.mxu0 0.0
  %293 = vmatpush1.msra.mxu0 0.0
  %294 = vmatprep.subr.mxu0 0.0
  %295 = vmatpush1.msra.mxu0 0.0
  %296 = vmatprep.subr.mxu0 0.0
  %297 = vmatpush1.msra.mxu0 0.0
  %298 = vmatprep.subr.mxu0 0.0
  %299 = vmatpush1.msra.mxu0 0.0
  %300 = vmatprep.subr.mxu0 0.0
  %301 = vmatpush1.msra.mxu0 0.0
  %302 = vmatprep.subr.mxu0 0.0
  %303 = vmatpush1.msra.mxu0 0.0
  %304 = vmatprep.subr.mxu0 0.0
  %305 = vmatpush1.msra.mxu0 0.0
  %306 = vmatprep.subr.mxu0 0.0
  %307 = vmatpush1.msra.mxu0 %v21
  %308 = vmatprep.subr.mxu0 0.0
  %309 = vmatpush1.msra.mxu0 %v20
  %310 = vmatprep.subr.mxu0 0.0
  %311 = vmatpush1.msra.mxu0 %v19
  %312 = vmatprep.subr.mxu0 0.0
  %313 = vmatpush1.msra.mxu0 %v18
  %314 = vmatprep.subr.mxu0 0.0
  %315 = vmatpush2.msra.mxu0 0.0
  %316 = vmatprep.subr.mxu0 0.0
  %317 = vmatpush2.msra.mxu0 0.0
  %318 = vmatprep.subr.mxu0 0.0
  %319 = vmatpush2.msra.mxu0 0.0
  %320 = vmatprep.subr.mxu0 0.0
  %321 = vmatpush2.msra.mxu0 0.0
  %322 = vmatprep.subr.mxu0 0.0
  %323 = vmatpush2.msra.mxu0 0.0
  %324 = vmatprep.subr.mxu0 0.0
  %325 = vmatpush2.msra.mxu0 0.0
  %326 = vmatprep.subr.mxu0 0.0
  %327 = vmatpush2.msra.mxu0 0.0
  %328 = vmatprep.subr.mxu0 0.0
  %329 = vmatpush2.msra.mxu0 0.0
  %330 = vmatprep.subr.mxu0 0.0
  %331 = vmatpush2.msra.mxu0 0.0
  %332 = vmatprep.subr.mxu0 0.0
  %333 = vmatpush2.msra.mxu0 0.0
  %334 = vmatprep.subr.mxu0 0.0
  %335 = vmatpush2.msra.mxu0 0.0
  %336 = vmatprep.subr.mxu0 0.0
  %337 = vmatpush2.msra.mxu0 0.0
  %338 = vmatprep.subr.mxu0 0.0
  %339 = vmatpush2.msra.mxu0 0.0
  %340 = vmatprep.subr.mxu0 0.0
  %341 = vmatpush2.msra.mxu0 0.0
  %342 = vmatprep.subr.mxu0 0.0
  %343 = vmatpush2.msra.mxu0 0.0
  %344 = vmatprep.subr.mxu0 0.0
  %345 = vmatpush2.msra.mxu0 0.0
  %346 = vmatprep.mubr.f32.mxu0 0.0
  %347 = vmatmul.mubr.f32.gmra.mxu0 %v244
  %v348 = vpop.f32.mrf.mxu0
  %v349 = vadd.f32 %v242, %v348
  %v350 = vpop.f32.mrf.mxu0
  %351 = vmatprep.mubr.f32.mxu0 0.0
  %352 = vmatmul.mubr.f32.gmra.mxu0 %v247
  %v353 = vpop.f32.mrf.mxu0
  %v354 = vadd.f32 %v242, %v353
  %v355 = vpop.f32.mrf.mxu0
  %356 = vmatprep.mubr.f32.mxu0 0.0
  %357 = vmatmul.mubr.f32.gmra.mxu0 %v250
  %v358 = vpop.f32.mrf.mxu0
  %v359 = vadd.f32 %v242, %v358
  %v360 = vpop.f32.mrf.mxu0
  %361 = vmatprep.mubr.f32.mxu0 0.0
  %362 = vmatmul.mubr.f32.gmra.mxu0 %v253
  %v363 = vpop.f32.mrf.mxu0
  %v364 = vadd.f32 %v242, %v363
  %v365 = vpop.f32.mrf.mxu0
  %366 = vmatprep.mubr.f32.mxu0 0.0
  %367 = vmatmul.mubr.f32.gmra.mxu0 %v256
  %v368 = vpop.f32.mrf.mxu0
  %v369 = vadd.f32 %v242, %v368
  %v370 = vpop.f32.mrf.mxu0
  %371 = vmatprep.mubr.f32.mxu0 0.0
  %372 = vmatmul.mubr.f32.gmra.mxu0 %v259
  %v373 = vpop.f32.mrf.mxu0
  %v374 = vadd.f32 %v242, %v373
  %v375 = vpop.f32.mrf.mxu0
  %376 = vmatprep.mubr.f32.mxu0 0.0
  %377 = vmatmul.mubr.f32.gmra.mxu0 %v262
  %v378 = vpop.f32.mrf.mxu0
  %v379 = vadd.f32 %v242, %v378
  %v380 = vpop.f32.mrf.mxu0
  %381 = vmatprep.mubr.f32.mxu0 0.0
  %382 = vmatmul.mubr.f32.gmra.mxu0 %v265
  %v383 = vpop.f32.mrf.mxu0
  %v384 = vadd.f32 %v242, %v383
  %v385 = vpop.f32.mrf.mxu0
  %386 = vmatprep.mubr.f32.mxu0 0.0
  %387 = vmatmul.mubr.f32.gmra.mxu0 %v268
  %v388 = vpop.f32.mrf.mxu0
  %v389 = vadd.f32 %v242, %v388
  %v390 = vpop.f32.mrf.mxu0
  %391 = vmatprep.mubr.f32.mxu0 0.0
  %392 = vmatmul.mubr.f32.gmra.mxu0 %v271
  %v393 = vpop.f32.mrf.mxu0
  %v394 = vadd.f32 %v242, %v393
  %v395 = vpop.f32.mrf.mxu0
  %396 = vmatprep.mubr.f32.mxu0 0.0
  %397 = vmatmul.mubr.f32.gmra.mxu0 %v274
  %v398 = vpop.f32.mrf.mxu0
  %v399 = vadd.f32 %v242, %v398
  %v400 = vpop.f32.mrf.mxu0
  %401 = vmatprep.mubr.f32.mxu0 0.0
  %402 = vmatmul.mubr.f32.gmra.mxu0 %v277
  %v403 = vpop.f32.mrf.mxu0
  %v404 = vadd.f32 %v242, %v403
  %v405 = vpop.f32.mrf.mxu0
  %406 = vmatprep.mubr.f32.mxu0 0.0
  %407 = vmatmul.mubr.f32.gmra.mxu0 %v280
  %v408 = vpop.f32.mrf.mxu0
  %v409 = vadd.f32 %v242, %v408
  %v410 = vpop.f32.mrf.mxu0
  %411 = vdwg.mxu0
  %v412 = vmax.f32 %v349, 0.0
  %v413 = vmax.f32 %v354, 0.0
  %v414 = vmax.f32 %v359, 0.0
  %v415 = vmax.f32 %v364, 0.0
  %v416 = vmax.f32 %v369, 0.0
  %v417 = vmax.f32 %v374, 0.0
  %v418 = vmax.f32 %v379, 0.0
  %v419 = vmax.f32 %v384, 0.0
  %v420 = vmax.f32 %v389, 0.0
  %v421 = vmax.f32 %v394, 0.0
  %v422 = vmax.f32 %v399, 0.0
  %v423 = vmax.f32 %v404, 0.0
  %v424 = vmax.f32 %v409, 0.0
  %v425 = vlaneseq
  %v426 = vshrl.u32 %v425, 7
  %v427 = vsub.s32 2, %v426
  %v428 = vrot.slane %v38, %v427
  %v430 = vsel %vm56, %v412, 0
  %v433 = vsel %vm56, %v413, 0
  %v436 = vsel %vm56, %v414, 0
  %v439 = vsel %vm56, %v415, 0
  %v442 = vsel %vm56, %v416, 0
  %v445 = vsel %vm56, %v417, 0
  %v448 = vsel %vm56, %v418, 0
  %v451 = vsel %vm56, %v419, 0
  %v454 = vsel %vm56, %v420, 0
  %v457 = vsel %vm56, %v421, 0
  %v460 = vsel %vm56, %v422, 0
  %v463 = vsel %vm56, %v423, 0
  %v466 = vsel %vm56, %v424, 0
  %468 = vmatprep.subr.mxu0 0.0
  %469 = vmatpush1.msra.mxu0 0.0
  %470 = vmatprep.subr.mxu0 0.0
  %471 = vmatpush1.msra.mxu0 0.0
  %472 = vmatprep.subr.mxu0 0.0
  %473 = vmatpush1.msra.mxu0 0.0
  %474 = vmatprep.subr.mxu0 0.0
  %475 = vmatpush1.msra.mxu0 0.0
  %476 = vmatprep.subr.mxu0 0.0
  %477 = vmatpush1.msra.mxu0 0.0
  %478 = vmatprep.subr.mxu0 0.0
  %479 = vmatpush1.msra.mxu0 0.0
  %480 = vmatprep.subr.mxu0 0.0
  %481 = vmatpush1.msra.mxu0 0.0
  %482 = vmatprep.subr.mxu0 0.0
  %483 = vmatpush1.msra.mxu0 0.0
  %484 = vmatprep.subr.mxu0 0.0
  %485 = vmatpush1.msra.mxu0 0.0
  %486 = vmatprep.subr.mxu0 0.0
  %487 = vmatpush1.msra.mxu0 0.0
  %488 = vmatprep.subr.mxu0 0.0
  %489 = vmatpush1.msra.mxu0 0.0
  %490 = vmatprep.subr.mxu0 0.0
  %491 = vmatpush1.msra.mxu0 0.0
  %492 = vmatprep.subr.mxu0 0.0
  %493 = vmatpush1.msra.mxu0 %v25
  %494 = vmatprep.subr.mxu0 0.0
  %495 = vmatpush1.msra.mxu0 %v24
  %496 = vmatprep.subr.mxu0 0.0
  %497 = vmatpush1.msra.mxu0 %v23
  %498 = vmatprep.subr.mxu0 0.0
  %499 = vmatpush1.msra.mxu0 %v22
  %500 = vmatprep.subr.mxu0 0.0
  %501 = vmatpush2.msra.mxu0 0.0
  %502 = vmatprep.subr.mxu0 0.0
  %503 = vmatpush2.msra.mxu0 0.0
  %504 = vmatprep.subr.mxu0 0.0
  %505 = vmatpush2.msra.mxu0 0.0
  %506 = vmatprep.subr.mxu0 0.0
  %507 = vmatpush2.msra.mxu0 0.0
  %508 = vmatprep.subr.mxu0 0.0
  %509 = vmatpush2.msra.mxu0 0.0
  %510 = vmatprep.subr.mxu0 0.0
  %511 = vmatpush2.msra.mxu0 0.0
  %512 = vmatprep.subr.mxu0 0.0
  %513 = vmatpush2.msra.mxu0 0.0
  %514 = vmatprep.subr.mxu0 0.0
  %515 = vmatpush2.msra.mxu0 0.0
  %516 = vmatprep.subr.mxu0 0.0
  %517 = vmatpush2.msra.mxu0 0.0
  %518 = vmatprep.subr.mxu0 0.0
  %519 = vmatpush2.msra.mxu0 0.0
  %520 = vmatprep.subr.mxu0 0.0
  %521 = vmatpush2.msra.mxu0 0.0
  %522 = vmatprep.subr.mxu0 0.0
  %523 = vmatpush2.msra.mxu0 0.0
  %524 = vmatprep.subr.mxu0 0.0
  %525 = vmatpush2.msra.mxu0 0.0
  %526 = vmatprep.subr.mxu0 0.0
  %527 = vmatpush2.msra.mxu0 0.0
  %528 = vmatprep.subr.mxu0 0.0
  %529 = vmatpush2.msra.mxu0 0.0
  %530 = vmatprep.subr.mxu0 0.0
  %531 = vmatpush2.msra.mxu0 0.0
  %532 = vmatprep.mubr.f32.mxu0 0.0
  %533 = vmatmul.mubr.f32.gmra.mxu0 %v430
  %v534 = vpop.f32.mrf.mxu0
  %v535 = vadd.f32 %v428, %v534
  %v536 = vpop.f32.mrf.mxu0
  %537 = vmatprep.mubr.f32.mxu0 0.0
  %538 = vmatmul.mubr.f32.gmra.mxu0 %v433
  %v539 = vpop.f32.mrf.mxu0
  %v540 = vadd.f32 %v428, %v539
  %v541 = vpop.f32.mrf.mxu0
  %542 = vmatprep.mubr.f32.mxu0 0.0
  %543 = vmatmul.mubr.f32.gmra.mxu0 %v436
  %v544 = vpop.f32.mrf.mxu0
  %v545 = vadd.f32 %v428, %v544
  %v546 = vpop.f32.mrf.mxu0
  %547 = vmatprep.mubr.f32.mxu0 0.0
  %548 = vmatmul.mubr.f32.gmra.mxu0 %v439
  %v549 = vpop.f32.mrf.mxu0
  %v550 = vadd.f32 %v428, %v549
  %v551 = vpop.f32.mrf.mxu0
  %552 = vmatprep.mubr.f32.mxu0 0.0
  %553 = vmatmul.mubr.f32.gmra.mxu0 %v442
  %v554 = vpop.f32.mrf.mxu0
  %v555 = vadd.f32 %v428, %v554
  %v556 = vpop.f32.mrf.mxu0
  %557 = vmatprep.mubr.f32.mxu0 0.0
  %558 = vmatmul.mubr.f32.gmra.mxu0 %v445
  %v559 = vpop.f32.mrf.mxu0
  %v560 = vadd.f32 %v428, %v559
  %v561 = vpop.f32.mrf.mxu0
  %562 = vmatprep.mubr.f32.mxu0 0.0
  %563 = vmatmul.mubr.f32.gmra.mxu0 %v448
  %v564 = vpop.f32.mrf.mxu0
  %v565 = vadd.f32 %v428, %v564
  %v566 = vpop.f32.mrf.mxu0
  %567 = vmatprep.mubr.f32.mxu0 0.0
  %568 = vmatmul.mubr.f32.gmra.mxu0 %v451
  %v569 = vpop.f32.mrf.mxu0
  %v570 = vadd.f32 %v428, %v569
  %v571 = vpop.f32.mrf.mxu0
  %572 = vmatprep.mubr.f32.mxu0 0.0
  %573 = vmatmul.mubr.f32.gmra.mxu0 %v454
  %v574 = vpop.f32.mrf.mxu0
  %v575 = vadd.f32 %v428, %v574
  %v576 = vpop.f32.mrf.mxu0
  %577 = vmatprep.mubr.f32.mxu0 0.0
  %578 = vmatmul.mubr.f32.gmra.mxu0 %v457
  %v579 = vpop.f32.mrf.mxu0
  %v580 = vadd.f32 %v428, %v579
  %v581 = vpop.f32.mrf.mxu0
  %582 = vmatprep.mubr.f32.mxu0 0.0
  %583 = vmatmul.mubr.f32.gmra.mxu0 %v460
  %v584 = vpop.f32.mrf.mxu0
  %v585 = vadd.f32 %v428, %v584
  %v586 = vpop.f32.mrf.mxu0
  %587 = vmatprep.mubr.f32.mxu0 0.0
  %588 = vmatmul.mubr.f32.gmra.mxu0 %v463
  %v589 = vpop.f32.mrf.mxu0
  %v590 = vadd.f32 %v428, %v589
  %v591 = vpop.f32.mrf.mxu0
  %592 = vmatprep.mubr.f32.mxu0 0.0
  %593 = vmatmul.mubr.f32.gmra.mxu0 %v466
  %v594 = vpop.f32.mrf.mxu0
  %v595 = vadd.f32 %v428, %v594
  %v596 = vpop.f32.mrf.mxu0
  %597 = vdwg.mxu0
  %v598 = vmax.f32 %v535, 0.0
  %v599 = vmax.f32 %v540, 0.0
  %v600 = vmax.f32 %v545, 0.0
  %v601 = vmax.f32 %v550, 0.0
  %v602 = vmax.f32 %v555, 0.0
  %v603 = vmax.f32 %v560, 0.0
  %v604 = vmax.f32 %v565, 0.0
  %v605 = vmax.f32 %v570, 0.0
  %v606 = vmax.f32 %v575, 0.0
  %v607 = vmax.f32 %v580, 0.0
  %v608 = vmax.f32 %v585, 0.0
  %v609 = vmax.f32 %v590, 0.0
  %v610 = vmax.f32 %v595, 0.0
  %v611 = vlaneseq
  %v612 = vshrl.u32 %v611, 7
  %v613 = vsub.s32 3, %v612
  %v614 = vrot.slane %v38, %v613
  %v616 = vsel %vm56, %v598, 0
  %v619 = vsel %vm56, %v599, 0
  %v622 = vsel %vm56, %v600, 0
  %v625 = vsel %vm56, %v601, 0
  %v628 = vsel %vm56, %v602, 0
  %v631 = vsel %vm56, %v603, 0
  %v634 = vsel %vm56, %v604, 0
  %v637 = vsel %vm56, %v605, 0
  %v640 = vsel %vm56, %v606, 0
  %v643 = vsel %vm56, %v607, 0
  %v646 = vsel %vm56, %v608, 0
  %v649 = vsel %vm56, %v609, 0
  %v652 = vsel %vm56, %v610, 0
  %654 = vmatprep.subr.mxu0 0.0
  %655 = vmatpush1.msra.mxu0 0.0
  %656 = vmatprep.subr.mxu0 0.0
  %657 = vmatpush1.msra.mxu0 0.0
  %658 = vmatprep.subr.mxu0 0.0
  %659 = vmatpush1.msra.mxu0 0.0
  %660 = vmatprep.subr.mxu0 0.0
  %661 = vmatpush1.msra.mxu0 0.0
  %662 = vmatprep.subr.mxu0 0.0
  %663 = vmatpush1.msra.mxu0 0.0
  %664 = vmatprep.subr.mxu0 0.0
  %665 = vmatpush1.msra.mxu0 0.0
  %666 = vmatprep.subr.mxu0 0.0
  %667 = vmatpush1.msra.mxu0 0.0
  %668 = vmatprep.subr.mxu0 0.0
  %669 = vmatpush1.msra.mxu0 0.0
  %670 = vmatprep.subr.mxu0 0.0
  %671 = vmatpush1.msra.mxu0 0.0
  %672 = vmatprep.subr.mxu0 0.0
  %673 = vmatpush1.msra.mxu0 0.0
  %674 = vmatprep.subr.mxu0 0.0
  %675 = vmatpush1.msra.mxu0 0.0
  %676 = vmatprep.subr.mxu0 0.0
  %677 = vmatpush1.msra.mxu0 0.0
  %678 = vmatprep.subr.mxu0 0.0
  %679 = vmatpush1.msra.mxu0 %v29
  %680 = vmatprep.subr.mxu0 0.0
  %681 = vmatpush1.msra.mxu0 %v28
  %682 = vmatprep.subr.mxu0 0.0
  %683 = vmatpush1.msra.mxu0 %v27
  %684 = vmatprep.subr.mxu0 0.0
  %685 = vmatpush1.msra.mxu0 %v26
  %686 = vmatprep.subr.mxu0 0.0
  %687 = vmatpush2.msra.mxu0 0.0
  %688 = vmatprep.subr.mxu0 0.0
  %689 = vmatpush2.msra.mxu0 0.0
  %690 = vmatprep.subr.mxu0 0.0
  %691 = vmatpush2.msra.mxu0 0.0
  %692 = vmatprep.subr.mxu0 0.0
  %693 = vmatpush2.msra.mxu0 0.0
  %694 = vmatprep.subr.mxu0 0.0
  %695 = vmatpush2.msra.mxu0 0.0
  %696 = vmatprep.subr.mxu0 0.0
  %697 = vmatpush2.msra.mxu0 0.0
  %698 = vmatprep.subr.mxu0 0.0
  %699 = vmatpush2.msra.mxu0 0.0
  %700 = vmatprep.subr.mxu0 0.0
  %701 = vmatpush2.msra.mxu0 0.0
  %702 = vmatprep.subr.mxu0 0.0
  %703 = vmatpush2.msra.mxu0 0.0
  %704 = vmatprep.subr.mxu0 0.0
  %705 = vmatpush2.msra.mxu0 0.0
  %706 = vmatprep.subr.mxu0 0.0
  %707 = vmatpush2.msra.mxu0 0.0
  %708 = vmatprep.subr.mxu0 0.0
  %709 = vmatpush2.msra.mxu0 0.0
  %710 = vmatprep.subr.mxu0 0.0
  %711 = vmatpush2.msra.mxu0 0.0
  %712 = vmatprep.subr.mxu0 0.0
  %713 = vmatpush2.msra.mxu0 0.0
  %714 = vmatprep.subr.mxu0 0.0
  %715 = vmatpush2.msra.mxu0 0.0
  %716 = vmatprep.subr.mxu0 0.0
  %717 = vmatpush2.msra.mxu0 0.0
  %718 = vmatprep.mubr.f32.mxu0 0.0
  %719 = vmatmul.mubr.f32.gmra.mxu0 %v616
  %v720 = vpop.f32.mrf.mxu0
  %v721 = vadd.f32 %v614, %v720
  %v722 = vpop.f32.mrf.mxu0
  %723 = vmatprep.mubr.f32.mxu0 0.0
  %724 = vmatmul.mubr.f32.gmra.mxu0 %v619
  %v725 = vpop.f32.mrf.mxu0
  %v726 = vadd.f32 %v614, %v725
  %v727 = vpop.f32.mrf.mxu0
  %728 = vmatprep.mubr.f32.mxu0 0.0
  %729 = vmatmul.mubr.f32.gmra.mxu0 %v622
  %v730 = vpop.f32.mrf.mxu0
  %v731 = vadd.f32 %v614, %v730
  %v732 = vpop.f32.mrf.mxu0
  %733 = vmatprep.mubr.f32.mxu0 0.0
  %734 = vmatmul.mubr.f32.gmra.mxu0 %v625
  %v735 = vpop.f32.mrf.mxu0
  %v736 = vadd.f32 %v614, %v735
  %v737 = vpop.f32.mrf.mxu0
  %738 = vmatprep.mubr.f32.mxu0 0.0
  %739 = vmatmul.mubr.f32.gmra.mxu0 %v628
  %v740 = vpop.f32.mrf.mxu0
  %v741 = vadd.f32 %v614, %v740
  %v742 = vpop.f32.mrf.mxu0
  %743 = vmatprep.mubr.f32.mxu0 0.0
  %744 = vmatmul.mubr.f32.gmra.mxu0 %v631
  %v745 = vpop.f32.mrf.mxu0
  %v746 = vadd.f32 %v614, %v745
  %v747 = vpop.f32.mrf.mxu0
  %748 = vmatprep.mubr.f32.mxu0 0.0
  %749 = vmatmul.mubr.f32.gmra.mxu0 %v634
  %v750 = vpop.f32.mrf.mxu0
  %v751 = vadd.f32 %v614, %v750
  %v752 = vpop.f32.mrf.mxu0
  %753 = vmatprep.mubr.f32.mxu0 0.0
  %754 = vmatmul.mubr.f32.gmra.mxu0 %v637
  %v755 = vpop.f32.mrf.mxu0
  %v756 = vadd.f32 %v614, %v755
  %v757 = vpop.f32.mrf.mxu0
  %758 = vmatprep.mubr.f32.mxu0 0.0
  %759 = vmatmul.mubr.f32.gmra.mxu0 %v640
  %v760 = vpop.f32.mrf.mxu0
  %v761 = vadd.f32 %v614, %v760
  %v762 = vpop.f32.mrf.mxu0
  %763 = vmatprep.mubr.f32.mxu0 0.0
  %764 = vmatmul.mubr.f32.gmra.mxu0 %v643
  %v765 = vpop.f32.mrf.mxu0
  %v766 = vadd.f32 %v614, %v765
  %v767 = vpop.f32.mrf.mxu0
  %768 = vmatprep.mubr.f32.mxu0 0.0
  %769 = vmatmul.mubr.f32.gmra.mxu0 %v646
  %v770 = vpop.f32.mrf.mxu0
  %v771 = vadd.f32 %v614, %v770
  %v772 = vpop.f32.mrf.mxu0
  %773 = vmatprep.mubr.f32.mxu0 0.0
  %774 = vmatmul.mubr.f32.gmra.mxu0 %v649
  %v775 = vpop.f32.mrf.mxu0
  %v776 = vadd.f32 %v614, %v775
  %v777 = vpop.f32.mrf.mxu0
  %778 = vmatprep.mubr.f32.mxu0 0.0
  %779 = vmatmul.mubr.f32.gmra.mxu0 %v652
  %v780 = vpop.f32.mrf.mxu0
  %v781 = vadd.f32 %v614, %v780
  %v782 = vpop.f32.mrf.mxu0
  %783 = vdwg.mxu0
  %v784 = vmax.f32 %v721, 0.0
  %v785 = vmax.f32 %v726, 0.0
  %v786 = vmax.f32 %v731, 0.0
  %v787 = vmax.f32 %v736, 0.0
  %v788 = vmax.f32 %v741, 0.0
  %v789 = vmax.f32 %v746, 0.0
  %v790 = vmax.f32 %v751, 0.0
  %v791 = vmax.f32 %v756, 0.0
  %v792 = vmax.f32 %v761, 0.0
  %v793 = vmax.f32 %v766, 0.0
  %v794 = vmax.f32 %v771, 0.0
  %v795 = vmax.f32 %v776, 0.0
  %v796 = vmax.f32 %v781, 0.0
  %797 = vmatprep.subr.mxu0 0.0
  %798 = vmatpush1.msra.mxu0 0.0
  %799 = vmatprep.subr.mxu0 0.0
  %800 = vmatpush1.msra.mxu0 0.0
  %801 = vmatprep.subr.mxu0 0.0
  %802 = vmatpush1.msra.mxu0 0.0
  %803 = vmatprep.subr.mxu0 0.0
  %804 = vmatpush1.msra.mxu0 0.0
  %805 = vmatprep.subr.mxu0 0.0
  %806 = vmatpush1.msra.mxu0 0.0
  %807 = vmatprep.subr.mxu0 0.0
  %808 = vmatpush1.msra.mxu0 0.0
  %809 = vmatprep.subr.mxu0 0.0
  %810 = vmatpush1.msra.mxu0 0.0
  %811 = vmatprep.subr.mxu0 0.0
  %812 = vmatpush1.msra.mxu0 0.0
  %813 = vmatprep.subr.mxu0 0.0
  %814 = vmatpush1.msra.mxu0 0.0
  %815 = vmatprep.subr.mxu0 0.0
  %816 = vmatpush1.msra.mxu0 0.0
  %817 = vmatprep.subr.mxu0 0.0
  %818 = vmatpush1.msra.mxu0 0.0
  %819 = vmatprep.subr.mxu0 0.0
  %820 = vmatpush1.msra.mxu0 0.0
  %821 = vmatprep.subr.mxu0 0.0
  %822 = vmatpush1.msra.mxu0 %v37
  %823 = vmatprep.subr.mxu0 0.0
  %824 = vmatpush1.msra.mxu0 %v36
  %825 = vmatprep.subr.mxu0 0.0
  %826 = vmatpush1.msra.mxu0 %v35
  %827 = vmatprep.subr.mxu0 0.0
  %828 = vmatpush1.msra.mxu0 %v34
  %829 = vmatprep.subr.mxu0 0.0
  %830 = vmatpush2.msra.mxu0 0.0
  %831 = vmatprep.subr.mxu0 0.0
  %832 = vmatpush2.msra.mxu0 0.0
  %833 = vmatprep.subr.mxu0 0.0
  %834 = vmatpush2.msra.mxu0 0.0
  %835 = vmatprep.subr.mxu0 0.0
  %836 = vmatpush2.msra.mxu0 0.0
  %837 = vmatprep.subr.mxu0 0.0
  %838 = vmatpush2.msra.mxu0 0.0
  %839 = vmatprep.subr.mxu0 0.0
  %840 = vmatpush2.msra.mxu0 0.0
  %841 = vmatprep.subr.mxu0 0.0
  %842 = vmatpush2.msra.mxu0 0.0
  %843 = vmatprep.subr.mxu0 0.0
  %844 = vmatpush2.msra.mxu0 0.0
  %845 = vmatprep.subr.mxu0 0.0
  %846 = vmatpush2.msra.mxu0 0.0
  %847 = vmatprep.subr.mxu0 0.0
  %848 = vmatpush2.msra.mxu0 0.0
  %849 = vmatprep.subr.mxu0 0.0
  %850 = vmatpush2.msra.mxu0 0.0
  %851 = vmatprep.subr.mxu0 0.0
  %852 = vmatpush2.msra.mxu0 0.0
  %853 = vmatprep.subr.mxu0 0.0
  %854 = vmatpush2.msra.mxu0 0.0
  %855 = vmatprep.subr.mxu0 0.0
  %856 = vmatpush2.msra.mxu0 0.0
  %857 = vmatprep.subr.mxu0 0.0
  %858 = vmatpush2.msra.mxu0 0.0
  %859 = vmatprep.subr.mxu0 0.0
  %860 = vmatpush2.msra.mxu0 0.0
  %861 = vmatprep.mubr.f32.mxu0 0.0
  %862 = vmatmul.mubr.f32.gmra.mxu0 %v616
  %v863 = vpop.f32.mrf.mxu0
  %v864 = vadd.f32 0.0, %v863
  %v865 = vpop.f32.mrf.mxu0
  %866 = vmatprep.mubr.f32.mxu0 0.0
  %867 = vmatmul.mubr.f32.gmra.mxu0 %v619
  %v868 = vpop.f32.mrf.mxu0
  %v869 = vadd.f32 0.0, %v868
  %v870 = vpop.f32.mrf.mxu0
  %871 = vmatprep.mubr.f32.mxu0 0.0
  %872 = vmatmul.mubr.f32.gmra.mxu0 %v622
  %v873 = vpop.f32.mrf.mxu0
  %v874 = vadd.f32 0.0, %v873
  %v875 = vpop.f32.mrf.mxu0
  %876 = vmatprep.mubr.f32.mxu0 0.0
  %877 = vmatmul.mubr.f32.gmra.mxu0 %v625
  %v878 = vpop.f32.mrf.mxu0
  %v879 = vadd.f32 0.0, %v878
  %v880 = vpop.f32.mrf.mxu0
  %881 = vmatprep.mubr.f32.mxu0 0.0
  %882 = vmatmul.mubr.f32.gmra.mxu0 %v628
  %v883 = vpop.f32.mrf.mxu0
  %v884 = vadd.f32 0.0, %v883
  %v885 = vpop.f32.mrf.mxu0
  %886 = vmatprep.mubr.f32.mxu0 0.0
  %887 = vmatmul.mubr.f32.gmra.mxu0 %v631
  %v888 = vpop.f32.mrf.mxu0
  %v889 = vadd.f32 0.0, %v888
  %v890 = vpop.f32.mrf.mxu0
  %891 = vmatprep.mubr.f32.mxu0 0.0
  %892 = vmatmul.mubr.f32.gmra.mxu0 %v634
  %v893 = vpop.f32.mrf.mxu0
  %v894 = vadd.f32 0.0, %v893
  %v895 = vpop.f32.mrf.mxu0
  %896 = vmatprep.mubr.f32.mxu0 0.0
  %897 = vmatmul.mubr.f32.gmra.mxu0 %v637
  %v898 = vpop.f32.mrf.mxu0
  %v899 = vadd.f32 0.0, %v898
  %v900 = vpop.f32.mrf.mxu0
  %901 = vmatprep.mubr.f32.mxu0 0.0
  %902 = vmatmul.mubr.f32.gmra.mxu0 %v640
  %v903 = vpop.f32.mrf.mxu0
  %v904 = vadd.f32 0.0, %v903
  %v905 = vpop.f32.mrf.mxu0
  %906 = vmatprep.mubr.f32.mxu0 0.0
  %907 = vmatmul.mubr.f32.gmra.mxu0 %v643
  %v908 = vpop.f32.mrf.mxu0
  %v909 = vadd.f32 0.0, %v908
  %v910 = vpop.f32.mrf.mxu0
  %911 = vmatprep.mubr.f32.mxu0 0.0
  %912 = vmatmul.mubr.f32.gmra.mxu0 %v646
  %v913 = vpop.f32.mrf.mxu0
  %v914 = vadd.f32 0.0, %v913
  %v915 = vpop.f32.mrf.mxu0
  %916 = vmatprep.mubr.f32.mxu0 0.0
  %917 = vmatmul.mubr.f32.gmra.mxu0 %v649
  %v918 = vpop.f32.mrf.mxu0
  %v919 = vadd.f32 0.0, %v918
  %v920 = vpop.f32.mrf.mxu0
  %921 = vmatprep.mubr.f32.mxu0 0.0
  %922 = vmatmul.mubr.f32.gmra.mxu0 %v652
  %v923 = vpop.f32.mrf.mxu0
  %v924 = vadd.f32 0.0, %v923
  %v925 = vpop.f32.mrf.mxu0
  %926 = vdwg.mxu0
  %v928 = vsel %vm56, %v784, 0
  %v931 = vsel %vm56, %v785, 0
  %v934 = vsel %vm56, %v786, 0
  %v937 = vsel %vm56, %v787, 0
  %v940 = vsel %vm56, %v788, 0
  %v943 = vsel %vm56, %v789, 0
  %v946 = vsel %vm56, %v790, 0
  %v949 = vsel %vm56, %v791, 0
  %v952 = vsel %vm56, %v792, 0
  %v955 = vsel %vm56, %v793, 0
  %v958 = vsel %vm56, %v794, 0
  %v961 = vsel %vm56, %v795, 0
  %v964 = vsel %vm56, %v796, 0
  %966 = vmatprep.subr.mxu0 0.0
  %967 = vmatpush1.msra.mxu0 0.0
  %968 = vmatprep.subr.mxu0 0.0
  %969 = vmatpush1.msra.mxu0 0.0
  %970 = vmatprep.subr.mxu0 0.0
  %971 = vmatpush1.msra.mxu0 0.0
  %972 = vmatprep.subr.mxu0 0.0
  %973 = vmatpush1.msra.mxu0 0.0
  %974 = vmatprep.subr.mxu0 0.0
  %975 = vmatpush1.msra.mxu0 0.0
  %976 = vmatprep.subr.mxu0 0.0
  %977 = vmatpush1.msra.mxu0 0.0
  %978 = vmatprep.subr.mxu0 0.0
  %979 = vmatpush1.msra.mxu0 0.0
  %980 = vmatprep.subr.mxu0 0.0
  %981 = vmatpush1.msra.mxu0 0.0
  %982 = vmatprep.subr.mxu0 0.0
  %983 = vmatpush1.msra.mxu0 0.0
  %984 = vmatprep.subr.mxu0 0.0
  %985 = vmatpush1.msra.mxu0 0.0
  %986 = vmatprep.subr.mxu0 0.0
  %987 = vmatpush1.msra.mxu0 0.0
  %988 = vmatprep.subr.mxu0 0.0
  %989 = vmatpush1.msra.mxu0 0.0
  %990 = vmatprep.subr.mxu0 0.0
  %991 = vmatpush1.msra.mxu0 %v33
  %992 = vmatprep.subr.mxu0 0.0
  %993 = vmatpush1.msra.mxu0 %v32
  %994 = vmatprep.subr.mxu0 0.0
  %995 = vmatpush1.msra.mxu0 %v31
  %996 = vmatprep.subr.mxu0 0.0
  %997 = vmatpush1.msra.mxu0 %v30
  %998 = vmatprep.subr.mxu0 0.0
  %999 = vmatpush2.msra.mxu0 0.0
  %1000 = vmatprep.subr.mxu0 0.0
  %1001 = vmatpush2.msra.mxu0 0.0
  %1002 = vmatprep.subr.mxu0 0.0
  %1003 = vmatpush2.msra.mxu0 0.0
  %1004 = vmatprep.subr.mxu0 0.0
  %1005 = vmatpush2.msra.mxu0 0.0
  %1006 = vmatprep.subr.mxu0 0.0
  %1007 = vmatpush2.msra.mxu0 0.0
  %1008 = vmatprep.subr.mxu0 0.0
  %1009 = vmatpush2.msra.mxu0 0.0
  %1010 = vmatprep.subr.mxu0 0.0
  %1011 = vmatpush2.msra.mxu0 0.0
  %1012 = vmatprep.subr.mxu0 0.0
  %1013 = vmatpush2.msra.mxu0 0.0
  %1014 = vmatprep.subr.mxu0 0.0
  %1015 = vmatpush2.msra.mxu0 0.0
  %1016 = vmatprep.subr.mxu0 0.0
  %1017 = vmatpush2.msra.mxu0 0.0
  %1018 = vmatprep.subr.mxu0 0.0
  %1019 = vmatpush2.msra.mxu0 0.0
  %1020 = vmatprep.subr.mxu0 0.0
  %1021 = vmatpush2.msra.mxu0 0.0
  %1022 = vmatprep.subr.mxu0 0.0
  %1023 = vmatpush2.msra.mxu0 0.0
  %1024 = vmatprep.subr.mxu0 0.0
  %1025 = vmatpush2.msra.mxu0 0.0
  %1026 = vmatprep.subr.mxu0 0.0
  %1027 = vmatpush2.msra.mxu0 0.0
  %1028 = vmatprep.subr.mxu0 0.0
  %1029 = vmatpush2.msra.mxu0 0.0
  %1030 = vmatprep.mubr.f32.mxu0 0.0
  %1031 = vmatmul.mubr.f32.gmra.mxu0 %v928
  %v1032 = vpop.f32.mrf.mxu0
  %v1033 = vadd.f32 %v864, %v1032
  %v1034 = vpop.f32.mrf.mxu0
  %1035 = vmatprep.mubr.f32.mxu0 0.0
  %1036 = vmatmul.mubr.f32.gmra.mxu0 %v931
  %v1037 = vpop.f32.mrf.mxu0
  %v1038 = vadd.f32 %v869, %v1037
  %v1039 = vpop.f32.mrf.mxu0
  %1040 = vmatprep.mubr.f32.mxu0 0.0
  %1041 = vmatmul.mubr.f32.gmra.mxu0 %v934
  %v1042 = vpop.f32.mrf.mxu0
  %v1043 = vadd.f32 %v874, %v1042
  %v1044 = vpop.f32.mrf.mxu0
  %1045 = vmatprep.mubr.f32.mxu0 0.0
  %1046 = vmatmul.mubr.f32.gmra.mxu0 %v937
  %v1047 = vpop.f32.mrf.mxu0
  %v1048 = vadd.f32 %v879, %v1047
  %v1049 = vpop.f32.mrf.mxu0
  %1050 = vmatprep.mubr.f32.mxu0 0.0
  %1051 = vmatmul.mubr.f32.gmra.mxu0 %v940
  %v1052 = vpop.f32.mrf.mxu0
  %v1053 = vadd.f32 %v884, %v1052
  %v1054 = vpop.f32.mrf.mxu0
  %1055 = vmatprep.mubr.f32.mxu0 0.0
  %1056 = vmatmul.mubr.f32.gmra.mxu0 %v943
  %v1057 = vpop.f32.mrf.mxu0
  %v1058 = vadd.f32 %v889, %v1057
  %v1059 = vpop.f32.mrf.mxu0
  %1060 = vmatprep.mubr.f32.mxu0 0.0
  %1061 = vmatmul.mubr.f32.gmra.mxu0 %v946
  %v1062 = vpop.f32.mrf.mxu0
  %v1063 = vadd.f32 %v894, %v1062
  %v1064 = vpop.f32.mrf.mxu0
  %1065 = vmatprep.mubr.f32.mxu0 0.0
  %1066 = vmatmul.mubr.f32.gmra.mxu0 %v949
  %v1067 = vpop.f32.mrf.mxu0
  %v1068 = vadd.f32 %v899, %v1067
  %v1069 = vpop.f32.mrf.mxu0
  %1070 = vmatprep.mubr.f32.mxu0 0.0
  %1071 = vmatmul.mubr.f32.gmra.mxu0 %v952
  %v1072 = vpop.f32.mrf.mxu0
  %v1073 = vadd.f32 %v904, %v1072
  %v1074 = vpop.f32.mrf.mxu0
  %1075 = vmatprep.mubr.f32.mxu0 0.0
  %1076 = vmatmul.mubr.f32.gmra.mxu0 %v955
  %v1077 = vpop.f32.mrf.mxu0
  %v1078 = vadd.f32 %v909, %v1077
  %v1079 = vpop.f32.mrf.mxu0
  %1080 = vmatprep.mubr.f32.mxu0 0.0
  %1081 = vmatmul.mubr.f32.gmra.mxu0 %v958
  %v1082 = vpop.f32.mrf.mxu0
  %v1083 = vadd.f32 %v914, %v1082
  %v1084 = vpop.f32.mrf.mxu0
  %1085 = vmatprep.mubr.f32.mxu0 0.0
  %1086 = vmatmul.mubr.f32.gmra.mxu0 %v961
  %v1087 = vpop.f32.mrf.mxu0
  %v1088 = vadd.f32 %v919, %v1087
  %v1089 = vpop.f32.mrf.mxu0
  %1090 = vmatprep.mubr.f32.mxu0 0.0
  %1091 = vmatmul.mubr.f32.gmra.mxu0 %v964
  %v1092 = vpop.f32.mrf.mxu0
  %v1093 = vadd.f32 %v924, %v1092
  %v1094 = vpop.f32.mrf.mxu0
  %1095 = vdwg.mxu0
  %v1096 = vlaneseq
  %v1097 = vshrl.u32 %v1096, 7
  %v1098 = vsub.s32 4, %v1097
  %v1099 = vrot.slane %v38, %v1098
  %v1100 = vadd.f32 %v1033, %v1099
  %v1101 = vadd.f32 %v1038, %v1099
  %v1102 = vadd.f32 %v1043, %v1099
  %v1103 = vadd.f32 %v1048, %v1099
  %v1104 = vadd.f32 %v1053, %v1099
  %v1105 = vadd.f32 %v1058, %v1099
  %v1106 = vadd.f32 %v1063, %v1099
  %v1107 = vadd.f32 %v1068, %v1099
  %v1108 = vadd.f32 %v1073, %v1099
  %v1109 = vadd.f32 %v1078, %v1099
  %v1110 = vadd.f32 %v1083, %v1099
  %v1111 = vadd.f32 %v1088, %v1099
  %v1112 = vadd.f32 %v1093, %v1099
  %v1113 = vmax.f32 %v1100, 0.0
  %v1114 = vmax.f32 %v1101, 0.0
  %v1115 = vmax.f32 %v1102, 0.0
  %v1116 = vmax.f32 %v1103, 0.0
  %v1117 = vmax.f32 %v1104, 0.0
  %v1118 = vmax.f32 %v1105, 0.0
  %v1119 = vmax.f32 %v1106, 0.0
  %v1120 = vmax.f32 %v1107, 0.0
  %v1121 = vmax.f32 %v1108, 0.0
  %v1122 = vmax.f32 %v1109, 0.0
  %v1123 = vmax.f32 %v1110, 0.0
  %v1124 = vmax.f32 %v1111, 0.0
  %v1125 = vmax.f32 %v1112, 0.0
  %vm1130 = vcmask 1046528
  %v1131 = vrot.slane %v1116, 1
  %v1132 = vrot.slane %v1117, 1
  %v1133 = vsel %vm1130, %v1131, %v1132
  %v1134 = vrot.slane %v1118, 1
  %v1135 = vsel %vm1130, %v1132, %v1134
  %v1136 = vrot.slane %v1119, 1
  %v1137 = vsel %vm1130, %v1134, %v1136
  %1138 = vrot.lane.b32.xlu0 %v1133, 32
  %v1139 = vpop.permute.xlu0 %1138
  %1140 = vrot.lane.b32.xlu0 %v1135, 32
  %v1141 = vpop.permute.xlu0 %1140
  %1142 = vrot.lane.b32.xlu0 %v1137, 32
  %v1143 = vpop.permute.xlu0 %1142
  %1144 = vrot.lane.b32.xlu0 %v1136, 32
  %v1145 = vpop.permute.xlu0 %1144
  %vm1153 = vcmask 1045504
  %v1154 = vrot.slane %v1119, 2
  %v1155 = vrot.slane %v1120, 2
  %v1156 = vsel %vm1153, %v1154, %v1155
  %v1157 = vrot.slane %v1121, 2
  %v1158 = vsel %vm1153, %v1155, %v1157
  %v1159 = vrot.slane %v1122, 2
  %v1160 = vsel %vm1153, %v1157, %v1159
  %1161 = vrot.lane.b32.xlu0 %v1156, 64
  %v1162 = vpop.permute.xlu0 %1161
  %1163 = vrot.lane.b32.xlu0 %v1158, 64
  %v1164 = vpop.permute.xlu0 %1163
  %1165 = vrot.lane.b32.xlu0 %v1160, 64
  %v1166 = vpop.permute.xlu0 %1165
  %1167 = vrot.lane.b32.xlu0 %v1159, 64
  %v1168 = vpop.permute.xlu0 %1167
  %vm1176 = vcmask 1044480
  %v1177 = vrot.slane %v1122, 3
  %v1178 = vrot.slane %v1123, 3
  %v1179 = vsel %vm1176, %v1177, %v1178
  %v1180 = vrot.slane %v1124, 3
  %v1181 = vsel %vm1176, %v1178, %v1180
  %v1182 = vrot.slane %v1125, 3
  %v1183 = vsel %vm1176, %v1180, %v1182
  %1184 = vrot.lane.b32.xlu0 %v1179, 96
  %v1185 = vpop.permute.xlu0 %1184
  %1186 = vrot.lane.b32.xlu0 %v1181, 96
  %v1187 = vpop.permute.xlu0 %1186
  %1188 = vrot.lane.b32.xlu0 %v1183, 96
  %v1189 = vpop.permute.xlu0 %1188
  %1190 = vrot.lane.b32.xlu0 %v1182, 96
  %v1191 = vpop.permute.xlu0 %1190
  %v1196 = vsel %vm56, %v1113, %v1139
  %v1197 = vsel %vm56, %v1114, %v1141
  %v1198 = vsel %vm56, %v1115, %v1143
  %v1199 = vsel %vm56, %v1116, %v1145
  %vm1200 = vcmask 523264
  %v1201 = vsel %vm1200, %v1196, %v1162
  %v1202 = vsel %vm1200, %v1197, %v1164
  %v1203 = vsel %vm1200, %v1198, %v1166
  %v1204 = vsel %vm1200, %v1199, %v1168
  %vm1205 = vcmask 785408
  %v1206 = vsel %vm1205, %v1201, %v1185
  %v1207 = vsel %vm1205, %v1202, %v1187
  %v1208 = vsel %vm1205, %v1203, %v1189
  %v1209 = vsel %vm1205, %v1204, %v1191
  %1210 = vst [vmem:[%s3] sm:$0xff] %v1206
  %1211 = vst [vmem:[%s3 + $0x8] sm:$0xff] %v1207
  %1212 = vst [vmem:[%s3 + $0x10] sm:$0xff] %v1208
  %1213 = vst [vmem:[%s3 + $0x18] sm:$0x1] %v1209
  // Predicated region
  $region14: #{_device_forward.2} parent=0 // pred_check
    _
  $region15: #{_device_forward.2} parent=0 // pred_check_branch
    %1215 = sbr.rel (0) target = $region17
  $region16: #{_device_forward.2} parent=0 // pred_region
    _
  $region17: #{_device_forward.2} parent=0 // pred_fallthru
    _
  // Predicated region
  $region18: #{_device_forward.2} parent=0 // pred_check
    _
  $region19: #{_device_forward.2} parent=0 // pred_check_branch
    %1217 = sbr.rel (0) target = $region21
  $region20: #{_device_forward.2} parent=0 // pred_region
    _
  $region21: #{_device_forward.2} parent=0 // pred_fallthru
    _

// kernel: _device_forward.3
$region0: #{_device_forward.3}
  #allocation0 [shape = 'u32[]', space=smem, size = 0x4, offset = 0x4, fixed_abs, tag = 'smem constant byte address 0x4 - core index']
  #allocation1 [shape = 'u32[144,128]{1,0:T(1,128)}', space=vmem, size = 0x12000, scoped, tag = 'internal scratch']
  %s0 = inlined_call_operand.vmem [shape: f32[2,25,35], index: 0, kind: input, shape index: {}]
  %s1 = inlined_call_operand.vmem [shape: s32[2,10], index: 1, kind: input, shape index: {}]
  %s2 = inlined_call_operand.vmem [shape: f32[2,10,1], index: 2, kind: input, shape index: {}]
  %s3 = inlined_call_operand.hbm [shape: f32[5,128], index: 3, kind: output, shape index: {}]
  %s4 = sld [smem:[#allocation0]]
  $region22: #{_device_forward.3} parent=0
    _
  %s6 = ssub.s32 1, %s4
  %s7 = scalar_select 0, %s6, %s4
  $region1: #{_device_forward.3} parent=0
    #allocation2 [shape = 'u8[4096]{0}', space=vmem, size = 0x1000, scoped, tag = 'output window, operand 0, single buffered']
    #allocation3 [shape = 's32[1]{0}', space=sflag, size = 0x4, scoped, tag = 'scoped memory for _device_forward.3']
    %8 = vsyncpa [#allocation3], 0
    // Predicated region
    $region2: #{_device_forward.3} parent=1 // pred_check
      _
    $region3: #{_device_forward.3} parent=1 // pred_check_branch
      %10 = sbr.rel (0) target = $region5
    $region4: #{_device_forward.3} parent=1 // pred_region
      _
    $region5: #{_device_forward.3} parent=1 // pred_fallthru
      _
    // Predicated region
    $region6: #{_device_forward.3} parent=1 // pred_check
      _
    $region7: #{_device_forward.3} parent=1 // pred_check_branch
      %12 = sbr.rel (0) target = $region9
    $region8: #{_device_forward.3} parent=1 // pred_region
      _
    $region9: #{_device_forward.3} parent=1 // pred_fallthru
      _
    // Predicated region
    $region10: #{_device_forward.3} parent=1 // pred_check
      _
    $region11: #{_device_forward.3} parent=1 // pred_check_branch
      %14 = sbr.rel (0) target = $region13
    $region12: #{_device_forward.3} parent=1 // pred_region
      _
    $region13: #{_device_forward.3} parent=1 // pred_fallthru
      _
    %v15 = vld [vmem:[%s0] sm:$0xff]
    %v16 = vld [vmem:[%s0 + $0x8] sm:$0xff]
    %v17 = vld [vmem:[%s0 + $0x10] sm:$0xff]
    %v18 = vld [vmem:[%s0 + $0x18] sm:$0x1]
    %v19 = vld [vmem:[%s0 + $0x20] sm:$0xff]
    %v20 = vld [vmem:[%s0 + $0x28] sm:$0xff]
    %v21 = vld [vmem:[%s0 + $0x30] sm:$0xff]
    %v22 = vld [vmem:[%s0 + $0x38] sm:$0x1]
    %24 = vset.pattern.permute.xlu0 34
    %25 = vperm.xlu0 %24, %v15
    %v26 = vpop.permute.xlu0 %25
    %29 = vset.pattern.permute.xlu0 34
    %30 = vperm.xlu0 %29, %v16
    %v31 = vpop.permute.xlu0 %30
    %34 = vset.pattern.permute.xlu0 34
    %35 = vperm.xlu0 %34, %v17
    %v36 = vpop.permute.xlu0 %35
    %39 = vset.pattern.permute.xlu0 34
    %40 = vperm.xlu0 %39, %v18
    %v41 = vpop.permute.xlu0 %40
    %44 = vset.pattern.permute.xlu0 34
    %45 = vperm.xlu0 %44, %v19
    %v46 = vpop.permute.xlu0 %45
    %49 = vset.pattern.permute.xlu0 34
    %50 = vperm.xlu0 %49, %v20
    %v51 = vpop.permute.xlu0 %50
    %54 = vset.pattern.permute.xlu0 34
    %55 = vperm.xlu0 %54, %v21
    %v56 = vpop.permute.xlu0 %55
    %59 = vset.pattern.permute.xlu0 34
    %60 = vperm.xlu0 %59, %v22
    %v61 = vpop.permute.xlu0 %60
    %v63 = vsub.f32 1.0, %v15
    %v64 = vsub.f32 1.0, %v16
    %v65 = vsub.f32 1.0, %v17
    %v66 = vsub.f32 1.0, %v18
    %v67 = vsub.f32 1.0, %v19
    %v68 = vsub.f32 1.0, %v20
    %v69 = vsub.f32 1.0, %v21
    %v70 = vsub.f32 1.0, %v22
    %72 = vset.pattern.permute.xlu0 34
    %73 = vperm.xlu0 %72, %v63
    %v74 = vpop.permute.xlu0 %73
    %77 = vset.pattern.permute.xlu0 34
    %78 = vperm.xlu0 %77, %v64
    %v79 = vpop.permute.xlu0 %78
    %82 = vset.pattern.permute.xlu0 34
    %83 = vperm.xlu0 %82, %v65
    %v84 = vpop.permute.xlu0 %83
    %87 = vset.pattern.permute.xlu0 34
    %88 = vperm.xlu0 %87, %v66
    %v89 = vpop.permute.xlu0 %88
    %92 = vset.pattern.permute.xlu0 34
    %93 = vperm.xlu0 %92, %v67
    %v94 = vpop.permute.xlu0 %93
    %97 = vset.pattern.permute.xlu0 34
    %98 = vperm.xlu0 %97, %v68
    %v99 = vpop.permute.xlu0 %98
    %102 = vset.pattern.permute.xlu0 34
    %103 = vperm.xlu0 %102, %v69
    %v104 = vpop.permute.xlu0 %103
    %107 = vset.pattern.permute.xlu0 34
    %108 = vperm.xlu0 %107, %v70
    %v109 = vpop.permute.xlu0 %108
    %vm111 = vcmask 39936
    %v112 = vsel %vm111, %v26, %v74
    %v113 = vsel %vm111, %v31, %v79
    %v114 = vsel %vm111, %v36, %v84
    %v115 = vsel %vm111, %v41, %v89
    %v116 = vsel %vm111, %v46, %v94
    %v117 = vsel %vm111, %v51, %v99
    %v118 = vsel %vm111, %v56, %v104
    %v119 = vsel %vm111, %v61, %v109
    %v120 = vsub.f32 1.0, %v112
    %v121 = vsub.f32 1.0, %v113
    %v122 = vsub.f32 1.0, %v114
    %v123 = vsub.f32 1.0, %v115
    %v124 = vsub.f32 1.0, %v116
    %v125 = vsub.f32 1.0, %v117
    %v126 = vsub.f32 1.0, %v118
    %v127 = vsub.f32 1.0, %v119
    %v128 = vmul.f32 %v120, 1e+30
    %v129 = vmul.f32 %v121, 1e+30
    %v130 = vmul.f32 %v122, 1e+30
    %v131 = vmul.f32 %v123, 1e+30
    %v132 = vmul.f32 %v124, 1e+30
    %v133 = vmul.f32 %v125, 1e+30
    %v134 = vmul.f32 %v126, 1e+30
    %v135 = vmul.f32 %v127, 1e+30
    %v136 = vmul.f32 %v15, %v15
    %v137 = vmul.f32 %v16, %v16
    %v138 = vmul.f32 %v17, %v17
    %v139 = vmul.f32 %v18, %v18
    %v140 = vmul.f32 %v19, %v19
    %v141 = vmul.f32 %v20, %v20
    %v142 = vmul.f32 %v21, %v21
    %v143 = vmul.f32 %v22, %v22
    %vm144 = vcmask 277504
    %v145 = vsel %vm144, %v136, 0.0
    %146 = vadd.xlane.f32.xlu0 %v145
    %v147 = vpop.xlane.xlu0 %146
    %v148 = vsel %vm144, %v137, 0.0
    %149 = vadd.xlane.f32.xlu0 %v148
    %v150 = vpop.xlane.xlu0 %149
    %v151 = vsel %vm144, %v138, 0.0
    %152 = vadd.xlane.f32.xlu0 %v151
    %v153 = vpop.xlane.xlu0 %152
    %vm154 = vcmask 270336
    %v155 = vsel %vm154, %v139, 0.0
    %156 = vadd.xlane.f32.xlu0 %v155
    %v157 = vpop.xlane.xlu0 %156
    %v158 = vsel %vm144, %v140, 0.0
    %159 = vadd.xlane.f32.xlu0 %v158
    %v160 = vpop.xlane.xlu0 %159
    %v161 = vsel %vm144, %v141, 0.0
    %162 = vadd.xlane.f32.xlu0 %v161
    %v163 = vpop.xlane.xlu0 %162
    %v164 = vsel %vm144, %v142, 0.0
    %165 = vadd.xlane.f32.xlu0 %v164
    %v166 = vpop.xlane.xlu0 %165
    %v167 = vsel %vm154, %v143, 0.0
    %168 = vadd.xlane.f32.xlu0 %v167
    %v169 = vpop.xlane.xlu0 %168
    %v170 = vlaneseq
    %v171 = vand.u32 %v170, 127
    %v172 = vld [vmem:[%s1] sm:$0x3]
    %v173 = vlaneseq
    %v174 = vshrl.u32 %v173, 7
    %v175 = vsub.s32 0, %v174
    %v176 = vrot.slane %v172, %v175
    %178 = vbcast.lane.b32.xlu0 %v176, 256
    %v179 = vpop.permute.xlu0 %178
    %s181 = sor.u32 256, 8
    %182 = vbcast.lane.b32.xlu0 %v176, %s181
    %v183 = vpop.permute.xlu0 %182
    %v184 = vlaneseq
    %v185 = vshrl.u32 %v184, 7
    %v186 = vsub.s32 1, %v185
    %v187 = vrot.slane %v172, %v186
    %189 = vbcast.lane.b32.xlu0 %v187, 256
    %v190 = vpop.permute.xlu0 %189
    %s192 = sor.u32 256, 8
    %193 = vbcast.lane.b32.xlu0 %v187, %s192
    %v194 = vpop.permute.xlu0 %193
    %vm195 = vcmp.eq.s32.totalorder %v179, %v171
    %vm196 = vcmp.eq.s32.totalorder %v183, %v171
    %vm197 = vcmp.eq.s32.totalorder %v190, %v171
    %vm198 = vcmp.eq.s32.totalorder %v194, %v171
    %v199 = vsel %vm195, 1, 0
    %v200 = vsel %vm196, 1, 0
    %v201 = vsel %vm197, 1, 0
    %v202 = vsel %vm198, 1, 0
    %v203 = vcvt.s32.f32 %v199
    %v204 = vcvt.s32.f32 %v200
    %v205 = vcvt.s32.f32 %v201
    %v206 = vcvt.s32.f32 %v202
    %vm207 = vcmask 203776
    %v209 = vsel %vm207, %v203, 0
    %v212 = vsel %vm207, %v204, 0
    %vm214 = vcmask 1040384
    %v215 = vsel %vm214, %v18, 0
    %217 = vmatprep.subr.mxu0 0.0
    %218 = vmatpush1.msra.mxu0 0.0
    %219 = vmatprep.subr.mxu0 0.0
    %220 = vmatpush1.msra.mxu0 0.0
    %221 = vmatprep.subr.mxu0 0.0
    %222 = vmatpush1.msra.mxu0 0.0
    %223 = vmatprep.subr.mxu0 0.0
    %224 = vmatpush1.msra.mxu0 0.0
    %225 = vmatprep.subr.mxu0 0.0
    %226 = vmatpush1.msra.mxu0 0.0
    %227 = vmatprep.subr.mxu0 0.0
    %228 = vmatpush1.msra.mxu0 0.0
    %229 = vmatprep.subr.mxu0 0.0
    %230 = vmatpush1.msra.mxu0 0.0
    %231 = vmatprep.subr.mxu0 0.0
    %232 = vmatpush1.msra.mxu0 0.0
    %233 = vmatprep.subr.mxu0 0.0
    %234 = vmatpush1.msra.mxu0 0.0
    %235 = vmatprep.subr.mxu0 0.0
    %236 = vmatpush1.msra.mxu0 0.0
    %237 = vmatprep.subr.mxu0 0.0
    %238 = vmatpush1.msra.mxu0 0.0
    %239 = vmatprep.subr.mxu0 0.0
    %240 = vmatpush1.msra.mxu0 0.0
    %241 = vmatprep.subr.mxu0 0.0
    %242 = vmatpush1.msra.mxu0 %v215
    %243 = vmatprep.subr.mxu0 0.0
    %244 = vmatpush1.msra.mxu0 %v17
    %245 = vmatprep.subr.mxu0 0.0
    %246 = vmatpush1.msra.mxu0 %v16
    %247 = vmatprep.subr.mxu0 0.0
    %248 = vmatpush1.msra.mxu0 %v15
    %249 = vmatprep.subr.mxu0 0.0
    %250 = vmatpush2.msra.mxu0 0.0
    %251 = vmatprep.subr.mxu0 0.0
    %252 = vmatpush2.msra.mxu0 0.0
    %253 = vmatprep.subr.mxu0 0.0
    %254 = vmatpush2.msra.mxu0 0.0
    %255 = vmatprep.subr.mxu0 0.0
    %256 = vmatpush2.msra.mxu0 0.0
    %257 = vmatprep.subr.mxu0 0.0
    %258 = vmatpush2.msra.mxu0 0.0
    %259 = vmatprep.subr.mxu0 0.0
    %260 = vmatpush2.msra.mxu0 0.0
    %261 = vmatprep.subr.mxu0 0.0
    %262 = vmatpush2.msra.mxu0 0.0
    %263 = vmatprep.subr.mxu0 0.0
    %264 = vmatpush2.msra.mxu0 0.0
    %265 = vmatprep.subr.mxu0 0.0
    %266 = vmatpush2.msra.mxu0 0.0
    %267 = vmatprep.subr.mxu0 0.0
    %268 = vmatpush2.msra.mxu0 0.0
    %269 = vmatprep.subr.mxu0 0.0
    %270 = vmatpush2.msra.mxu0 0.0
    %271 = vmatprep.subr.mxu0 0.0
    %272 = vmatpush2.msra.mxu0 0.0
    %273 = vmatprep.subr.mxu0 0.0
    %274 = vmatpush2.msra.mxu0 0.0
    %275 = vmatprep.subr.mxu0 0.0
    %276 = vmatpush2.msra.mxu0 0.0
    %277 = vmatprep.subr.mxu0 0.0
    %278 = vmatpush2.msra.mxu0 0.0
    %279 = vmatprep.subr.mxu0 0.0
    %280 = vmatpush2.msra.mxu0 0.0
    %281 = vmatprep.mubr.f32.mxu0 0.0
    %282 = vmatmul.mubr.f32.gmra.mxu0 %v209
    %v283 = vpop.f32.mrf.mxu0
    %v284 = vadd.f32 0.0, %v283
    %v285 = vpop.f32.mrf.mxu0
    %286 = vmatprep.mubr.f32.mxu0 0.0
    %287 = vmatmul.mubr.f32.gmra.mxu0 %v212
    %v288 = vpop.f32.mrf.mxu0
    %v289 = vadd.f32 0.0, %v288
    %v290 = vpop.f32.mrf.mxu0
    %291 = vdwg.mxu0
    %v293 = vsel %vm207, %v205, 0
    %v296 = vsel %vm207, %v206, 0
    %v298 = vsel %vm214, %v22, 0
    %300 = vmatprep.subr.mxu0 0.0
    %301 = vmatpush1.msra.mxu0 0.0
    %302 = vmatprep.subr.mxu0 0.0
    %303 = vmatpush1.msra.mxu0 0.0
    %304 = vmatprep.subr.mxu0 0.0
    %305 = vmatpush1.msra.mxu0 0.0
    %306 = vmatprep.subr.mxu0 0.0
    %307 = vmatpush1.msra.mxu0 0.0
    %308 = vmatprep.subr.mxu0 0.0
    %309 = vmatpush1.msra.mxu0 0.0
    %310 = vmatprep.subr.mxu0 0.0
    %311 = vmatpush1.msra.mxu0 0.0
    %312 = vmatprep.subr.mxu0 0.0
    %313 = vmatpush1.msra.mxu0 0.0
    %314 = vmatprep.subr.mxu0 0.0
    %315 = vmatpush1.msra.mxu0 0.0
    %316 = vmatprep.subr.mxu0 0.0
    %317 = vmatpush1.msra.mxu0 0.0
    %318 = vmatprep.subr.mxu0 0.0
    %319 = vmatpush1.msra.mxu0 0.0
    %320 = vmatprep.subr.mxu0 0.0
    %321 = vmatpush1.msra.mxu0 0.0
    %322 = vmatprep.subr.mxu0 0.0
    %323 = vmatpush1.msra.mxu0 0.0
    %324 = vmatprep.subr.mxu0 0.0
    %325 = vmatpush1.msra.mxu0 %v298
    %326 = vmatprep.subr.mxu0 0.0
    %327 = vmatpush1.msra.mxu0 %v21
    %328 = vmatprep.subr.mxu0 0.0
    %329 = vmatpush1.msra.mxu0 %v20
    %330 = vmatprep.subr.mxu0 0.0
    %331 = vmatpush1.msra.mxu0 %v19
    %332 = vmatprep.subr.mxu0 0.0
    %333 = vmatpush2.msra.mxu0 0.0
    %334 = vmatprep.subr.mxu0 0.0
    %335 = vmatpush2.msra.mxu0 0.0
    %336 = vmatprep.subr.mxu0 0.0
    %337 = vmatpush2.msra.mxu0 0.0
    %338 = vmatprep.subr.mxu0 0.0
    %339 = vmatpush2.msra.mxu0 0.0
    %340 = vmatprep.subr.mxu0 0.0
    %341 = vmatpush2.msra.mxu0 0.0
    %342 = vmatprep.subr.mxu0 0.0
    %343 = vmatpush2.msra.mxu0 0.0
    %344 = vmatprep.subr.mxu0 0.0
    %345 = vmatpush2.msra.mxu0 0.0
    %346 = vmatprep.subr.mxu0 0.0
    %347 = vmatpush2.msra.mxu0 0.0
    %348 = vmatprep.subr.mxu0 0.0
    %349 = vmatpush2.msra.mxu0 0.0
    %350 = vmatprep.subr.mxu0 0.0
    %351 = vmatpush2.msra.mxu0 0.0
    %352 = vmatprep.subr.mxu0 0.0
    %353 = vmatpush2.msra.mxu0 0.0
    %354 = vmatprep.subr.mxu0 0.0
    %355 = vmatpush2.msra.mxu0 0.0
    %356 = vmatprep.subr.mxu0 0.0
    %357 = vmatpush2.msra.mxu0 0.0
    %358 = vmatprep.subr.mxu0 0.0
    %359 = vmatpush2.msra.mxu0 0.0
    %360 = vmatprep.subr.mxu0 0.0
    %361 = vmatpush2.msra.mxu0 0.0
    %362 = vmatprep.subr.mxu0 0.0
    %363 = vmatpush2.msra.mxu0 0.0
    %364 = vmatprep.mubr.f32.mxu0 0.0
    %365 = vmatmul.mubr.f32.gmra.mxu0 %v293
    %v366 = vpop.f32.mrf.mxu0
    %v367 = vadd.f32 0.0, %v366
    %v368 = vpop.f32.mrf.mxu0
    %369 = vmatprep.mubr.f32.mxu0 0.0
    %370 = vmatmul.mubr.f32.gmra.mxu0 %v296
    %v371 = vpop.f32.mrf.mxu0
    %v372 = vadd.f32 0.0, %v371
    %v373 = vpop.f32.mrf.mxu0
    %374 = vdwg.mxu0
    %v375 = vsel %vm144, %v15, 0
    %v377 = vsel %vm144, %v16, 0
    %v379 = vsel %vm144, %v17, 0
    %v381 = vsel %vm144, %v18, 0
    %v384 = vsel %vm144, %v284, 0
    %v387 = vsel %vm144, %v289, 0
    %389 = vmatprep.subr.mxu0 0.0
    %390 = vmatpush1.xpose.msra.mxu0 0.0
    %391 = vmatprep.subr.mxu0 0.0
    %392 = vmatpush1.xpose.msra.mxu0 0.0
    %393 = vmatprep.subr.mxu0 0.0
    %394 = vmatpush1.xpose.msra.mxu0 0.0
    %395 = vmatprep.subr.mxu0 0.0
    %396 = vmatpush1.xpose.msra.mxu0 0.0
    %397 = vmatprep.subr.mxu0 0.0
    %398 = vmatpush1.xpose.msra.mxu0 0.0
    %399 = vmatprep.subr.mxu0 0.0
    %400 = vmatpush1.xpose.msra.mxu0 0.0
    %401 = vmatprep.subr.mxu0 0.0
    %402 = vmatpush1.xpose.msra.mxu0 0.0
    %403 = vmatprep.subr.mxu0 0.0
    %404 = vmatpush1.xpose.msra.mxu0 0.0
    %405 = vmatprep.subr.mxu0 0.0
    %406 = vmatpush1.xpose.msra.mxu0 0.0
    %407 = vmatprep.subr.mxu0 0.0
    %408 = vmatpush1.xpose.msra.mxu0 0.0
    %409 = vmatprep.subr.mxu0 0.0
    %410 = vmatpush1.xpose.msra.mxu0 0.0
    %411 = vmatprep.subr.mxu0 0.0
    %412 = vmatpush1.xpose.msra.mxu0 0.0
    %413 = vmatprep.subr.mxu0 0.0
    %414 = vmatpush1.xpose.msra.mxu0 0.0
    %415 = vmatprep.subr.mxu0 0.0
    %416 = vmatpush1.xpose.msra.mxu0 0.0
    %417 = vmatprep.subr.mxu0 0.0
    %418 = vmatpush1.xpose.msra.mxu0 %v387
    %419 = vmatprep.subr.mxu0 0.0
    %420 = vmatpush1.xpose.msra.mxu0 %v384
    %421 = vmatprep.subr.mxu0 0.0
    %422 = vmatpush2.xpose.msra.mxu0 0.0
    %423 = vmatprep.subr.mxu0 0.0
    %424 = vmatpush2.xpose.msra.mxu0 0.0
    %425 = vmatprep.subr.mxu0 0.0
    %426 = vmatpush2.xpose.msra.mxu0 0.0
    %427 = vmatprep.subr.mxu0 0.0
    %428 = vmatpush2.xpose.msra.mxu0 0.0
    %429 = vmatprep.subr.mxu0 0.0
    %430 = vmatpush2.xpose.msra.mxu0 0.0
    %431 = vmatprep.subr.mxu0 0.0
    %432 = vmatpush2.xpose.msra.mxu0 0.0
    %433 = vmatprep.subr.mxu0 0.0
    %434 = vmatpush2.xpose.msra.mxu0 0.0
    %435 = vmatprep.subr.mxu0 0.0
    %436 = vmatpush2.xpose.msra.mxu0 0.0
    %437 = vmatprep.subr.mxu0 0.0
    %438 = vmatpush2.xpose.msra.mxu0 0.0
    %439 = vmatprep.subr.mxu0 0.0
    %440 = vmatpush2.xpose.msra.mxu0 0.0
    %441 = vmatprep.subr.mxu0 0.0
    %442 = vmatpush2.xpose.msra.mxu0 0.0
    %443 = vmatprep.subr.mxu0 0.0
    %444 = vmatpush2.xpose.msra.mxu0 0.0
    %445 = vmatprep.subr.mxu0 0.0
    %446 = vmatpush2.xpose.msra.mxu0 0.0
    %447 = vmatprep.subr.mxu0 0.0
    %448 = vmatpush2.xpose.msra.mxu0 0.0
    %449 = vmatprep.subr.mxu0 0.0
    %450 = vmatpush2.xpose.msra.mxu0 0.0
    %451 = vmatprep.subr.mxu0 0.0
    %452 = vmatpush2.xpose.msra.mxu0 0.0
    %453 = vmatprep.mubr.f32.mxu0 0.0
    %454 = vmatmul.mubr.f32.gmra.mxu0 %v375
    %v455 = vpop.f32.mrf.mxu0
    %v456 = vadd.f32 0.0, %v455
    %v457 = vpop.f32.mrf.mxu0
    %458 = vmatprep.mubr.f32.mxu0 0.0
    %459 = vmatmul.mubr.f32.gmra.mxu0 %v377
    %v460 = vpop.f32.mrf.mxu0
    %v461 = vadd.f32 0.0, %v460
    %v462 = vpop.f32.mrf.mxu0
    %463 = vmatprep.mubr.f32.mxu0 0.0
    %464 = vmatmul.mubr.f32.gmra.mxu0 %v379
    %v465 = vpop.f32.mrf.mxu0
    %v466 = vadd.f32 0.0, %v465
    %v467 = vpop.f32.mrf.mxu0
    %468 = vmatprep.mubr.f32.mxu0 0.0
    %469 = vmatmul.mubr.f32.gmra.mxu0 %v381
    %v470 = vpop.f32.mrf.mxu0
    %v471 = vadd.f32 0.0, %v470
    %v472 = vpop.f32.mrf.mxu0
    %473 = vdwg.mxu0
    %v474 = vsel %vm144, %v19, 0
    %v476 = vsel %vm144, %v20, 0
    %v478 = vsel %vm144, %v21, 0
    %v480 = vsel %vm144, %v22, 0
    %v483 = vsel %vm144, %v367, 0
    %v486 = vsel %vm144, %v372, 0
    %488 = vmatprep.subr.mxu0 0.0
    %489 = vmatpush1.xpose.msra.mxu0 0.0
    %490 = vmatprep.subr.mxu0 0.0
    %491 = vmatpush1.xpose.msra.mxu0 0.0
    %492 = vmatprep.subr.mxu0 0.0
    %493 = vmatpush1.xpose.msra.mxu0 0.0
    %494 = vmatprep.subr.mxu0 0.0
    %495 = vmatpush1.xpose.msra.mxu0 0.0
    %496 = vmatprep.subr.mxu0 0.0
    %497 = vmatpush1.xpose.msra.mxu0 0.0
    %498 = vmatprep.subr.mxu0 0.0
    %499 = vmatpush1.xpose.msra.mxu0 0.0
    %500 = vmatprep.subr.mxu0 0.0
    %501 = vmatpush1.xpose.msra.mxu0 0.0
    %502 = vmatprep.subr.mxu0 0.0
    %503 = vmatpush1.xpose.msra.mxu0 0.0
    %504 = vmatprep.subr.mxu0 0.0
    %505 = vmatpush1.xpose.msra.mxu0 0.0
    %506 = vmatprep.subr.mxu0 0.0
    %507 = vmatpush1.xpose.msra.mxu0 0.0
    %508 = vmatprep.subr.mxu0 0.0
    %509 = vmatpush1.xpose.msra.mxu0 0.0
    %510 = vmatprep.subr.mxu0 0.0
    %511 = vmatpush1.xpose.msra.mxu0 0.0
    %512 = vmatprep.subr.mxu0 0.0
    %513 = vmatpush1.xpose.msra.mxu0 0.0
    %514 = vmatprep.subr.mxu0 0.0
    %515 = vmatpush1.xpose.msra.mxu0 0.0
    %516 = vmatprep.subr.mxu0 0.0
    %517 = vmatpush1.xpose.msra.mxu0 %v486
    %518 = vmatprep.subr.mxu0 0.0
    %519 = vmatpush1.xpose.msra.mxu0 %v483
    %520 = vmatprep.subr.mxu0 0.0
    %521 = vmatpush2.xpose.msra.mxu0 0.0
    %522 = vmatprep.subr.mxu0 0.0
    %523 = vmatpush2.xpose.msra.mxu0 0.0
    %524 = vmatprep.subr.mxu0 0.0
    %525 = vmatpush2.xpose.msra.mxu0 0.0
    %526 = vmatprep.subr.mxu0 0.0
    %527 = vmatpush2.xpose.msra.mxu0 0.0
    %528 = vmatprep.subr.mxu0 0.0
    %529 = vmatpush2.xpose.msra.mxu0 0.0
    %530 = vmatprep.subr.mxu0 0.0
    %531 = vmatpush2.xpose.msra.mxu0 0.0
    %532 = vmatprep.subr.mxu0 0.0
    %533 = vmatpush2.xpose.msra.mxu0 0.0
    %534 = vmatprep.subr.mxu0 0.0
    %535 = vmatpush2.xpose.msra.mxu0 0.0
    %536 = vmatprep.subr.mxu0 0.0
    %537 = vmatpush2.xpose.msra.mxu0 0.0
    %538 = vmatprep.subr.mxu0 0.0
    %539 = vmatpush2.xpose.msra.mxu0 0.0
    %540 = vmatprep.subr.mxu0 0.0
    %541 = vmatpush2.xpose.msra.mxu0 0.0
    %542 = vmatprep.subr.mxu0 0.0
    %543 = vmatpush2.xpose.msra.mxu0 0.0
    %544 = vmatprep.subr.mxu0 0.0
    %545 = vmatpush2.xpose.msra.mxu0 0.0
    %546 = vmatprep.subr.mxu0 0.0
    %547 = vmatpush2.xpose.msra.mxu0 0.0
    %548 = vmatprep.subr.mxu0 0.0
    %549 = vmatpush2.xpose.msra.mxu0 0.0
    %550 = vmatprep.subr.mxu0 0.0
    %551 = vmatpush2.xpose.msra.mxu0 0.0
    %552 = vmatprep.mubr.f32.mxu0 0.0
    %553 = vmatmul.mubr.f32.gmra.mxu0 %v474
    %v554 = vpop.f32.mrf.mxu0
    %v555 = vadd.f32 0.0, %v554
    %v556 = vpop.f32.mrf.mxu0
    %557 = vmatprep.mubr.f32.mxu0 0.0
    %558 = vmatmul.mubr.f32.gmra.mxu0 %v476
    %v559 = vpop.f32.mrf.mxu0
    %v560 = vadd.f32 0.0, %v559
    %v561 = vpop.f32.mrf.mxu0
    %562 = vmatprep.mubr.f32.mxu0 0.0
    %563 = vmatmul.mubr.f32.gmra.mxu0 %v478
    %v564 = vpop.f32.mrf.mxu0
    %v565 = vadd.f32 0.0, %v564
    %v566 = vpop.f32.mrf.mxu0
    %567 = vmatprep.mubr.f32.mxu0 0.0
    %568 = vmatmul.mubr.f32.gmra.mxu0 %v480
    %v569 = vpop.f32.mrf.mxu0
    %v570 = vadd.f32 0.0, %v569
    %v571 = vpop.f32.mrf.mxu0
    %572 = vdwg.mxu0
    %v573 = vmul.f32 %v284, %v284
    %v574 = vmul.f32 %v289, %v289
    %v575 = vmul.f32 %v367, %v367
    %v576 = vmul.f32 %v372, %v372
    %v577 = vsel %vm144, %v573, 0.0
    %578 = vadd.xlane.f32.xlu0 %v577
    %v579 = vpop.xlane.xlu0 %578
    %vm580 = vcmask 271360
    %v581 = vsel %vm580, %v574, 0.0
    %582 = vadd.xlane.f32.xlu0 %v581
    %v583 = vpop.xlane.xlu0 %582
    %v584 = vsel %vm144, %v575, 0.0
    %585 = vadd.xlane.f32.xlu0 %v584
    %v586 = vpop.xlane.xlu0 %585
    %v587 = vsel %vm580, %v576, 0.0
    %588 = vadd.xlane.f32.xlu0 %v587
    %v589 = vpop.xlane.xlu0 %588
    %v590 = vmul.f32 %v456, 2.0
    %v591 = vmul.f32 %v461, 2.0
    %v592 = vmul.f32 %v466, 2.0
    %v593 = vmul.f32 %v471, 2.0
    %v594 = vmul.f32 %v555, 2.0
    %v595 = vmul.f32 %v560, 2.0
    %v596 = vmul.f32 %v565, 2.0
    %v597 = vmul.f32 %v570, 2.0
    %v598 = vsub.f32 %v147, %v590
    %v599 = vsub.f32 %v150, %v591
    %v600 = vsub.f32 %v153, %v592
    %v601 = vsub.f32 %v157, %v593
    %v602 = vsub.f32 %v160, %v594
    %v603 = vsub.f32 %v163, %v595
    %v604 = vsub.f32 %v166, %v596
    %v605 = vsub.f32 %v169, %v597
    %v610 = vlaneseq
    %v611 = vshrl.u32 %v610, 7
    %v612 = vsub.s32 %v171, %v611
    %v613 = vrot.slane %v579, %v612
    %v614 = vadd.s32 %v171, 4294967288
    %v615 = vlaneseq
    %v616 = vshrl.u32 %v615, 7
    %v617 = vsub.s32 %v614, %v616
    %v618 = vrot.slane %v583, %v617
    %vm619 = vcmask 130112
    %v620 = vsel %vm619, %v618, %v613
    %v621 = vlaneseq
    %v622 = vshrl.u32 %v621, 7
    %v623 = vsub.s32 %v171, %v622
    %v624 = vrot.slane %v586, %v623
    %v625 = vlaneseq
    %v626 = vshrl.u32 %v625, 7
    %v627 = vsub.s32 %v614, %v626
    %v628 = vrot.slane %v589, %v627
    %v629 = vsel %vm619, %v628, %v624
    %vm630 = vcmask 1042434
    %v631 = vsel %vm630, %v620, %v620
    %vm632 = vcmask 1043459
    %v633 = vsel %vm632, %v620, %v631
    %vm634 = vcmask 1044484
    %v635 = vsel %vm634, %v620, %v633
    %vm636 = vcmask 1045509
    %v637 = vsel %vm636, %v620, %v635
    %vm638 = vcmask 1046534
    %v639 = vsel %vm638, %v620, %v637
    %vm640 = vcmask 1047559
    %v641 = vsel %vm640, %v620, %v639
    %v642 = vsel %vm630, %v629, %v629
    %v643 = vsel %vm632, %v629, %v642
    %v644 = vsel %vm634, %v629, %v643
    %v645 = vsel %vm636, %v629, %v644
    %v646 = vsel %vm638, %v629, %v645
    %v647 = vsel %vm640, %v629, %v646
    %v652 = vadd.f32 %v598, %v641
    %v653 = vadd.f32 %v599, %v641
    %v654 = vadd.f32 %v600, %v641
    %v655 = vadd.f32 %v601, %v620
    %v656 = vadd.f32 %v602, %v647
    %v657 = vadd.f32 %v603, %v647
    %v658 = vadd.f32 %v604, %v647
    %v659 = vadd.f32 %v605, %v629
    %v660 = vmax.f32 %v652, 0.0
    %v661 = vmax.f32 %v653, 0.0
    %v662 = vmax.f32 %v654, 0.0
    %v663 = vmax.f32 %v655, 0.0
    %v664 = vmax.f32 %v656, 0.0
    %v665 = vmax.f32 %v657, 0.0
    %v666 = vmax.f32 %v658, 0.0
    %v667 = vmax.f32 %v659, 0.0
    %v668 = vrsqrt.pop %v660
    %v669 = vmul.f32 %v660, %v668
    %vm670 = vcmp.eq.f32.partialorder %v660, inf
    %v671 = vsel %vm670, %v660, %v669
    %vm672 = vcmp.eq.f32.partialorder %v660, 0.0
    %v673 = vand.u32 %v660, 2147483648
    %v674 = vsel %vm672, %v673, %v671
    %v675 = vrsqrt.pop %v661
    %v676 = vmul.f32 %v661, %v675
    %vm677 = vcmp.eq.f32.partialorder %v661, inf
    %v678 = vsel %vm677, %v661, %v676
    %vm679 = vcmp.eq.f32.partialorder %v661, 0.0
    %v680 = vand.u32 %v661, 2147483648
    %v681 = vsel %vm679, %v680, %v678
    %v682 = vrsqrt.pop %v662
    %v683 = vmul.f32 %v662, %v682
    %vm684 = vcmp.eq.f32.partialorder %v662, inf
    %v685 = vsel %vm684, %v662, %v683
    %vm686 = vcmp.eq.f32.partialorder %v662, 0.0
    %v687 = vand.u32 %v662, 2147483648
    %v688 = vsel %vm686, %v687, %v685
    %v689 = vrsqrt.pop %v663
    %v690 = vmul.f32 %v663, %v689
    %vm691 = vcmp.eq.f32.partialorder %v663, inf
    %v692 = vsel %vm691, %v663, %v690
    %vm693 = vcmp.eq.f32.partialorder %v663, 0.0
    %v694 = vand.u32 %v663, 2147483648
    %v695 = vsel %vm693, %v694, %v692
    %v696 = vrsqrt.pop %v664
    %v697 = vmul.f32 %v664, %v696
    %vm698 = vcmp.eq.f32.partialorder %v664, inf
    %v699 = vsel %vm698, %v664, %v697
    %vm700 = vcmp.eq.f32.partialorder %v664, 0.0
    %v701 = vand.u32 %v664, 2147483648
    %v702 = vsel %vm700, %v701, %v699
    %v703 = vrsqrt.pop %v665
    %v704 = vmul.f32 %v665, %v703
    %vm705 = vcmp.eq.f32.partialorder %v665, inf
    %v706 = vsel %vm705, %v665, %v704
    %vm707 = vcmp.eq.f32.partialorder %v665, 0.0
    %v708 = vand.u32 %v665, 2147483648
    %v709 = vsel %vm707, %v708, %v706
    %v710 = vrsqrt.pop %v666
    %v711 = vmul.f32 %v666, %v710
    %vm712 = vcmp.eq.f32.partialorder %v666, inf
    %v713 = vsel %vm712, %v666, %v711
    %vm714 = vcmp.eq.f32.partialorder %v666, 0.0
    %v715 = vand.u32 %v666, 2147483648
    %v716 = vsel %vm714, %v715, %v713
    %v717 = vrsqrt.pop %v667
    %v718 = vmul.f32 %v667, %v717
    %vm719 = vcmp.eq.f32.partialorder %v667, inf
    %v720 = vsel %vm719, %v667, %v718
    %vm721 = vcmp.eq.f32.partialorder %v667, 0.0
    %v722 = vand.u32 %v667, 2147483648
    %v723 = vsel %vm721, %v722, %v720
    %v724 = vadd.f32 %v674, %v128
    %v725 = vadd.f32 %v681, %v129
    %v726 = vadd.f32 %v688, %v130
    %v727 = vadd.f32 %v695, %v131
    %v728 = vadd.f32 %v702, %v132
    %v729 = vadd.f32 %v709, %v133
    %v730 = vadd.f32 %v716, %v134
    %v731 = vadd.f32 %v723, %v135
    %vm732 = vcmask 80896
    %v733 = vsel %vm732, %v724, inf
    %v734 = vsel %vm732, %v725, inf
    %v735 = vsel %vm732, %v726, inf
    %v736 = vmin.f32 %v733, %v735
    %vm737 = vcmask 73728
    %v738 = vsel %vm737, %v727, inf
    %v739 = vmin.f32 %v734, %v738
    %v740 = vmin.f32 %v736, %v739
    %v741 = vrot.slane %v740, 4
    %v742 = vmin.f32 %v740, %v741
    %v743 = vrot.slane %v742, 2
    %v744 = vmin.f32 %v742, %v743
    %v745 = vrot.slane %v744, 1
    %v746 = vmin.f32 %v744, %v745
    %v747 = vsel %vm732, %v728, inf
    %v748 = vsel %vm732, %v729, inf
    %v749 = vsel %vm732, %v730, inf
    %v750 = vmin.f32 %v747, %v749
    %v751 = vsel %vm737, %v731, inf
    %v752 = vmin.f32 %v748, %v751
    %v753 = vmin.f32 %v750, %v752
    %v754 = vrot.slane %v753, 4
    %v755 = vmin.f32 %v753, %v754
    %v756 = vrot.slane %v755, 2
    %v757 = vmin.f32 %v755, %v756
    %v758 = vrot.slane %v757, 1
    %v759 = vmin.f32 %v757, %v758
    %v760 = vsub.f32 %v746, %v724
    %v761 = vsub.f32 %v746, %v725
    %v762 = vsub.f32 %v746, %v726
    %v763 = vsub.f32 %v746, %v727
    %v764 = vsub.f32 %v759, %v728
    %v765 = vsub.f32 %v759, %v729
    %v766 = vsub.f32 %v759, %v730
    %v767 = vsub.f32 %v759, %v731
    %v768 = vmul.f32 %v760, 1.442695
    %v769 = vpow.pop %v768
    %v770 = vmul.f32 %v761, 1.442695
    %v771 = vpow.pop %v770
    %v772 = vmul.f32 %v762, 1.442695
    %v773 = vpow.pop %v772
    %v774 = vmul.f32 %v763, 1.442695
    %v775 = vpow.pop %v774
    %v776 = vmul.f32 %v764, 1.442695
    %v777 = vpow.pop %v776
    %v778 = vmul.f32 %v765, 1.442695
    %v779 = vpow.pop %v778
    %v780 = vmul.f32 %v766, 1.442695
    %v781 = vpow.pop %v780
    %v782 = vmul.f32 %v767, 1.442695
    %v783 = vpow.pop %v782
    %v784 = vsel %vm732, %v769, 0.0
    %v785 = vsel %vm732, %v771, 0.0
    %v786 = vadd.f32 %v784, %v785
    %v787 = vsel %vm732, %v773, 0.0
    %v788 = vadd.f32 %v786, %v787
    %v789 = vsel %vm737, %v775, 0.0
    %v790 = vadd.f32 %v788, %v789
    %v791 = vrot.slane %v790, 4
    %v792 = vadd.f32 %v790, %v791
    %v793 = vrot.slane %v792, 2
    %v794 = vadd.f32 %v792, %v793
    %v795 = vrot.slane %v794, 1
    %v796 = vadd.f32 %v794, %v795
    %v797 = vsel %vm732, %v777, 0.0
    %v798 = vsel %vm732, %v779, 0.0
    %v799 = vadd.f32 %v797, %v798
    %v800 = vsel %vm732, %v781, 0.0
    %v801 = vadd.f32 %v799, %v800
    %v802 = vsel %vm737, %v783, 0.0
    %v803 = vadd.f32 %v801, %v802
    %v804 = vrot.slane %v803, 4
    %v805 = vadd.f32 %v803, %v804
    %v806 = vrot.slane %v805, 2
    %v807 = vadd.f32 %v805, %v806
    %v808 = vrot.slane %v807, 1
    %v809 = vadd.f32 %v807, %v808
    %v810 = vrcp.pop %v796
    %v811 = vmul.f32 %v769, %v810
    %v812 = vmul.f32 %v771, %v810
    %v813 = vmul.f32 %v773, %v810
    %v814 = vmul.f32 %v775, %v810
    %v815 = vrcp.pop %v809
    %v816 = vmul.f32 %v777, %v815
    %v817 = vmul.f32 %v779, %v815
    %v818 = vmul.f32 %v781, %v815
    %v819 = vmul.f32 %v783, %v815
    %820 = vxpose.xlu0.b32.start [1/16] %v811, 128
    %821 = vxpose.xlu0.b32.cont [2/16] %v812, 128
    %822 = vxpose.xlu0.b32.cont [3/16] %v813, 128
    %823 = vxpose.xlu0.b32.cont [4/16] %v814, 128
    %824 = vxpose.xlu0.b32.cont [5/16] 0.0, 128
    %825 = vxpose.xlu0.b32.cont [6/16] 0.0, 128
    %826 = vxpose.xlu0.b32.cont [7/16] 0.0, 128
    %827 = vxpose.xlu0.b32.cont [8/16] 0.0, 128
    %828 = vxpose.xlu0.b32.cont [9/16] 0.0, 128
    %829 = vxpose.xlu0.b32.cont [10/16] 0.0, 128
    %830 = vxpose.xlu0.b32.cont [11/16] 0.0, 128
    %831 = vxpose.xlu0.b32.cont [12/16] 0.0, 128
    %832 = vxpose.xlu0.b32.cont [13/16] 0.0, 128
    %833 = vxpose.xlu0.b32.cont [14/16] 0.0, 128
    %834 = vxpose.xlu0.b32.cont [15/16] 0.0, 128
    %835 = vxpose.xlu0.b32.end [16/16] 0.0, 128
    %v836 = vpop.trf.xlu0
    %v837 = vpop.trf.xlu0
    %v838 = vpop.trf.xlu0
    %v839 = vpop.trf.xlu0
    %v840 = vpop.trf.xlu0
    %v841 = vpop.trf.xlu0
    %v842 = vpop.trf.xlu0
    %v843 = vpop.trf.xlu0
    %v844 = vpop.trf.xlu0
    %v845 = vpop.trf.xlu0
    %v846 = vpop.trf.xlu0
    %v847 = vpop.trf.xlu0
    %v848 = vpop.trf.xlu0
    %v849 = vpop.trf.xlu0
    %v850 = vpop.trf.xlu0
    %v851 = vpop.trf.xlu0
    %v853 = vsel %vm207, %v836, 0
    %v856 = vsel %vm207, %v837, 0
    %858 = vmatprep.subr.mxu0 0.0
    %859 = vmatpush1.msra.mxu0 0.0
    %860 = vmatprep.subr.mxu0 0.0
    %861 = vmatpush1.msra.mxu0 0.0
    %862 = vmatprep.subr.mxu0 0.0
    %863 = vmatpush1.msra.mxu0 0.0
    %864 = vmatprep.subr.mxu0 0.0
    %865 = vmatpush1.msra.mxu0 0.0
    %866 = vmatprep.subr.mxu0 0.0
    %867 = vmatpush1.msra.mxu0 0.0
    %868 = vmatprep.subr.mxu0 0.0
    %869 = vmatpush1.msra.mxu0 0.0
    %870 = vmatprep.subr.mxu0 0.0
    %871 = vmatpush1.msra.mxu0 0.0
    %872 = vmatprep.subr.mxu0 0.0
    %873 = vmatpush1.msra.mxu0 0.0
    %874 = vmatprep.subr.mxu0 0.0
    %875 = vmatpush1.msra.mxu0 0.0
    %876 = vmatprep.subr.mxu0 0.0
    %877 = vmatpush1.msra.mxu0 0.0
    %878 = vmatprep.subr.mxu0 0.0
    %879 = vmatpush1.msra.mxu0 0.0
    %880 = vmatprep.subr.mxu0 0.0
    %881 = vmatpush1.msra.mxu0 0.0
    %882 = vmatprep.subr.mxu0 0.0
    %883 = vmatpush1.msra.mxu0 %v215
    %884 = vmatprep.subr.mxu0 0.0
    %885 = vmatpush1.msra.mxu0 %v17
    %886 = vmatprep.subr.mxu0 0.0
    %887 = vmatpush1.msra.mxu0 %v16
    %888 = vmatprep.subr.mxu0 0.0
    %889 = vmatpush1.msra.mxu0 %v15
    %890 = vmatprep.subr.mxu0 0.0
    %891 = vmatpush2.msra.mxu0 0.0
    %892 = vmatprep.subr.mxu0 0.0
    %893 = vmatpush2.msra.mxu0 0.0
    %894 = vmatprep.subr.mxu0 0.0
    %895 = vmatpush2.msra.mxu0 0.0
    %896 = vmatprep.subr.mxu0 0.0
    %897 = vmatpush2.msra.mxu0 0.0
    %898 = vmatprep.subr.mxu0 0.0
    %899 = vmatpush2.msra.mxu0 0.0
    %900 = vmatprep.subr.mxu0 0.0
    %901 = vmatpush2.msra.mxu0 0.0
    %902 = vmatprep.subr.mxu0 0.0
    %903 = vmatpush2.msra.mxu0 0.0
    %904 = vmatprep.subr.mxu0 0.0
    %905 = vmatpush2.msra.mxu0 0.0
    %906 = vmatprep.subr.mxu0 0.0
    %907 = vmatpush2.msra.mxu0 0.0
    %908 = vmatprep.subr.mxu0 0.0
    %909 = vmatpush2.msra.mxu0 0.0
    %910 = vmatprep.subr.mxu0 0.0
    %911 = vmatpush2.msra.mxu0 0.0
    %912 = vmatprep.subr.mxu0 0.0
    %913 = vmatpush2.msra.mxu0 0.0
    %914 = vmatprep.subr.mxu0 0.0
    %915 = vmatpush2.msra.mxu0 0.0
    %916 = vmatprep.subr.mxu0 0.0
    %917 = vmatpush2.msra.mxu0 0.0
    %918 = vmatprep.subr.mxu0 0.0
    %919 = vmatpush2.msra.mxu0 0.0
    %920 = vmatprep.subr.mxu0 0.0
    %921 = vmatpush2.msra.mxu0 0.0
    %922 = vmatprep.mubr.f32.mxu0 0.0
    %923 = vmatmul.mubr.f32.gmra.mxu0 %v853
    %v924 = vpop.f32.mrf.mxu0
    %v925 = vadd.f32 0.0, %v924
    %v926 = vpop.f32.mrf.mxu0
    %927 = vmatprep.mubr.f32.mxu0 0.0
    %928 = vmatmul.mubr.f32.gmra.mxu0 %v856
    %v929 = vpop.f32.mrf.mxu0
    %v930 = vadd.f32 0.0, %v929
    %v931 = vpop.f32.mrf.mxu0
    %932 = vdwg.mxu0
    %933 = vxpose.xlu0.b32.start [1/16] %v816, 128
    %934 = vxpose.xlu0.b32.cont [2/16] %v817, 128
    %935 = vxpose.xlu0.b32.cont [3/16] %v818, 128
    %936 = vxpose.xlu0.b32.cont [4/16] %v819, 128
    %937 = vxpose.xlu0.b32.cont [5/16] 0.0, 128
    %938 = vxpose.xlu0.b32.cont [6/16] 0.0, 128
    %939 = vxpose.xlu0.b32.cont [7/16] 0.0, 128
    %940 = vxpose.xlu0.b32.cont [8/16] 0.0, 128
    %941 = vxpose.xlu0.b32.cont [9/16] 0.0, 128
    %942 = vxpose.xlu0.b32.cont [10/16] 0.0, 128
    %943 = vxpose.xlu0.b32.cont [11/16] 0.0, 128
    %944 = vxpose.xlu0.b32.cont [12/16] 0.0, 128
    %945 = vxpose.xlu0.b32.cont [13/16] 0.0, 128
    %946 = vxpose.xlu0.b32.cont [14/16] 0.0, 128
    %947 = vxpose.xlu0.b32.cont [15/16] 0.0, 128
    %948 = vxpose.xlu0.b32.end [16/16] 0.0, 128
    %v949 = vpop.trf.xlu0
    %v950 = vpop.trf.xlu0
    %v951 = vpop.trf.xlu0
    %v952 = vpop.trf.xlu0
    %v953 = vpop.trf.xlu0
    %v954 = vpop.trf.xlu0
    %v955 = vpop.trf.xlu0
    %v956 = vpop.trf.xlu0
    %v957 = vpop.trf.xlu0
    %v958 = vpop.trf.xlu0
    %v959 = vpop.trf.xlu0
    %v960 = vpop.trf.xlu0
    %v961 = vpop.trf.xlu0
    %v962 = vpop.trf.xlu0
    %v963 = vpop.trf.xlu0
    %v964 = vpop.trf.xlu0
    %v966 = vsel %vm207, %v949, 0
    %v969 = vsel %vm207, %v950, 0
    %971 = vmatprep.subr.mxu0 0.0
    %972 = vmatpush1.msra.mxu0 0.0
    %973 = vmatprep.subr.mxu0 0.0
    %974 = vmatpush1.msra.mxu0 0.0
    %975 = vmatprep.subr.mxu0 0.0
    %976 = vmatpush1.msra.mxu0 0.0
    %977 = vmatprep.subr.mxu0 0.0
    %978 = vmatpush1.msra.mxu0 0.0
    %979 = vmatprep.subr.mxu0 0.0
    %980 = vmatpush1.msra.mxu0 0.0
    %981 = vmatprep.subr.mxu0 0.0
    %982 = vmatpush1.msra.mxu0 0.0
    %983 = vmatprep.subr.mxu0 0.0
    %984 = vmatpush1.msra.mxu0 0.0
    %985 = vmatprep.subr.mxu0 0.0
    %986 = vmatpush1.msra.mxu0 0.0
    %987 = vmatprep.subr.mxu0 0.0
    %988 = vmatpush1.msra.mxu0 0.0
    %989 = vmatprep.subr.mxu0 0.0
    %990 = vmatpush1.msra.mxu0 0.0
    %991 = vmatprep.subr.mxu0 0.0
    %992 = vmatpush1.msra.mxu0 0.0
    %993 = vmatprep.subr.mxu0 0.0
    %994 = vmatpush1.msra.mxu0 0.0
    %995 = vmatprep.subr.mxu0 0.0
    %996 = vmatpush1.msra.mxu0 %v298
    %997 = vmatprep.subr.mxu0 0.0
    %998 = vmatpush1.msra.mxu0 %v21
    %999 = vmatprep.subr.mxu0 0.0
    %1000 = vmatpush1.msra.mxu0 %v20
    %1001 = vmatprep.subr.mxu0 0.0
    %1002 = vmatpush1.msra.mxu0 %v19
    %1003 = vmatprep.subr.mxu0 0.0
    %1004 = vmatpush2.msra.mxu0 0.0
    %1005 = vmatprep.subr.mxu0 0.0
    %1006 = vmatpush2.msra.mxu0 0.0
    %1007 = vmatprep.subr.mxu0 0.0
    %1008 = vmatpush2.msra.mxu0 0.0
    %1009 = vmatprep.subr.mxu0 0.0
    %1010 = vmatpush2.msra.mxu0 0.0
    %1011 = vmatprep.subr.mxu0 0.0
    %1012 = vmatpush2.msra.mxu0 0.0
    %1013 = vmatprep.subr.mxu0 0.0
    %1014 = vmatpush2.msra.mxu0 0.0
    %1015 = vmatprep.subr.mxu0 0.0
    %1016 = vmatpush2.msra.mxu0 0.0
    %1017 = vmatprep.subr.mxu0 0.0
    %1018 = vmatpush2.msra.mxu0 0.0
    %1019 = vmatprep.subr.mxu0 0.0
    %1020 = vmatpush2.msra.mxu0 0.0
    %1021 = vmatprep.subr.mxu0 0.0
    %1022 = vmatpush2.msra.mxu0 0.0
    %1023 = vmatprep.subr.mxu0 0.0
    %1024 = vmatpush2.msra.mxu0 0.0
    %1025 = vmatprep.subr.mxu0 0.0
    %1026 = vmatpush2.msra.mxu0 0.0
    %1027 = vmatprep.subr.mxu0 0.0
    %1028 = vmatpush2.msra.mxu0 0.0
    %1029 = vmatprep.subr.mxu0 0.0
    %1030 = vmatpush2.msra.mxu0 0.0
    %1031 = vmatprep.subr.mxu0 0.0
    %1032 = vmatpush2.msra.mxu0 0.0
    %1033 = vmatprep.subr.mxu0 0.0
    %1034 = vmatpush2.msra.mxu0 0.0
    %1035 = vmatprep.mubr.f32.mxu0 0.0
    %1036 = vmatmul.mubr.f32.gmra.mxu0 %v966
    %v1037 = vpop.f32.mrf.mxu0
    %v1038 = vadd.f32 0.0, %v1037
    %v1039 = vpop.f32.mrf.mxu0
    %1040 = vmatprep.mubr.f32.mxu0 0.0
    %1041 = vmatmul.mubr.f32.gmra.mxu0 %v969
    %v1042 = vpop.f32.mrf.mxu0
    %v1043 = vadd.f32 0.0, %v1042
    %v1044 = vpop.f32.mrf.mxu0
    %1045 = vdwg.mxu0
    %v1047 = vsel %vm144, %v925, 0
    %v1050 = vsel %vm144, %v930, 0
    %1052 = vmatprep.subr.mxu0 0.0
    %1053 = vmatpush1.xpose.msra.mxu0 0.0
    %1054 = vmatprep.subr.mxu0 0.0
    %1055 = vmatpush1.xpose.msra.mxu0 0.0
    %1056 = vmatprep.subr.mxu0 0.0
    %1057 = vmatpush1.xpose.msra.mxu0 0.0
    %1058 = vmatprep.subr.mxu0 0.0
    %1059 = vmatpush1.xpose.msra.mxu0 0.0
    %1060 = vmatprep.subr.mxu0 0.0
    %1061 = vmatpush1.xpose.msra.mxu0 0.0
    %1062 = vmatprep.subr.mxu0 0.0
    %1063 = vmatpush1.xpose.msra.mxu0 0.0
    %1064 = vmatprep.subr.mxu0 0.0
    %1065 = vmatpush1.xpose.msra.mxu0 0.0
    %1066 = vmatprep.subr.mxu0 0.0
    %1067 = vmatpush1.xpose.msra.mxu0 0.0
    %1068 = vmatprep.subr.mxu0 0.0
    %1069 = vmatpush1.xpose.msra.mxu0 0.0
    %1070 = vmatprep.subr.mxu0 0.0
    %1071 = vmatpush1.xpose.msra.mxu0 0.0
    %1072 = vmatprep.subr.mxu0 0.0
    %1073 = vmatpush1.xpose.msra.mxu0 0.0
    %1074 = vmatprep.subr.mxu0 0.0
    %1075 = vmatpush1.xpose.msra.mxu0 0.0
    %1076 = vmatprep.subr.mxu0 0.0
    %1077 = vmatpush1.xpose.msra.mxu0 0.0
    %1078 = vmatprep.subr.mxu0 0.0
    %1079 = vmatpush1.xpose.msra.mxu0 0.0
    %1080 = vmatprep.subr.mxu0 0.0
    %1081 = vmatpush1.xpose.msra.mxu0 %v1050
    %1082 = vmatprep.subr.mxu0 0.0
    %1083 = vmatpush1.xpose.msra.mxu0 %v1047
    %1084 = vmatprep.subr.mxu0 0.0
    %1085 = vmatpush2.xpose.msra.mxu0 0.0
    %1086 = vmatprep.subr.mxu0 0.0
    %1087 = vmatpush2.xpose.msra.mxu0 0.0
    %1088 = vmatprep.subr.mxu0 0.0
    %1089 = vmatpush2.xpose.msra.mxu0 0.0
    %1090 = vmatprep.subr.mxu0 0.0
    %1091 = vmatpush2.xpose.msra.mxu0 0.0
    %1092 = vmatprep.subr.mxu0 0.0
    %1093 = vmatpush2.xpose.msra.mxu0 0.0
    %1094 = vmatprep.subr.mxu0 0.0
    %1095 = vmatpush2.xpose.msra.mxu0 0.0
    %1096 = vmatprep.subr.mxu0 0.0
    %1097 = vmatpush2.xpose.msra.mxu0 0.0
    %1098 = vmatprep.subr.mxu0 0.0
    %1099 = vmatpush2.xpose.msra.mxu0 0.0
    %1100 = vmatprep.subr.mxu0 0.0
    %1101 = vmatpush2.xpose.msra.mxu0 0.0
    %1102 = vmatprep.subr.mxu0 0.0
    %1103 = vmatpush2.xpose.msra.mxu0 0.0
    %1104 = vmatprep.subr.mxu0 0.0
    %1105 = vmatpush2.xpose.msra.mxu0 0.0
    %1106 = vmatprep.subr.mxu0 0.0
    %1107 = vmatpush2.xpose.msra.mxu0 0.0
    %1108 = vmatprep.subr.mxu0 0.0
    %1109 = vmatpush2.xpose.msra.mxu0 0.0
    %1110 = vmatprep.subr.mxu0 0.0
    %1111 = vmatpush2.xpose.msra.mxu0 0.0
    %1112 = vmatprep.subr.mxu0 0.0
    %1113 = vmatpush2.xpose.msra.mxu0 0.0
    %1114 = vmatprep.subr.mxu0 0.0
    %1115 = vmatpush2.xpose.msra.mxu0 0.0
    %1116 = vmatprep.mubr.f32.mxu0 0.0
    %1117 = vmatmul.mubr.f32.gmra.mxu0 %v375
    %v1118 = vpop.f32.mrf.mxu0
    %v1119 = vadd.f32 0.0, %v1118
    %v1120 = vpop.f32.mrf.mxu0
    %1121 = vmatprep.mubr.f32.mxu0 0.0
    %1122 = vmatmul.mubr.f32.gmra.mxu0 %v377
    %v1123 = vpop.f32.mrf.mxu0
    %v1124 = vadd.f32 0.0, %v1123
    %v1125 = vpop.f32.mrf.mxu0
    %1126 = vmatprep.mubr.f32.mxu0 0.0
    %1127 = vmatmul.mubr.f32.gmra.mxu0 %v379
    %v1128 = vpop.f32.mrf.mxu0
    %v1129 = vadd.f32 0.0, %v1128
    %v1130 = vpop.f32.mrf.mxu0
    %1131 = vmatprep.mubr.f32.mxu0 0.0
    %1132 = vmatmul.mubr.f32.gmra.mxu0 %v381
    %v1133 = vpop.f32.mrf.mxu0
    %v1134 = vadd.f32 0.0, %v1133
    %v1135 = vpop.f32.mrf.mxu0
    %1136 = vdwg.mxu0
    %v1138 = vsel %vm144, %v1038, 0
    %v1141 = vsel %vm144, %v1043, 0
    %1143 = vmatprep.subr.mxu0 0.0
    %1144 = vmatpush1.xpose.msra.mxu0 0.0
    %1145 = vmatprep.subr.mxu0 0.0
    %1146 = vmatpush1.xpose.msra.mxu0 0.0
    %1147 = vmatprep.subr.mxu0 0.0
    %1148 = vmatpush1.xpose.msra.mxu0 0.0
    %1149 = vmatprep.subr.mxu0 0.0
    %1150 = vmatpush1.xpose.msra.mxu0 0.0
    %1151 = vmatprep.subr.mxu0 0.0
    %1152 = vmatpush1.xpose.msra.mxu0 0.0
    %1153 = vmatprep.subr.mxu0 0.0
    %1154 = vmatpush1.xpose.msra.mxu0 0.0
    %1155 = vmatprep.subr.mxu0 0.0
    %1156 = vmatpush1.xpose.msra.mxu0 0.0
    %1157 = vmatprep.subr.mxu0 0.0
    %1158 = vmatpush1.xpose.msra.mxu0 0.0
    %1159 = vmatprep.subr.mxu0 0.0
    %1160 = vmatpush1.xpose.msra.mxu0 0.0
    %1161 = vmatprep.subr.mxu0 0.0
    %1162 = vmatpush1.xpose.msra.mxu0 0.0
    %1163 = vmatprep.subr.mxu0 0.0
    %1164 = vmatpush1.xpose.msra.mxu0 0.0
    %1165 = vmatprep.subr.mxu0 0.0
    %1166 = vmatpush1.xpose.msra.mxu0 0.0
    %1167 = vmatprep.subr.mxu0 0.0
    %1168 = vmatpush1.xpose.msra.mxu0 0.0
    %1169 = vmatprep.subr.mxu0 0.0
    %1170 = vmatpush1.xpose.msra.mxu0 0.0
    %1171 = vmatprep.subr.mxu0 0.0
    %1172 = vmatpush1.xpose.msra.mxu0 %v1141
    %1173 = vmatprep.subr.mxu0 0.0
    %1174 = vmatpush1.xpose.msra.mxu0 %v1138
    %1175 = vmatprep.subr.mxu0 0.0
    %1176 = vmatpush2.xpose.msra.mxu0 0.0
    %1177 = vmatprep.subr.mxu0 0.0
    %1178 = vmatpush2.xpose.msra.mxu0 0.0
    %1179 = vmatprep.subr.mxu0 0.0
    %1180 = vmatpush2.xpose.msra.mxu0 0.0
    %1181 = vmatprep.subr.mxu0 0.0
    %1182 = vmatpush2.xpose.msra.mxu0 0.0
    %1183 = vmatprep.subr.mxu0 0.0
    %1184 = vmatpush2.xpose.msra.mxu0 0.0
    %1185 = vmatprep.subr.mxu0 0.0
    %1186 = vmatpush2.xpose.msra.mxu0 0.0
    %1187 = vmatprep.subr.mxu0 0.0
    %1188 = vmatpush2.xpose.msra.mxu0 0.0
    %1189 = vmatprep.subr.mxu0 0.0
    %1190 = vmatpush2.xpose.msra.mxu0 0.0
    %1191 = vmatprep.subr.mxu0 0.0
    %1192 = vmatpush2.xpose.msra.mxu0 0.0
    %1193 = vmatprep.subr.mxu0 0.0
    %1194 = vmatpush2.xpose.msra.mxu0 0.0
    %1195 = vmatprep.subr.mxu0 0.0
    %1196 = vmatpush2.xpose.msra.mxu0 0.0
    %1197 = vmatprep.subr.mxu0 0.0
    %1198 = vmatpush2.xpose.msra.mxu0 0.0
    %1199 = vmatprep.subr.mxu0 0.0
    %1200 = vmatpush2.xpose.msra.mxu0 0.0
    %1201 = vmatprep.subr.mxu0 0.0
    %1202 = vmatpush2.xpose.msra.mxu0 0.0
    %1203 = vmatprep.subr.mxu0 0.0
    %1204 = vmatpush2.xpose.msra.mxu0 0.0
    %1205 = vmatprep.subr.mxu0 0.0
    %1206 = vmatpush2.xpose.msra.mxu0 0.0
    %1207 = vmatprep.mubr.f32.mxu0 0.0
    %1208 = vmatmul.mubr.f32.gmra.mxu0 %v474
    %v1209 = vpop.f32.mrf.mxu0
    %v1210 = vadd.f32 0.0, %v1209
    %v1211 = vpop.f32.mrf.mxu0
    %1212 = vmatprep.mubr.f32.mxu0 0.0
    %1213 = vmatmul.mubr.f32.gmra.mxu0 %v476
    %v1214 = vpop.f32.mrf.mxu0
    %v1215 = vadd.f32 0.0, %v1214
    %v1216 = vpop.f32.mrf.mxu0
    %1217 = vmatprep.mubr.f32.mxu0 0.0
    %1218 = vmatmul.mubr.f32.gmra.mxu0 %v478
    %v1219 = vpop.f32.mrf.mxu0
    %v1220 = vadd.f32 0.0, %v1219
    %v1221 = vpop.f32.mrf.mxu0
    %1222 = vmatprep.mubr.f32.mxu0 0.0
    %1223 = vmatmul.mubr.f32.gmra.mxu0 %v480
    %v1224 = vpop.f32.mrf.mxu0
    %v1225 = vadd.f32 0.0, %v1224
    %v1226 = vpop.f32.mrf.mxu0
    %1227 = vdwg.mxu0
    %v1228 = vmul.f32 %v925, %v925
    %v1229 = vmul.f32 %v930, %v930
    %v1230 = vmul.f32 %v1038, %v1038
    %v1231 = vmul.f32 %v1043, %v1043
    %v1232 = vsel %vm144, %v1228, 0.0
    %1233 = vadd.xlane.f32.xlu0 %v1232
    %v1234 = vpop.xlane.xlu0 %1233
    %v1235 = vsel %vm580, %v1229, 0.0
    %1236 = vadd.xlane.f32.xlu0 %v1235
    %v1237 = vpop.xlane.xlu0 %1236
    %v1238 = vsel %vm144, %v1230, 0.0
    %1239 = vadd.xlane.f32.xlu0 %v1238
    %v1240 = vpop.xlane.xlu0 %1239
    %v1241 = vsel %vm580, %v1231, 0.0
    %1242 = vadd.xlane.f32.xlu0 %v1241
    %v1243 = vpop.xlane.xlu0 %1242
    %v1244 = vmul.f32 %v1119, 2.0
    %v1245 = vmul.f32 %v1124, 2.0
    %v1246 = vmul.f32 %v1129, 2.0
    %v1247 = vmul.f32 %v1134, 2.0
    %v1248 = vmul.f32 %v1210, 2.0
    %v1249 = vmul.f32 %v1215, 2.0
    %v1250 = vmul.f32 %v1220, 2.0
    %v1251 = vmul.f32 %v1225, 2.0
    %v1252 = vsub.f32 %v147, %v1244
    %v1253 = vsub.f32 %v150, %v1245
    %v1254 = vsub.f32 %v153, %v1246
    %v1255 = vsub.f32 %v157, %v1247
    %v1256 = vsub.f32 %v160, %v1248
    %v1257 = vsub.f32 %v163, %v1249
    %v1258 = vsub.f32 %v166, %v1250
    %v1259 = vsub.f32 %v169, %v1251
    %v1264 = vlaneseq
    %v1265 = vshrl.u32 %v1264, 7
    %v1266 = vsub.s32 %v171, %v1265
    %v1267 = vrot.slane %v1234, %v1266
    %v1268 = vlaneseq
    %v1269 = vshrl.u32 %v1268, 7
    %v1270 = vsub.s32 %v614, %v1269
    %v1271 = vrot.slane %v1237, %v1270
    %v1272 = vsel %vm619, %v1271, %v1267
    %v1273 = vlaneseq
    %v1274 = vshrl.u32 %v1273, 7
    %v1275 = vsub.s32 %v171, %v1274
    %v1276 = vrot.slane %v1240, %v1275
    %v1277 = vlaneseq
    %v1278 = vshrl.u32 %v1277, 7
    %v1279 = vsub.s32 %v614, %v1278
    %v1280 = vrot.slane %v1243, %v1279
    %v1281 = vsel %vm619, %v1280, %v1276
    %v1282 = vsel %vm630, %v1272, %v1272
    %v1283 = vsel %vm632, %v1272, %v1282
    %v1284 = vsel %vm634, %v1272, %v1283
    %v1285 = vsel %vm636, %v1272, %v1284
    %v1286 = vsel %vm638, %v1272, %v1285
    %v1287 = vsel %vm640, %v1272, %v1286
    %v1288 = vsel %vm630, %v1281, %v1281
    %v1289 = vsel %vm632, %v1281, %v1288
    %v1290 = vsel %vm634, %v1281, %v1289
    %v1291 = vsel %vm636, %v1281, %v1290
    %v1292 = vsel %vm638, %v1281, %v1291
    %v1293 = vsel %vm640, %v1281, %v1292
    %v1298 = vadd.f32 %v1252, %v1287
    %v1299 = vadd.f32 %v1253, %v1287
    %v1300 = vadd.f32 %v1254, %v1287
    %v1301 = vadd.f32 %v1255, %v1272
    %v1302 = vadd.f32 %v1256, %v1293
    %v1303 = vadd.f32 %v1257, %v1293
    %v1304 = vadd.f32 %v1258, %v1293
    %v1305 = vadd.f32 %v1259, %v1281
    %v1306 = vmax.f32 %v1298, 0.0
    %v1307 = vmax.f32 %v1299, 0.0
    %v1308 = vmax.f32 %v1300, 0.0
    %v1309 = vmax.f32 %v1301, 0.0
    %v1310 = vmax.f32 %v1302, 0.0
    %v1311 = vmax.f32 %v1303, 0.0
    %v1312 = vmax.f32 %v1304, 0.0
    %v1313 = vmax.f32 %v1305, 0.0
    %v1314 = vrsqrt.pop %v1306
    %v1315 = vmul.f32 %v1306, %v1314
    %vm1316 = vcmp.eq.f32.partialorder %v1306, inf
    %v1317 = vsel %vm1316, %v1306, %v1315
    %vm1318 = vcmp.eq.f32.partialorder %v1306, 0.0
    %v1319 = vand.u32 %v1306, 2147483648
    %v1320 = vsel %vm1318, %v1319, %v1317
    %v1321 = vrsqrt.pop %v1307
    %v1322 = vmul.f32 %v1307, %v1321
    %vm1323 = vcmp.eq.f32.partialorder %v1307, inf
    %v1324 = vsel %vm1323, %v1307, %v1322
    %vm1325 = vcmp.eq.f32.partialorder %v1307, 0.0
    %v1326 = vand.u32 %v1307, 2147483648
    %v1327 = vsel %vm1325, %v1326, %v1324
    %v1328 = vrsqrt.pop %v1308
    %v1329 = vmul.f32 %v1308, %v1328
    %vm1330 = vcmp.eq.f32.partialorder %v1308, inf
    %v1331 = vsel %vm1330, %v1308, %v1329
    %vm1332 = vcmp.eq.f32.partialorder %v1308, 0.0
    %v1333 = vand.u32 %v1308, 2147483648
    %v1334 = vsel %vm1332, %v1333, %v1331
    %v1335 = vrsqrt.pop %v1309
    %v1336 = vmul.f32 %v1309, %v1335
    %vm1337 = vcmp.eq.f32.partialorder %v1309, inf
    %v1338 = vsel %vm1337, %v1309, %v1336
    %vm1339 = vcmp.eq.f32.partialorder %v1309, 0.0
    %v1340 = vand.u32 %v1309, 2147483648
    %v1341 = vsel %vm1339, %v1340, %v1338
    %v1342 = vrsqrt.pop %v1310
    %v1343 = vmul.f32 %v1310, %v1342
    %vm1344 = vcmp.eq.f32.partialorder %v1310, inf
    %v1345 = vsel %vm1344, %v1310, %v1343
    %vm1346 = vcmp.eq.f32.partialorder %v1310, 0.0
    %v1347 = vand.u32 %v1310, 2147483648
    %v1348 = vsel %vm1346, %v1347, %v1345
    %v1349 = vrsqrt.pop %v1311
    %v1350 = vmul.f32 %v1311, %v1349
    %vm1351 = vcmp.eq.f32.partialorder %v1311, inf
    %v1352 = vsel %vm1351, %v1311, %v1350
    %vm1353 = vcmp.eq.f32.partialorder %v1311, 0.0
    %v1354 = vand.u32 %v1311, 2147483648
    %v1355 = vsel %vm1353, %v1354, %v1352
    %v1356 = vrsqrt.pop %v1312
    %v1357 = vmul.f32 %v1312, %v1356
    %vm1358 = vcmp.eq.f32.partialorder %v1312, inf
    %v1359 = vsel %vm1358, %v1312, %v1357
    %vm1360 = vcmp.eq.f32.partialorder %v1312, 0.0
    %v1361 = vand.u32 %v1312, 2147483648
    %v1362 = vsel %vm1360, %v1361, %v1359
    %v1363 = vrsqrt.pop %v1313
    %v1364 = vmul.f32 %v1313, %v1363
    %vm1365 = vcmp.eq.f32.partialorder %v1313, inf
    %v1366 = vsel %vm1365, %v1313, %v1364
    %vm1367 = vcmp.eq.f32.partialorder %v1313, 0.0
    %v1368 = vand.u32 %v1313, 2147483648
    %v1369 = vsel %vm1367, %v1368, %v1366
    %v1370 = vadd.f32 %v1320, %v128
    %v1371 = vadd.f32 %v1327, %v129
    %v1372 = vadd.f32 %v1334, %v130
    %v1373 = vadd.f32 %v1341, %v131
    %v1374 = vadd.f32 %v1348, %v132
    %v1375 = vadd.f32 %v1355, %v133
    %v1376 = vadd.f32 %v1362, %v134
    %v1377 = vadd.f32 %v1369, %v135
    %v1378 = vsel %vm732, %v1370, inf
    %v1379 = vsel %vm732, %v1371, inf
    %v1380 = vsel %vm732, %v1372, inf
    %v1381 = vmin.f32 %v1378, %v1380
    %v1382 = vsel %vm737, %v1373, inf
    %v1383 = vmin.f32 %v1379, %v1382
    %v1384 = vmin.f32 %v1381, %v1383
    %v1385 = vrot.slane %v1384, 4
    %v1386 = vmin.f32 %v1384, %v1385
    %v1387 = vrot.slane %v1386, 2
    %v1388 = vmin.f32 %v1386, %v1387
    %v1389 = vrot.slane %v1388, 1
    %v1390 = vmin.f32 %v1388, %v1389
    %v1391 = vsel %vm732, %v1374, inf
    %v1392 = vsel %vm732, %v1375, inf
    %v1393 = vsel %vm732, %v1376, inf
    %v1394 = vmin.f32 %v1391, %v1393
    %v1395 = vsel %vm737, %v1377, inf
    %v1396 = vmin.f32 %v1392, %v1395
    %v1397 = vmin.f32 %v1394, %v1396
    %v1398 = vrot.slane %v1397, 4
    %v1399 = vmin.f32 %v1397, %v1398
    %v1400 = vrot.slane %v1399, 2
    %v1401 = vmin.f32 %v1399, %v1400
    %v1402 = vrot.slane %v1401, 1
    %v1403 = vmin.f32 %v1401, %v1402
    %v1404 = vsub.f32 %v1390, %v1370
    %v1405 = vsub.f32 %v1390, %v1371
    %v1406 = vsub.f32 %v1390, %v1372
    %v1407 = vsub.f32 %v1390, %v1373
    %v1408 = vsub.f32 %v1403, %v1374
    %v1409 = vsub.f32 %v1403, %v1375
    %v1410 = vsub.f32 %v1403, %v1376
    %v1411 = vsub.f32 %v1403, %v1377
    %v1412 = vmul.f32 %v1404, 1.442695
    %v1413 = vpow.pop %v1412
    %v1414 = vmul.f32 %v1405, 1.442695
    %v1415 = vpow.pop %v1414
    %v1416 = vmul.f32 %v1406, 1.442695
    %v1417 = vpow.pop %v1416
    %v1418 = vmul.f32 %v1407, 1.442695
    %v1419 = vpow.pop %v1418
    %v1420 = vmul.f32 %v1408, 1.442695
    %v1421 = vpow.pop %v1420
    %v1422 = vmul.f32 %v1409, 1.442695
    %v1423 = vpow.pop %v1422
    %v1424 = vmul.f32 %v1410, 1.442695
    %v1425 = vpow.pop %v1424
    %v1426 = vmul.f32 %v1411, 1.442695
    %v1427 = vpow.pop %v1426
    %v1428 = vsel %vm732, %v1413, 0.0
    %v1429 = vsel %vm732, %v1415, 0.0
    %v1430 = vadd.f32 %v1428, %v1429
    %v1431 = vsel %vm732, %v1417, 0.0
    %v1432 = vadd.f32 %v1430, %v1431
    %v1433 = vsel %vm737, %v1419, 0.0
    %v1434 = vadd.f32 %v1432, %v1433
    %v1435 = vrot.slane %v1434, 4
    %v1436 = vadd.f32 %v1434, %v1435
    %v1437 = vrot.slane %v1436, 2
    %v1438 = vadd.f32 %v1436, %v1437
    %v1439 = vrot.slane %v1438, 1
    %v1440 = vadd.f32 %v1438, %v1439
    %v1441 = vsel %vm732, %v1421, 0.0
    %v1442 = vsel %vm732, %v1423, 0.0
    %v1443 = vadd.f32 %v1441, %v1442
    %v1444 = vsel %vm732, %v1425, 0.0
    %v1445 = vadd.f32 %v1443, %v1444
    %v1446 = vsel %vm737, %v1427, 0.0
    %v1447 = vadd.f32 %v1445, %v1446
    %v1448 = vrot.slane %v1447, 4
    %v1449 = vadd.f32 %v1447, %v1448
    %v1450 = vrot.slane %v1449, 2
    %v1451 = vadd.f32 %v1449, %v1450
    %v1452 = vrot.slane %v1451, 1
    %v1453 = vadd.f32 %v1451, %v1452
    %v1454 = vrcp.pop %v1440
    %v1455 = vmul.f32 %v1413, %v1454
    %v1456 = vmul.f32 %v1415, %v1454
    %v1457 = vmul.f32 %v1417, %v1454
    %v1458 = vmul.f32 %v1419, %v1454
    %v1459 = vrcp.pop %v1453
    %v1460 = vmul.f32 %v1421, %v1459
    %v1461 = vmul.f32 %v1423, %v1459
    %v1462 = vmul.f32 %v1425, %v1459
    %v1463 = vmul.f32 %v1427, %v1459
    %1464 = vxpose.xlu0.b32.start [1/16] %v1455, 128
    %1465 = vxpose.xlu0.b32.cont [2/16] %v1456, 128
    %1466 = vxpose.xlu0.b32.cont [3/16] %v1457, 128
    %1467 = vxpose.xlu0.b32.cont [4/16] %v1458, 128
    %1468 = vxpose.xlu0.b32.cont [5/16] 0.0, 128
    %1469 = vxpose.xlu0.b32.cont [6/16] 0.0, 128
    %1470 = vxpose.xlu0.b32.cont [7/16] 0.0, 128
    %1471 = vxpose.xlu0.b32.cont [8/16] 0.0, 128
    %1472 = vxpose.xlu0.b32.cont [9/16] 0.0, 128
    %1473 = vxpose.xlu0.b32.cont [10/16] 0.0, 128
    %1474 = vxpose.xlu0.b32.cont [11/16] 0.0, 128
    %1475 = vxpose.xlu0.b32.cont [12/16] 0.0, 128
    %1476 = vxpose.xlu0.b32.cont [13/16] 0.0, 128
    %1477 = vxpose.xlu0.b32.cont [14/16] 0.0, 128
    %1478 = vxpose.xlu0.b32.cont [15/16] 0.0, 128
    %1479 = vxpose.xlu0.b32.end [16/16] 0.0, 128
    %v1480 = vpop.trf.xlu0
    %v1481 = vpop.trf.xlu0
    %v1482 = vpop.trf.xlu0
    %v1483 = vpop.trf.xlu0
    %v1484 = vpop.trf.xlu0
    %v1485 = vpop.trf.xlu0
    %v1486 = vpop.trf.xlu0
    %v1487 = vpop.trf.xlu0
    %v1488 = vpop.trf.xlu0
    %v1489 = vpop.trf.xlu0
    %v1490 = vpop.trf.xlu0
    %v1491 = vpop.trf.xlu0
    %v1492 = vpop.trf.xlu0
    %v1493 = vpop.trf.xlu0
    %v1494 = vpop.trf.xlu0
    %v1495 = vpop.trf.xlu0
    %v1497 = vsel %vm207, %v1480, 0
    %v1500 = vsel %vm207, %v1481, 0
    %1502 = vmatprep.subr.mxu0 0.0
    %1503 = vmatpush1.msra.mxu0 0.0
    %1504 = vmatprep.subr.mxu0 0.0
    %1505 = vmatpush1.msra.mxu0 0.0
    %1506 = vmatprep.subr.mxu0 0.0
    %1507 = vmatpush1.msra.mxu0 0.0
    %1508 = vmatprep.subr.mxu0 0.0
    %1509 = vmatpush1.msra.mxu0 0.0
    %1510 = vmatprep.subr.mxu0 0.0
    %1511 = vmatpush1.msra.mxu0 0.0
    %1512 = vmatprep.subr.mxu0 0.0
    %1513 = vmatpush1.msra.mxu0 0.0
    %1514 = vmatprep.subr.mxu0 0.0
    %1515 = vmatpush1.msra.mxu0 0.0
    %1516 = vmatprep.subr.mxu0 0.0
    %1517 = vmatpush1.msra.mxu0 0.0
    %1518 = vmatprep.subr.mxu0 0.0
    %1519 = vmatpush1.msra.mxu0 0.0
    %1520 = vmatprep.subr.mxu0 0.0
    %1521 = vmatpush1.msra.mxu0 0.0
    %1522 = vmatprep.subr.mxu0 0.0
    %1523 = vmatpush1.msra.mxu0 0.0
    %1524 = vmatprep.subr.mxu0 0.0
    %1525 = vmatpush1.msra.mxu0 0.0
    %1526 = vmatprep.subr.mxu0 0.0
    %1527 = vmatpush1.msra.mxu0 %v215
    %1528 = vmatprep.subr.mxu0 0.0
    %1529 = vmatpush1.msra.mxu0 %v17
    %1530 = vmatprep.subr.mxu0 0.0
    %1531 = vmatpush1.msra.mxu0 %v16
    %1532 = vmatprep.subr.mxu0 0.0
    %1533 = vmatpush1.msra.mxu0 %v15
    %1534 = vmatprep.subr.mxu0 0.0
    %1535 = vmatpush2.msra.mxu0 0.0
    %1536 = vmatprep.subr.mxu0 0.0
    %1537 = vmatpush2.msra.mxu0 0.0
    %1538 = vmatprep.subr.mxu0 0.0
    %1539 = vmatpush2.msra.mxu0 0.0
    %1540 = vmatprep.subr.mxu0 0.0
    %1541 = vmatpush2.msra.mxu0 0.0
    %1542 = vmatprep.subr.mxu0 0.0
    %1543 = vmatpush2.msra.mxu0 0.0
    %1544 = vmatprep.subr.mxu0 0.0
    %1545 = vmatpush2.msra.mxu0 0.0
    %1546 = vmatprep.subr.mxu0 0.0
    %1547 = vmatpush2.msra.mxu0 0.0
    %1548 = vmatprep.subr.mxu0 0.0
    %1549 = vmatpush2.msra.mxu0 0.0
    %1550 = vmatprep.subr.mxu0 0.0
    %1551 = vmatpush2.msra.mxu0 0.0
    %1552 = vmatprep.subr.mxu0 0.0
    %1553 = vmatpush2.msra.mxu0 0.0
    %1554 = vmatprep.subr.mxu0 0.0
    %1555 = vmatpush2.msra.mxu0 0.0
    %1556 = vmatprep.subr.mxu0 0.0
    %1557 = vmatpush2.msra.mxu0 0.0
    %1558 = vmatprep.subr.mxu0 0.0
    %1559 = vmatpush2.msra.mxu0 0.0
    %1560 = vmatprep.subr.mxu0 0.0
    %1561 = vmatpush2.msra.mxu0 0.0
    %1562 = vmatprep.subr.mxu0 0.0
    %1563 = vmatpush2.msra.mxu0 0.0
    %1564 = vmatprep.subr.mxu0 0.0
    %1565 = vmatpush2.msra.mxu0 0.0
    %1566 = vmatprep.mubr.f32.mxu0 0.0
    %1567 = vmatmul.mubr.f32.gmra.mxu0 %v1497
    %v1568 = vpop.f32.mrf.mxu0
    %v1569 = vadd.f32 0.0, %v1568
    %v1570 = vpop.f32.mrf.mxu0
    %1571 = vmatprep.mubr.f32.mxu0 0.0
    %1572 = vmatmul.mubr.f32.gmra.mxu0 %v1500
    %v1573 = vpop.f32.mrf.mxu0
    %v1574 = vadd.f32 0.0, %v1573
    %v1575 = vpop.f32.mrf.mxu0
    %1576 = vdwg.mxu0
    %1577 = vxpose.xlu0.b32.start [1/16] %v1460, 128
    %1578 = vxpose.xlu0.b32.cont [2/16] %v1461, 128
    %1579 = vxpose.xlu0.b32.cont [3/16] %v1462, 128
    %1580 = vxpose.xlu0.b32.cont [4/16] %v1463, 128
    %1581 = vxpose.xlu0.b32.cont [5/16] 0.0, 128
    %1582 = vxpose.xlu0.b32.cont [6/16] 0.0, 128
    %1583 = vxpose.xlu0.b32.cont [7/16] 0.0, 128
    %1584 = vxpose.xlu0.b32.cont [8/16] 0.0, 128
    %1585 = vxpose.xlu0.b32.cont [9/16] 0.0, 128
    %1586 = vxpose.xlu0.b32.cont [10/16] 0.0, 128
    %1587 = vxpose.xlu0.b32.cont [11/16] 0.0, 128
    %1588 = vxpose.xlu0.b32.cont [12/16] 0.0, 128
    %1589 = vxpose.xlu0.b32.cont [13/16] 0.0, 128
    %1590 = vxpose.xlu0.b32.cont [14/16] 0.0, 128
    %1591 = vxpose.xlu0.b32.cont [15/16] 0.0, 128
    %1592 = vxpose.xlu0.b32.end [16/16] 0.0, 128
    %v1593 = vpop.trf.xlu0
    %v1594 = vpop.trf.xlu0
    %v1595 = vpop.trf.xlu0
    %v1596 = vpop.trf.xlu0
    %v1597 = vpop.trf.xlu0
    %v1598 = vpop.trf.xlu0
    %v1599 = vpop.trf.xlu0
    %v1600 = vpop.trf.xlu0
    %v1601 = vpop.trf.xlu0
    %v1602 = vpop.trf.xlu0
    %v1603 = vpop.trf.xlu0
    %v1604 = vpop.trf.xlu0
    %v1605 = vpop.trf.xlu0
    %v1606 = vpop.trf.xlu0
    %v1607 = vpop.trf.xlu0
    %v1608 = vpop.trf.xlu0
    %v1610 = vsel %vm207, %v1593, 0
    %v1613 = vsel %vm207, %v1594, 0
    %1615 = vmatprep.subr.mxu0 0.0
    %1616 = vmatpush1.msra.mxu0 0.0
    %1617 = vmatprep.subr.mxu0 0.0
    %1618 = vmatpush1.msra.mxu0 0.0
    %1619 = vmatprep.subr.mxu0 0.0
    %1620 = vmatpush1.msra.mxu0 0.0
    %1621 = vmatprep.subr.mxu0 0.0
    %1622 = vmatpush1.msra.mxu0 0.0
    %1623 = vmatprep.subr.mxu0 0.0
    %1624 = vmatpush1.msra.mxu0 0.0
    %1625 = vmatprep.subr.mxu0 0.0
    %1626 = vmatpush1.msra.mxu0 0.0
    %1627 = vmatprep.subr.mxu0 0.0
    %1628 = vmatpush1.msra.mxu0 0.0
    %1629 = vmatprep.subr.mxu0 0.0
    %1630 = vmatpush1.msra.mxu0 0.0
    %1631 = vmatprep.subr.mxu0 0.0
    %1632 = vmatpush1.msra.mxu0 0.0
    %1633 = vmatprep.subr.mxu0 0.0
    %1634 = vmatpush1.msra.mxu0 0.0
    %1635 = vmatprep.subr.mxu0 0.0
    %1636 = vmatpush1.msra.mxu0 0.0
    %1637 = vmatprep.subr.mxu0 0.0
    %1638 = vmatpush1.msra.mxu0 0.0
    %1639 = vmatprep.subr.mxu0 0.0
    %1640 = vmatpush1.msra.mxu0 %v298
    %1641 = vmatprep.subr.mxu0 0.0
    %1642 = vmatpush1.msra.mxu0 %v21
    %1643 = vmatprep.subr.mxu0 0.0
    %1644 = vmatpush1.msra.mxu0 %v20
    %1645 = vmatprep.subr.mxu0 0.0
    %1646 = vmatpush1.msra.mxu0 %v19
    %1647 = vmatprep.subr.mxu0 0.0
    %1648 = vmatpush2.msra.mxu0 0.0
    %1649 = vmatprep.subr.mxu0 0.0
    %1650 = vmatpush2.msra.mxu0 0.0
    %1651 = vmatprep.subr.mxu0 0.0
    %1652 = vmatpush2.msra.mxu0 0.0
    %1653 = vmatprep.subr.mxu0 0.0
    %1654 = vmatpush2.msra.mxu0 0.0
    %1655 = vmatprep.subr.mxu0 0.0
    %1656 = vmatpush2.msra.mxu0 0.0
    %1657 = vmatprep.subr.mxu0 0.0
    %1658 = vmatpush2.msra.mxu0 0.0
    %1659 = vmatprep.subr.mxu0 0.0
    %1660 = vmatpush2.msra.mxu0 0.0
    %1661 = vmatprep.subr.mxu0 0.0
    %1662 = vmatpush2.msra.mxu0 0.0
    %1663 = vmatprep.subr.mxu0 0.0
    %1664 = vmatpush2.msra.mxu0 0.0
    %1665 = vmatprep.subr.mxu0 0.0
    %1666 = vmatpush2.msra.mxu0 0.0
    %1667 = vmatprep.subr.mxu0 0.0
    %1668 = vmatpush2.msra.mxu0 0.0
    %1669 = vmatprep.subr.mxu0 0.0
    %1670 = vmatpush2.msra.mxu0 0.0
    %1671 = vmatprep.subr.mxu0 0.0
    %1672 = vmatpush2.msra.mxu0 0.0
    %1673 = vmatprep.subr.mxu0 0.0
    %1674 = vmatpush2.msra.mxu0 0.0
    %1675 = vmatprep.subr.mxu0 0.0
    %1676 = vmatpush2.msra.mxu0 0.0
    %1677 = vmatprep.subr.mxu0 0.0
    %1678 = vmatpush2.msra.mxu0 0.0
    %1679 = vmatprep.mubr.f32.mxu0 0.0
    %1680 = vmatmul.mubr.f32.gmra.mxu0 %v1610
    %v1681 = vpop.f32.mrf.mxu0
    %v1682 = vadd.f32 0.0, %v1681
    %v1683 = vpop.f32.mrf.mxu0
    %1684 = vmatprep.mubr.f32.mxu0 0.0
    %1685 = vmatmul.mubr.f32.gmra.mxu0 %v1613
    %v1686 = vpop.f32.mrf.mxu0
    %v1687 = vadd.f32 0.0, %v1686
    %v1688 = vpop.f32.mrf.mxu0
    %1689 = vdwg.mxu0
    %v1691 = vsel %vm144, %v1569, 0
    %v1694 = vsel %vm144, %v1574, 0
    %1696 = vmatprep.subr.mxu0 0.0
    %1697 = vmatpush1.xpose.msra.mxu0 0.0
    %1698 = vmatprep.subr.mxu0 0.0
    %1699 = vmatpush1.xpose.msra.mxu0 0.0
    %1700 = vmatprep.subr.mxu0 0.0
    %1701 = vmatpush1.xpose.msra.mxu0 0.0
    %1702 = vmatprep.subr.mxu0 0.0
    %1703 = vmatpush1.xpose.msra.mxu0 0.0
    %1704 = vmatprep.subr.mxu0 0.0
    %1705 = vmatpush1.xpose.msra.mxu0 0.0
    %1706 = vmatprep.subr.mxu0 0.0
    %1707 = vmatpush1.xpose.msra.mxu0 0.0
    %1708 = vmatprep.subr.mxu0 0.0
    %1709 = vmatpush1.xpose.msra.mxu0 0.0
    %1710 = vmatprep.subr.mxu0 0.0
    %1711 = vmatpush1.xpose.msra.mxu0 0.0
    %1712 = vmatprep.subr.mxu0 0.0
    %1713 = vmatpush1.xpose.msra.mxu0 0.0
    %1714 = vmatprep.subr.mxu0 0.0
    %1715 = vmatpush1.xpose.msra.mxu0 0.0
    %1716 = vmatprep.subr.mxu0 0.0
    %1717 = vmatpush1.xpose.msra.mxu0 0.0
    %1718 = vmatprep.subr.mxu0 0.0
    %1719 = vmatpush1.xpose.msra.mxu0 0.0
    %1720 = vmatprep.subr.mxu0 0.0
    %1721 = vmatpush1.xpose.msra.mxu0 0.0
    %1722 = vmatprep.subr.mxu0 0.0
    %1723 = vmatpush1.xpose.msra.mxu0 0.0
    %1724 = vmatprep.subr.mxu0 0.0
    %1725 = vmatpush1.xpose.msra.mxu0 %v1694
    %1726 = vmatprep.subr.mxu0 0.0
    %1727 = vmatpush1.xpose.msra.mxu0 %v1691
    %1728 = vmatprep.subr.mxu0 0.0
    %1729 = vmatpush2.xpose.msra.mxu0 0.0
    %1730 = vmatprep.subr.mxu0 0.0
    %1731 = vmatpush2.xpose.msra.mxu0 0.0
    %1732 = vmatprep.subr.mxu0 0.0
    %1733 = vmatpush2.xpose.msra.mxu0 0.0
    %1734 = vmatprep.subr.mxu0 0.0
    %1735 = vmatpush2.xpose.msra.mxu0 0.0
    %1736 = vmatprep.subr.mxu0 0.0
    %1737 = vmatpush2.xpose.msra.mxu0 0.0
    %1738 = vmatprep.subr.mxu0 0.0
    %1739 = vmatpush2.xpose.msra.mxu0 0.0
    %1740 = vmatprep.subr.mxu0 0.0
    %1741 = vmatpush2.xpose.msra.mxu0 0.0
    %1742 = vmatprep.subr.mxu0 0.0
    %1743 = vmatpush2.xpose.msra.mxu0 0.0
    %1744 = vmatprep.subr.mxu0 0.0
    %1745 = vmatpush2.xpose.msra.mxu0 0.0
    %1746 = vmatprep.subr.mxu0 0.0
    %1747 = vmatpush2.xpose.msra.mxu0 0.0
    %1748 = vmatprep.subr.mxu0 0.0
    %1749 = vmatpush2.xpose.msra.mxu0 0.0
    %1750 = vmatprep.subr.mxu0 0.0
    %1751 = vmatpush2.xpose.msra.mxu0 0.0
    %1752 = vmatprep.subr.mxu0 0.0
    %1753 = vmatpush2.xpose.msra.mxu0 0.0
    %1754 = vmatprep.subr.mxu0 0.0
    %1755 = vmatpush2.xpose.msra.mxu0 0.0
    %1756 = vmatprep.subr.mxu0 0.0
    %1757 = vmatpush2.xpose.msra.mxu0 0.0
    %1758 = vmatprep.subr.mxu0 0.0
    %1759 = vmatpush2.xpose.msra.mxu0 0.0
    %1760 = vmatprep.mubr.f32.mxu0 0.0
    %1761 = vmatmul.mubr.f32.gmra.mxu0 %v375
    %v1762 = vpop.f32.mrf.mxu0
    %v1763 = vadd.f32 0.0, %v1762
    %v1764 = vpop.f32.mrf.mxu0
    %1765 = vmatprep.mubr.f32.mxu0 0.0
    %1766 = vmatmul.mubr.f32.gmra.mxu0 %v377
    %v1767 = vpop.f32.mrf.mxu0
    %v1768 = vadd.f32 0.0, %v1767
    %v1769 = vpop.f32.mrf.mxu0
    %1770 = vmatprep.mubr.f32.mxu0 0.0
    %1771 = vmatmul.mubr.f32.gmra.mxu0 %v379
    %v1772 = vpop.f32.mrf.mxu0
    %v1773 = vadd.f32 0.0, %v1772
    %v1774 = vpop.f32.mrf.mxu0
    %1775 = vmatprep.mubr.f32.mxu0 0.0
    %1776 = vmatmul.mubr.f32.gmra.mxu0 %v381
    %v1777 = vpop.f32.mrf.mxu0
    %v1778 = vadd.f32 0.0, %v1777
    %v1779 = vpop.f32.mrf.mxu0
    %1780 = vdwg.mxu0
    %v1782 = vsel %vm144, %v1682, 0
    %v1785 = vsel %vm144, %v1687, 0
    %1787 = vmatprep.subr.mxu0 0.0
    %1788 = vmatpush1.xpose.msra.mxu0 0.0
    %1789 = vmatprep.subr.mxu0 0.0
    %1790 = vmatpush1.xpose.msra.mxu0 0.0
    %1791 = vmatprep.subr.mxu0 0.0
    %1792 = vmatpush1.xpose.msra.mxu0 0.0
    %1793 = vmatprep.subr.mxu0 0.0
    %1794 = vmatpush1.xpose.msra.mxu0 0.0
    %1795 = vmatprep.subr.mxu0 0.0
    %1796 = vmatpush1.xpose.msra.mxu0 0.0
    %1797 = vmatprep.subr.mxu0 0.0
    %1798 = vmatpush1.xpose.msra.mxu0 0.0
    %1799 = vmatprep.subr.mxu0 0.0
    %1800 = vmatpush1.xpose.msra.mxu0 0.0
    %1801 = vmatprep.subr.mxu0 0.0
    %1802 = vmatpush1.xpose.msra.mxu0 0.0
    %1803 = vmatprep.subr.mxu0 0.0
    %1804 = vmatpush1.xpose.msra.mxu0 0.0
    %1805 = vmatprep.subr.mxu0 0.0
    %1806 = vmatpush1.xpose.msra.mxu0 0.0
    %1807 = vmatprep.subr.mxu0 0.0
    %1808 = vmatpush1.xpose.msra.mxu0 0.0
    %1809 = vmatprep.subr.mxu0 0.0
    %1810 = vmatpush1.xpose.msra.mxu0 0.0
    %1811 = vmatprep.subr.mxu0 0.0
    %1812 = vmatpush1.xpose.msra.mxu0 0.0
    %1813 = vmatprep.subr.mxu0 0.0
    %1814 = vmatpush1.xpose.msra.mxu0 0.0
    %1815 = vmatprep.subr.mxu0 0.0
    %1816 = vmatpush1.xpose.msra.mxu0 %v1785
    %1817 = vmatprep.subr.mxu0 0.0
    %1818 = vmatpush1.xpose.msra.mxu0 %v1782
    %1819 = vmatprep.subr.mxu0 0.0
    %1820 = vmatpush2.xpose.msra.mxu0 0.0
    %1821 = vmatprep.subr.mxu0 0.0
    %1822 = vmatpush2.xpose.msra.mxu0 0.0
    %1823 = vmatprep.subr.mxu0 0.0
    %1824 = vmatpush2.xpose.msra.mxu0 0.0
    %1825 = vmatprep.subr.mxu0 0.0
    %1826 = vmatpush2.xpose.msra.mxu0 0.0
    %1827 = vmatprep.subr.mxu0 0.0
    %1828 = vmatpush2.xpose.msra.mxu0 0.0
    %1829 = vmatprep.subr.mxu0 0.0
    %1830 = vmatpush2.xpose.msra.mxu0 0.0
    %1831 = vmatprep.subr.mxu0 0.0
    %1832 = vmatpush2.xpose.msra.mxu0 0.0
    %1833 = vmatprep.subr.mxu0 0.0
    %1834 = vmatpush2.xpose.msra.mxu0 0.0
    %1835 = vmatprep.subr.mxu0 0.0
    %1836 = vmatpush2.xpose.msra.mxu0 0.0
    %1837 = vmatprep.subr.mxu0 0.0
    %1838 = vmatpush2.xpose.msra.mxu0 0.0
    %1839 = vmatprep.subr.mxu0 0.0
    %1840 = vmatpush2.xpose.msra.mxu0 0.0
    %1841 = vmatprep.subr.mxu0 0.0
    %1842 = vmatpush2.xpose.msra.mxu0 0.0
    %1843 = vmatprep.subr.mxu0 0.0
    %1844 = vmatpush2.xpose.msra.mxu0 0.0
    %1845 = vmatprep.subr.mxu0 0.0
    %1846 = vmatpush2.xpose.msra.mxu0 0.0
    %1847 = vmatprep.subr.mxu0 0.0
    %1848 = vmatpush2.xpose.msra.mxu0 0.0
    %1849 = vmatprep.subr.mxu0 0.0
    %1850 = vmatpush2.xpose.msra.mxu0 0.0
    %1851 = vmatprep.mubr.f32.mxu0 0.0
    %1852 = vmatmul.mubr.f32.gmra.mxu0 %v474
    %v1853 = vpop.f32.mrf.mxu0
    %v1854 = vadd.f32 0.0, %v1853
    %v1855 = vpop.f32.mrf.mxu0
    %1856 = vmatprep.mubr.f32.mxu0 0.0
    %1857 = vmatmul.mubr.f32.gmra.mxu0 %v476
    %v1858 = vpop.f32.mrf.mxu0
    %v1859 = vadd.f32 0.0, %v1858
    %v1860 = vpop.f32.mrf.mxu0
    %1861 = vmatprep.mubr.f32.mxu0 0.0
    %1862 = vmatmul.mubr.f32.gmra.mxu0 %v478
    %v1863 = vpop.f32.mrf.mxu0
    %v1864 = vadd.f32 0.0, %v1863
    %v1865 = vpop.f32.mrf.mxu0
    %1866 = vmatprep.mubr.f32.mxu0 0.0
    %1867 = vmatmul.mubr.f32.gmra.mxu0 %v480
    %v1868 = vpop.f32.mrf.mxu0
    %v1869 = vadd.f32 0.0, %v1868
    %v1870 = vpop.f32.mrf.mxu0
    %1871 = vdwg.mxu0
    %v1872 = vmul.f32 %v1569, %v1569
    %v1873 = vmul.f32 %v1574, %v1574
    %v1874 = vmul.f32 %v1682, %v1682
    %v1875 = vmul.f32 %v1687, %v1687
    %v1876 = vsel %vm144, %v1872, 0.0
    %1877 = vadd.xlane.f32.xlu0 %v1876
    %v1878 = vpop.xlane.xlu0 %1877
    %v1879 = vsel %vm580, %v1873, 0.0
    %1880 = vadd.xlane.f32.xlu0 %v1879
    %v1881 = vpop.xlane.xlu0 %1880
    %v1882 = vsel %vm144, %v1874, 0.0
    %1883 = vadd.xlane.f32.xlu0 %v1882
    %v1884 = vpop.xlane.xlu0 %1883
    %v1885 = vsel %vm580, %v1875, 0.0
    %1886 = vadd.xlane.f32.xlu0 %v1885
    %v1887 = vpop.xlane.xlu0 %1886
    %v1888 = vmul.f32 %v1763, 2.0
    %v1889 = vmul.f32 %v1768, 2.0
    %v1890 = vmul.f32 %v1773, 2.0
    %v1891 = vmul.f32 %v1778, 2.0
    %v1892 = vmul.f32 %v1854, 2.0
    %v1893 = vmul.f32 %v1859, 2.0
    %v1894 = vmul.f32 %v1864, 2.0
    %v1895 = vmul.f32 %v1869, 2.0
    %v1896 = vsub.f32 %v147, %v1888
    %v1897 = vsub.f32 %v150, %v1889
    %v1898 = vsub.f32 %v153, %v1890
    %v1899 = vsub.f32 %v157, %v1891
    %v1900 = vsub.f32 %v160, %v1892
    %v1901 = vsub.f32 %v163, %v1893
    %v1902 = vsub.f32 %v166, %v1894
    %v1903 = vsub.f32 %v169, %v1895
    %v1908 = vlaneseq
    %v1909 = vshrl.u32 %v1908, 7
    %v1910 = vsub.s32 %v171, %v1909
    %v1911 = vrot.slane %v1878, %v1910
    %v1912 = vlaneseq
    %v1913 = vshrl.u32 %v1912, 7
    %v1914 = vsub.s32 %v614, %v1913
    %v1915 = vrot.slane %v1881, %v1914
    %v1916 = vsel %vm619, %v1915, %v1911
    %v1917 = vlaneseq
    %v1918 = vshrl.u32 %v1917, 7
    %v1919 = vsub.s32 %v171, %v1918
    %v1920 = vrot.slane %v1884, %v1919
    %v1921 = vlaneseq
    %v1922 = vshrl.u32 %v1921, 7
    %v1923 = vsub.s32 %v614, %v1922
    %v1924 = vrot.slane %v1887, %v1923
    %v1925 = vsel %vm619, %v1924, %v1920
    %v1926 = vsel %vm630, %v1916, %v1916
    %v1927 = vsel %vm632, %v1916, %v1926
    %v1928 = vsel %vm634, %v1916, %v1927
    %v1929 = vsel %vm636, %v1916, %v1928
    %v1930 = vsel %vm638, %v1916, %v1929
    %v1931 = vsel %vm640, %v1916, %v1930
    %v1932 = vsel %vm630, %v1925, %v1925
    %v1933 = vsel %vm632, %v1925, %v1932
    %v1934 = vsel %vm634, %v1925, %v1933
    %v1935 = vsel %vm636, %v1925, %v1934
    %v1936 = vsel %vm638, %v1925, %v1935
    %v1937 = vsel %vm640, %v1925, %v1936
    %v1942 = vadd.f32 %v1896, %v1931
    %v1943 = vadd.f32 %v1897, %v1931
    %v1944 = vadd.f32 %v1898, %v1931
    %v1945 = vadd.f32 %v1899, %v1916
    %v1946 = vadd.f32 %v1900, %v1937
    %v1947 = vadd.f32 %v1901, %v1937
    %v1948 = vadd.f32 %v1902, %v1937
    %v1949 = vadd.f32 %v1903, %v1925
    %v1950 = vmax.f32 %v1942, 0.0
    %v1951 = vmax.f32 %v1943, 0.0
    %v1952 = vmax.f32 %v1944, 0.0
    %v1953 = vmax.f32 %v1945, 0.0
    %v1954 = vmax.f32 %v1946, 0.0
    %v1955 = vmax.f32 %v1947, 0.0
    %v1956 = vmax.f32 %v1948, 0.0
    %v1957 = vmax.f32 %v1949, 0.0
    %v1958 = vrsqrt.pop %v1950
    %v1959 = vmul.f32 %v1950, %v1958
    %vm1960 = vcmp.eq.f32.partialorder %v1950, inf
    %v1961 = vsel %vm1960, %v1950, %v1959
    %vm1962 = vcmp.eq.f32.partialorder %v1950, 0.0
    %v1963 = vand.u32 %v1950, 2147483648
    %v1964 = vsel %vm1962, %v1963, %v1961
    %v1965 = vrsqrt.pop %v1951
    %v1966 = vmul.f32 %v1951, %v1965
    %vm1967 = vcmp.eq.f32.partialorder %v1951, inf
    %v1968 = vsel %vm1967, %v1951, %v1966
    %vm1969 = vcmp.eq.f32.partialorder %v1951, 0.0
    %v1970 = vand.u32 %v1951, 2147483648
    %v1971 = vsel %vm1969, %v1970, %v1968
    %v1972 = vrsqrt.pop %v1952
    %v1973 = vmul.f32 %v1952, %v1972
    %vm1974 = vcmp.eq.f32.partialorder %v1952, inf
    %v1975 = vsel %vm1974, %v1952, %v1973
    %vm1976 = vcmp.eq.f32.partialorder %v1952, 0.0
    %v1977 = vand.u32 %v1952, 2147483648
    %v1978 = vsel %vm1976, %v1977, %v1975
    %v1979 = vrsqrt.pop %v1953
    %v1980 = vmul.f32 %v1953, %v1979
    %vm1981 = vcmp.eq.f32.partialorder %v1953, inf
    %v1982 = vsel %vm1981, %v1953, %v1980
    %vm1983 = vcmp.eq.f32.partialorder %v1953, 0.0
    %v1984 = vand.u32 %v1953, 2147483648
    %v1985 = vsel %vm1983, %v1984, %v1982
    %v1986 = vrsqrt.pop %v1954
    %v1987 = vmul.f32 %v1954, %v1986
    %vm1988 = vcmp.eq.f32.partialorder %v1954, inf
    %v1989 = vsel %vm1988, %v1954, %v1987
    %vm1990 = vcmp.eq.f32.partialorder %v1954, 0.0
    %v1991 = vand.u32 %v1954, 2147483648
    %v1992 = vsel %vm1990, %v1991, %v1989
    %v1993 = vrsqrt.pop %v1955
    %v1994 = vmul.f32 %v1955, %v1993
    %vm1995 = vcmp.eq.f32.partialorder %v1955, inf
    %v1996 = vsel %vm1995, %v1955, %v1994
    %vm1997 = vcmp.eq.f32.partialorder %v1955, 0.0
    %v1998 = vand.u32 %v1955, 2147483648
    %v1999 = vsel %vm1997, %v1998, %v1996
    %v2000 = vrsqrt.pop %v1956
    %v2001 = vmul.f32 %v1956, %v2000
    %vm2002 = vcmp.eq.f32.partialorder %v1956, inf
    %v2003 = vsel %vm2002, %v1956, %v2001
    %vm2004 = vcmp.eq.f32.partialorder %v1956, 0.0
    %v2005 = vand.u32 %v1956, 2147483648
    %v2006 = vsel %vm2004, %v2005, %v2003
    %v2007 = vrsqrt.pop %v1957
    %v2008 = vmul.f32 %v1957, %v2007
    %vm2009 = vcmp.eq.f32.partialorder %v1957, inf
    %v2010 = vsel %vm2009, %v1957, %v2008
    %vm2011 = vcmp.eq.f32.partialorder %v1957, 0.0
    %v2012 = vand.u32 %v1957, 2147483648
    %v2013 = vsel %vm2011, %v2012, %v2010
    %v2014 = vadd.f32 %v1964, %v128
    %v2015 = vadd.f32 %v1971, %v129
    %v2016 = vadd.f32 %v1978, %v130
    %v2017 = vadd.f32 %v1985, %v131
    %v2018 = vadd.f32 %v1992, %v132
    %v2019 = vadd.f32 %v1999, %v133
    %v2020 = vadd.f32 %v2006, %v134
    %v2021 = vadd.f32 %v2013, %v135
    %v2022 = vsel %vm732, %v2014, inf
    %v2023 = vsel %vm732, %v2015, inf
    %v2024 = vsel %vm732, %v2016, inf
    %v2025 = vmin.f32 %v2022, %v2024
    %v2026 = vsel %vm737, %v2017, inf
    %v2027 = vmin.f32 %v2023, %v2026
    %v2028 = vmin.f32 %v2025, %v2027
    %v2029 = vrot.slane %v2028, 4
    %v2030 = vmin.f32 %v2028, %v2029
    %v2031 = vrot.slane %v2030, 2
    %v2032 = vmin.f32 %v2030, %v2031
    %v2033 = vrot.slane %v2032, 1
    %v2034 = vmin.f32 %v2032, %v2033
    %v2035 = vsel %vm732, %v2018, inf
    %v2036 = vsel %vm732, %v2019, inf
    %v2037 = vsel %vm732, %v2020, inf
    %v2038 = vmin.f32 %v2035, %v2037
    %v2039 = vsel %vm737, %v2021, inf
    %v2040 = vmin.f32 %v2036, %v2039
    %v2041 = vmin.f32 %v2038, %v2040
    %v2042 = vrot.slane %v2041, 4
    %v2043 = vmin.f32 %v2041, %v2042
    %v2044 = vrot.slane %v2043, 2
    %v2045 = vmin.f32 %v2043, %v2044
    %v2046 = vrot.slane %v2045, 1
    %v2047 = vmin.f32 %v2045, %v2046
    %v2048 = vsub.f32 %v2034, %v2014
    %v2049 = vsub.f32 %v2034, %v2015
    %v2050 = vsub.f32 %v2034, %v2016
    %v2051 = vsub.f32 %v2034, %v2017
    %v2052 = vsub.f32 %v2047, %v2018
    %v2053 = vsub.f32 %v2047, %v2019
    %v2054 = vsub.f32 %v2047, %v2020
    %v2055 = vsub.f32 %v2047, %v2021
    %v2056 = vmul.f32 %v2048, 1.442695
    %v2057 = vpow.pop %v2056
    %v2058 = vmul.f32 %v2049, 1.442695
    %v2059 = vpow.pop %v2058
    %v2060 = vmul.f32 %v2050, 1.442695
    %v2061 = vpow.pop %v2060
    %v2062 = vmul.f32 %v2051, 1.442695
    %v2063 = vpow.pop %v2062
    %v2064 = vmul.f32 %v2052, 1.442695
    %v2065 = vpow.pop %v2064
    %v2066 = vmul.f32 %v2053, 1.442695
    %v2067 = vpow.pop %v2066
    %v2068 = vmul.f32 %v2054, 1.442695
    %v2069 = vpow.pop %v2068
    %v2070 = vmul.f32 %v2055, 1.442695
    %v2071 = vpow.pop %v2070
    %v2072 = vsel %vm732, %v2057, 0.0
    %v2073 = vsel %vm732, %v2059, 0.0
    %v2074 = vadd.f32 %v2072, %v2073
    %v2075 = vsel %vm732, %v2061, 0.0
    %v2076 = vadd.f32 %v2074, %v2075
    %v2077 = vsel %vm737, %v2063, 0.0
    %v2078 = vadd.f32 %v2076, %v2077
    %v2079 = vrot.slane %v2078, 4
    %v2080 = vadd.f32 %v2078, %v2079
    %v2081 = vrot.slane %v2080, 2
    %v2082 = vadd.f32 %v2080, %v2081
    %v2083 = vrot.slane %v2082, 1
    %v2084 = vadd.f32 %v2082, %v2083
    %v2085 = vsel %vm732, %v2065, 0.0
    %v2086 = vsel %vm732, %v2067, 0.0
    %v2087 = vadd.f32 %v2085, %v2086
    %v2088 = vsel %vm732, %v2069, 0.0
    %v2089 = vadd.f32 %v2087, %v2088
    %v2090 = vsel %vm737, %v2071, 0.0
    %v2091 = vadd.f32 %v2089, %v2090
    %v2092 = vrot.slane %v2091, 4
    %v2093 = vadd.f32 %v2091, %v2092
    %v2094 = vrot.slane %v2093, 2
    %v2095 = vadd.f32 %v2093, %v2094
    %v2096 = vrot.slane %v2095, 1
    %v2097 = vadd.f32 %v2095, %v2096
    %v2098 = vrcp.pop %v2084
    %v2099 = vmul.f32 %v2057, %v2098
    %v2100 = vmul.f32 %v2059, %v2098
    %v2101 = vmul.f32 %v2061, %v2098
    %v2102 = vmul.f32 %v2063, %v2098
    %v2103 = vrcp.pop %v2097
    %v2104 = vmul.f32 %v2065, %v2103
    %v2105 = vmul.f32 %v2067, %v2103
    %v2106 = vmul.f32 %v2069, %v2103
    %v2107 = vmul.f32 %v2071, %v2103
    %2108 = vxpose.xlu0.b32.start [1/16] %v2099, 128
    %2109 = vxpose.xlu0.b32.cont [2/16] %v2100, 128
    %2110 = vxpose.xlu0.b32.cont [3/16] %v2101, 128
    %2111 = vxpose.xlu0.b32.cont [4/16] %v2102, 128
    %2112 = vxpose.xlu0.b32.cont [5/16] 0.0, 128
    %2113 = vxpose.xlu0.b32.cont [6/16] 0.0, 128
    %2114 = vxpose.xlu0.b32.cont [7/16] 0.0, 128
    %2115 = vxpose.xlu0.b32.cont [8/16] 0.0, 128
    %2116 = vxpose.xlu0.b32.cont [9/16] 0.0, 128
    %2117 = vxpose.xlu0.b32.cont [10/16] 0.0, 128
    %2118 = vxpose.xlu0.b32.cont [11/16] 0.0, 128
    %2119 = vxpose.xlu0.b32.cont [12/16] 0.0, 128
    %2120 = vxpose.xlu0.b32.cont [13/16] 0.0, 128
    %2121 = vxpose.xlu0.b32.cont [14/16] 0.0, 128
    %2122 = vxpose.xlu0.b32.cont [15/16] 0.0, 128
    %2123 = vxpose.xlu0.b32.end [16/16] 0.0, 128
    %v2124 = vpop.trf.xlu0
    %v2125 = vpop.trf.xlu0
    %v2126 = vpop.trf.xlu0
    %v2127 = vpop.trf.xlu0
    %v2128 = vpop.trf.xlu0
    %v2129 = vpop.trf.xlu0
    %v2130 = vpop.trf.xlu0
    %v2131 = vpop.trf.xlu0
    %v2132 = vpop.trf.xlu0
    %v2133 = vpop.trf.xlu0
    %v2134 = vpop.trf.xlu0
    %v2135 = vpop.trf.xlu0
    %v2136 = vpop.trf.xlu0
    %v2137 = vpop.trf.xlu0
    %v2138 = vpop.trf.xlu0
    %v2139 = vpop.trf.xlu0
    %v2141 = vsel %vm207, %v2124, 0
    %v2144 = vsel %vm207, %v2125, 0
    %2146 = vmatprep.subr.mxu0 0.0
    %2147 = vmatpush1.msra.mxu0 0.0
    %2148 = vmatprep.subr.mxu0 0.0
    %2149 = vmatpush1.msra.mxu0 0.0
    %2150 = vmatprep.subr.mxu0 0.0
    %2151 = vmatpush1.msra.mxu0 0.0
    %2152 = vmatprep.subr.mxu0 0.0
    %2153 = vmatpush1.msra.mxu0 0.0
    %2154 = vmatprep.subr.mxu0 0.0
    %2155 = vmatpush1.msra.mxu0 0.0
    %2156 = vmatprep.subr.mxu0 0.0
    %2157 = vmatpush1.msra.mxu0 0.0
    %2158 = vmatprep.subr.mxu0 0.0
    %2159 = vmatpush1.msra.mxu0 0.0
    %2160 = vmatprep.subr.mxu0 0.0
    %2161 = vmatpush1.msra.mxu0 0.0
    %2162 = vmatprep.subr.mxu0 0.0
    %2163 = vmatpush1.msra.mxu0 0.0
    %2164 = vmatprep.subr.mxu0 0.0
    %2165 = vmatpush1.msra.mxu0 0.0
    %2166 = vmatprep.subr.mxu0 0.0
    %2167 = vmatpush1.msra.mxu0 0.0
    %2168 = vmatprep.subr.mxu0 0.0
    %2169 = vmatpush1.msra.mxu0 0.0
    %2170 = vmatprep.subr.mxu0 0.0
    %2171 = vmatpush1.msra.mxu0 %v215
    %2172 = vmatprep.subr.mxu0 0.0
    %2173 = vmatpush1.msra.mxu0 %v17
    %2174 = vmatprep.subr.mxu0 0.0
    %2175 = vmatpush1.msra.mxu0 %v16
    %2176 = vmatprep.subr.mxu0 0.0
    %2177 = vmatpush1.msra.mxu0 %v15
    %2178 = vmatprep.subr.mxu0 0.0
    %2179 = vmatpush2.msra.mxu0 0.0
    %2180 = vmatprep.subr.mxu0 0.0
    %2181 = vmatpush2.msra.mxu0 0.0
    %2182 = vmatprep.subr.mxu0 0.0
    %2183 = vmatpush2.msra.mxu0 0.0
    %2184 = vmatprep.subr.mxu0 0.0
    %2185 = vmatpush2.msra.mxu0 0.0
    %2186 = vmatprep.subr.mxu0 0.0
    %2187 = vmatpush2.msra.mxu0 0.0
    %2188 = vmatprep.subr.mxu0 0.0
    %2189 = vmatpush2.msra.mxu0 0.0
    %2190 = vmatprep.subr.mxu0 0.0
    %2191 = vmatpush2.msra.mxu0 0.0
    %2192 = vmatprep.subr.mxu0 0.0
    %2193 = vmatpush2.msra.mxu0 0.0
    %2194 = vmatprep.subr.mxu0 0.0
    %2195 = vmatpush2.msra.mxu0 0.0
    %2196 = vmatprep.subr.mxu0 0.0
    %2197 = vmatpush2.msra.mxu0 0.0
    %2198 = vmatprep.subr.mxu0 0.0
    %2199 = vmatpush2.msra.mxu0 0.0
    %2200 = vmatprep.subr.mxu0 0.0
    %2201 = vmatpush2.msra.mxu0 0.0
    %2202 = vmatprep.subr.mxu0 0.0
    %2203 = vmatpush2.msra.mxu0 0.0
    %2204 = vmatprep.subr.mxu0 0.0
    %2205 = vmatpush2.msra.mxu0 0.0
    %2206 = vmatprep.subr.mxu0 0.0
    %2207 = vmatpush2.msra.mxu0 0.0
    %2208 = vmatprep.subr.mxu0 0.0
    %2209 = vmatpush2.msra.mxu0 0.0
    %2210 = vmatprep.mubr.f32.mxu0 0.0
    %2211 = vmatmul.mubr.f32.gmra.mxu0 %v2141
    %v2212 = vpop.f32.mrf.mxu0
    %v2213 = vadd.f32 0.0, %v2212
    %v2214 = vpop.f32.mrf.mxu0
    %2215 = vmatprep.mubr.f32.mxu0 0.0
    %2216 = vmatmul.mubr.f32.gmra.mxu0 %v2144
    %v2217 = vpop.f32.mrf.mxu0
    %v2218 = vadd.f32 0.0, %v2217
    %v2219 = vpop.f32.mrf.mxu0
    %2220 = vdwg.mxu0
    %2221 = vxpose.xlu0.b32.start [1/16] %v2104, 128
    %2222 = vxpose.xlu0.b32.cont [2/16] %v2105, 128
    %2223 = vxpose.xlu0.b32.cont [3/16] %v2106, 128
    %2224 = vxpose.xlu0.b32.cont [4/16] %v2107, 128
    %2225 = vxpose.xlu0.b32.cont [5/16] 0.0, 128
    %2226 = vxpose.xlu0.b32.cont [6/16] 0.0, 128
    %2227 = vxpose.xlu0.b32.cont [7/16] 0.0, 128
    %2228 = vxpose.xlu0.b32.cont [8/16] 0.0, 128
    %2229 = vxpose.xlu0.b32.cont [9/16] 0.0, 128
    %2230 = vxpose.xlu0.b32.cont [10/16] 0.0, 128
    %2231 = vxpose.xlu0.b32.cont [11/16] 0.0, 128
    %2232 = vxpose.xlu0.b32.cont [12/16] 0.0, 128
    %2233 = vxpose.xlu0.b32.cont [13/16] 0.0, 128
    %2234 = vxpose.xlu0.b32.cont [14/16] 0.0, 128
    %2235 = vxpose.xlu0.b32.cont [15/16] 0.0, 128
    %2236 = vxpose.xlu0.b32.end [16/16] 0.0, 128
    %v2237 = vpop.trf.xlu0
    %v2238 = vpop.trf.xlu0
    %v2239 = vpop.trf.xlu0
    %v2240 = vpop.trf.xlu0
    %v2241 = vpop.trf.xlu0
    %v2242 = vpop.trf.xlu0
    %v2243 = vpop.trf.xlu0
    %v2244 = vpop.trf.xlu0
    %v2245 = vpop.trf.xlu0
    %v2246 = vpop.trf.xlu0
    %v2247 = vpop.trf.xlu0
    %v2248 = vpop.trf.xlu0
    %v2249 = vpop.trf.xlu0
    %v2250 = vpop.trf.xlu0
    %v2251 = vpop.trf.xlu0
    %v2252 = vpop.trf.xlu0
    %v2254 = vsel %vm207, %v2237, 0
    %v2257 = vsel %vm207, %v2238, 0
    %2259 = vmatprep.subr.mxu0 0.0
    %2260 = vmatpush1.msra.mxu0 0.0
    %2261 = vmatprep.subr.mxu0 0.0
    %2262 = vmatpush1.msra.mxu0 0.0
    %2263 = vmatprep.subr.mxu0 0.0
    %2264 = vmatpush1.msra.mxu0 0.0
    %2265 = vmatprep.subr.mxu0 0.0
    %2266 = vmatpush1.msra.mxu0 0.0
    %2267 = vmatprep.subr.mxu0 0.0
    %2268 = vmatpush1.msra.mxu0 0.0
    %2269 = vmatprep.subr.mxu0 0.0
    %2270 = vmatpush1.msra.mxu0 0.0
    %2271 = vmatprep.subr.mxu0 0.0
    %2272 = vmatpush1.msra.mxu0 0.0
    %2273 = vmatprep.subr.mxu0 0.0
    %2274 = vmatpush1.msra.mxu0 0.0
    %2275 = vmatprep.subr.mxu0 0.0
    %2276 = vmatpush1.msra.mxu0 0.0
    %2277 = vmatprep.subr.mxu0 0.0
    %2278 = vmatpush1.msra.mxu0 0.0
    %2279 = vmatprep.subr.mxu0 0.0
    %2280 = vmatpush1.msra.mxu0 0.0
    %2281 = vmatprep.subr.mxu0 0.0
    %2282 = vmatpush1.msra.mxu0 0.0
    %2283 = vmatprep.subr.mxu0 0.0
    %2284 = vmatpush1.msra.mxu0 %v298
    %2285 = vmatprep.subr.mxu0 0.0
    %2286 = vmatpush1.msra.mxu0 %v21
    %2287 = vmatprep.subr.mxu0 0.0
    %2288 = vmatpush1.msra.mxu0 %v20
    %2289 = vmatprep.subr.mxu0 0.0
    %2290 = vmatpush1.msra.mxu0 %v19
    %2291 = vmatprep.subr.mxu0 0.0
    %2292 = vmatpush2.msra.mxu0 0.0
    %2293 = vmatprep.subr.mxu0 0.0
    %2294 = vmatpush2.msra.mxu0 0.0
    %2295 = vmatprep.subr.mxu0 0.0
    %2296 = vmatpush2.msra.mxu0 0.0
    %2297 = vmatprep.subr.mxu0 0.0
    %2298 = vmatpush2.msra.mxu0 0.0
    %2299 = vmatprep.subr.mxu0 0.0
    %2300 = vmatpush2.msra.mxu0 0.0
    %2301 = vmatprep.subr.mxu0 0.0
    %2302 = vmatpush2.msra.mxu0 0.0
    %2303 = vmatprep.subr.mxu0 0.0
    %2304 = vmatpush2.msra.mxu0 0.0
    %2305 = vmatprep.subr.mxu0 0.0
    %2306 = vmatpush2.msra.mxu0 0.0
    %2307 = vmatprep.subr.mxu0 0.0
    %2308 = vmatpush2.msra.mxu0 0.0
    %2309 = vmatprep.subr.mxu0 0.0
    %2310 = vmatpush2.msra.mxu0 0.0
    %2311 = vmatprep.subr.mxu0 0.0
    %2312 = vmatpush2.msra.mxu0 0.0
    %2313 = vmatprep.subr.mxu0 0.0
    %2314 = vmatpush2.msra.mxu0 0.0
    %2315 = vmatprep.subr.mxu0 0.0
    %2316 = vmatpush2.msra.mxu0 0.0
    %2317 = vmatprep.subr.mxu0 0.0
    %2318 = vmatpush2.msra.mxu0 0.0
    %2319 = vmatprep.subr.mxu0 0.0
    %2320 = vmatpush2.msra.mxu0 0.0
    %2321 = vmatprep.subr.mxu0 0.0
    %2322 = vmatpush2.msra.mxu0 0.0
    %2323 = vmatprep.mubr.f32.mxu0 0.0
    %2324 = vmatmul.mubr.f32.gmra.mxu0 %v2254
    %v2325 = vpop.f32.mrf.mxu0
    %v2326 = vadd.f32 0.0, %v2325
    %v2327 = vpop.f32.mrf.mxu0
    %2328 = vmatprep.mubr.f32.mxu0 0.0
    %2329 = vmatmul.mubr.f32.gmra.mxu0 %v2257
    %v2330 = vpop.f32.mrf.mxu0
    %v2331 = vadd.f32 0.0, %v2330
    %v2332 = vpop.f32.mrf.mxu0
    %2333 = vdwg.mxu0
    %v2335 = vsel %vm144, %v2213, 0
    %v2338 = vsel %vm144, %v2218, 0
    %2340 = vmatprep.subr.mxu0 0.0
    %2341 = vmatpush1.xpose.msra.mxu0 0.0
    %2342 = vmatprep.subr.mxu0 0.0
    %2343 = vmatpush1.xpose.msra.mxu0 0.0
    %2344 = vmatprep.subr.mxu0 0.0
    %2345 = vmatpush1.xpose.msra.mxu0 0.0
    %2346 = vmatprep.subr.mxu0 0.0
    %2347 = vmatpush1.xpose.msra.mxu0 0.0
    %2348 = vmatprep.subr.mxu0 0.0
    %2349 = vmatpush1.xpose.msra.mxu0 0.0
    %2350 = vmatprep.subr.mxu0 0.0
    %2351 = vmatpush1.xpose.msra.mxu0 0.0
    %2352 = vmatprep.subr.mxu0 0.0
    %2353 = vmatpush1.xpose.msra.mxu0 0.0
    %2354 = vmatprep.subr.mxu0 0.0
    %2355 = vmatpush1.xpose.msra.mxu0 0.0
    %2356 = vmatprep.subr.mxu0 0.0
    %2357 = vmatpush1.xpose.msra.mxu0 0.0
    %2358 = vmatprep.subr.mxu0 0.0
    %2359 = vmatpush1.xpose.msra.mxu0 0.0
    %2360 = vmatprep.subr.mxu0 0.0
    %2361 = vmatpush1.xpose.msra.mxu0 0.0
    %2362 = vmatprep.subr.mxu0 0.0
    %2363 = vmatpush1.xpose.msra.mxu0 0.0
    %2364 = vmatprep.subr.mxu0 0.0
    %2365 = vmatpush1.xpose.msra.mxu0 0.0
    %2366 = vmatprep.subr.mxu0 0.0
    %2367 = vmatpush1.xpose.msra.mxu0 0.0
    %2368 = vmatprep.subr.mxu0 0.0
    %2369 = vmatpush1.xpose.msra.mxu0 %v2338
    %2370 = vmatprep.subr.mxu0 0.0
    %2371 = vmatpush1.xpose.msra.mxu0 %v2335
    %2372 = vmatprep.subr.mxu0 0.0
    %2373 = vmatpush2.xpose.msra.mxu0 0.0
    %2374 = vmatprep.subr.mxu0 0.0
    %2375 = vmatpush2.xpose.msra.mxu0 0.0
    %2376 = vmatprep.subr.mxu0 0.0
    %2377 = vmatpush2.xpose.msra.mxu0 0.0
    %2378 = vmatprep.subr.mxu0 0.0
    %2379 = vmatpush2.xpose.msra.mxu0 0.0
    %2380 = vmatprep.subr.mxu0 0.0
    %2381 = vmatpush2.xpose.msra.mxu0 0.0
    %2382 = vmatprep.subr.mxu0 0.0
    %2383 = vmatpush2.xpose.msra.mxu0 0.0
    %2384 = vmatprep.subr.mxu0 0.0
    %2385 = vmatpush2.xpose.msra.mxu0 0.0
    %2386 = vmatprep.subr.mxu0 0.0
    %2387 = vmatpush2.xpose.msra.mxu0 0.0
    %2388 = vmatprep.subr.mxu0 0.0
    %2389 = vmatpush2.xpose.msra.mxu0 0.0
    %2390 = vmatprep.subr.mxu0 0.0
    %2391 = vmatpush2.xpose.msra.mxu0 0.0
    %2392 = vmatprep.subr.mxu0 0.0
    %2393 = vmatpush2.xpose.msra.mxu0 0.0
    %2394 = vmatprep.subr.mxu0 0.0
    %2395 = vmatpush2.xpose.msra.mxu0 0.0
    %2396 = vmatprep.subr.mxu0 0.0
    %2397 = vmatpush2.xpose.msra.mxu0 0.0
    %2398 = vmatprep.subr.mxu0 0.0
    %2399 = vmatpush2.xpose.msra.mxu0 0.0
    %2400 = vmatprep.subr.mxu0 0.0
    %2401 = vmatpush2.xpose.msra.mxu0 0.0
    %2402 = vmatprep.subr.mxu0 0.0
    %2403 = vmatpush2.xpose.msra.mxu0 0.0
    %2404 = vmatprep.mubr.f32.mxu0 0.0
    %2405 = vmatmul.mubr.f32.gmra.mxu0 %v375
    %v2406 = vpop.f32.mrf.mxu0
    %v2407 = vadd.f32 0.0, %v2406
    %v2408 = vpop.f32.mrf.mxu0
    %2409 = vmatprep.mubr.f32.mxu0 0.0
    %2410 = vmatmul.mubr.f32.gmra.mxu0 %v377
    %v2411 = vpop.f32.mrf.mxu0
    %v2412 = vadd.f32 0.0, %v2411
    %v2413 = vpop.f32.mrf.mxu0
    %2414 = vmatprep.mubr.f32.mxu0 0.0
    %2415 = vmatmul.mubr.f32.gmra.mxu0 %v379
    %v2416 = vpop.f32.mrf.mxu0
    %v2417 = vadd.f32 0.0, %v2416
    %v2418 = vpop.f32.mrf.mxu0
    %2419 = vmatprep.mubr.f32.mxu0 0.0
    %2420 = vmatmul.mubr.f32.gmra.mxu0 %v381
    %v2421 = vpop.f32.mrf.mxu0
    %v2422 = vadd.f32 0.0, %v2421
    %v2423 = vpop.f32.mrf.mxu0
    %2424 = vdwg.mxu0
    %v2426 = vsel %vm144, %v2326, 0
    %v2429 = vsel %vm144, %v2331, 0
    %2431 = vmatprep.subr.mxu0 0.0
    %2432 = vmatpush1.xpose.msra.mxu0 0.0
    %2433 = vmatprep.subr.mxu0 0.0
    %2434 = vmatpush1.xpose.msra.mxu0 0.0
    %2435 = vmatprep.subr.mxu0 0.0
    %2436 = vmatpush1.xpose.msra.mxu0 0.0
    %2437 = vmatprep.subr.mxu0 0.0
    %2438 = vmatpush1.xpose.msra.mxu0 0.0
    %2439 = vmatprep.subr.mxu0 0.0
    %2440 = vmatpush1.xpose.msra.mxu0 0.0
    %2441 = vmatprep.subr.mxu0 0.0
    %2442 = vmatpush1.xpose.msra.mxu0 0.0
    %2443 = vmatprep.subr.mxu0 0.0
    %2444 = vmatpush1.xpose.msra.mxu0 0.0
    %2445 = vmatprep.subr.mxu0 0.0
    %2446 = vmatpush1.xpose.msra.mxu0 0.0
    %2447 = vmatprep.subr.mxu0 0.0
    %2448 = vmatpush1.xpose.msra.mxu0 0.0
    %2449 = vmatprep.subr.mxu0 0.0
    %2450 = vmatpush1.xpose.msra.mxu0 0.0
    %2451 = vmatprep.subr.mxu0 0.0
    %2452 = vmatpush1.xpose.msra.mxu0 0.0
    %2453 = vmatprep.subr.mxu0 0.0
    %2454 = vmatpush1.xpose.msra.mxu0 0.0
    %2455 = vmatprep.subr.mxu0 0.0
    %2456 = vmatpush1.xpose.msra.mxu0 0.0
    %2457 = vmatprep.subr.mxu0 0.0
    %2458 = vmatpush1.xpose.msra.mxu0 0.0
    %2459 = vmatprep.subr.mxu0 0.0
    %2460 = vmatpush1.xpose.msra.mxu0 %v2429
    %2461 = vmatprep.subr.mxu0 0.0
    %2462 = vmatpush1.xpose.msra.mxu0 %v2426
    %2463 = vmatprep.subr.mxu0 0.0
    %2464 = vmatpush2.xpose.msra.mxu0 0.0
    %2465 = vmatprep.subr.mxu0 0.0
    %2466 = vmatpush2.xpose.msra.mxu0 0.0
    %2467 = vmatprep.subr.mxu0 0.0
    %2468 = vmatpush2.xpose.msra.mxu0 0.0
    %2469 = vmatprep.subr.mxu0 0.0
    %2470 = vmatpush2.xpose.msra.mxu0 0.0
    %2471 = vmatprep.subr.mxu0 0.0
    %2472 = vmatpush2.xpose.msra.mxu0 0.0
    %2473 = vmatprep.subr.mxu0 0.0
    %2474 = vmatpush2.xpose.msra.mxu0 0.0
    %2475 = vmatprep.subr.mxu0 0.0
    %2476 = vmatpush2.xpose.msra.mxu0 0.0
    %2477 = vmatprep.subr.mxu0 0.0
    %2478 = vmatpush2.xpose.msra.mxu0 0.0
    %2479 = vmatprep.subr.mxu0 0.0
    %2480 = vmatpush2.xpose.msra.mxu0 0.0
    %2481 = vmatprep.subr.mxu0 0.0
    %2482 = vmatpush2.xpose.msra.mxu0 0.0
    %2483 = vmatprep.subr.mxu0 0.0
    %2484 = vmatpush2.xpose.msra.mxu0 0.0
    %2485 = vmatprep.subr.mxu0 0.0
    %2486 = vmatpush2.xpose.msra.mxu0 0.0
    %2487 = vmatprep.subr.mxu0 0.0
    %2488 = vmatpush2.xpose.msra.mxu0 0.0
    %2489 = vmatprep.subr.mxu0 0.0
    %2490 = vmatpush2.xpose.msra.mxu0 0.0
    %2491 = vmatprep.subr.mxu0 0.0
    %2492 = vmatpush2.xpose.msra.mxu0 0.0
    %2493 = vmatprep.subr.mxu0 0.0
    %2494 = vmatpush2.xpose.msra.mxu0 0.0
    %2495 = vmatprep.mubr.f32.mxu0 0.0
    %2496 = vmatmul.mubr.f32.gmra.mxu0 %v474
    %v2497 = vpop.f32.mrf.mxu0
    %v2498 = vadd.f32 0.0, %v2497
    %v2499 = vpop.f32.mrf.mxu0
    %2500 = vmatprep.mubr.f32.mxu0 0.0
    %2501 = vmatmul.mubr.f32.gmra.mxu0 %v476
    %v2502 = vpop.f32.mrf.mxu0
    %v2503 = vadd.f32 0.0, %v2502
    %v2504 = vpop.f32.mrf.mxu0
    %2505 = vmatprep.mubr.f32.mxu0 0.0
    %2506 = vmatmul.mubr.f32.gmra.mxu0 %v478
    %v2507 = vpop.f32.mrf.mxu0
    %v2508 = vadd.f32 0.0, %v2507
    %v2509 = vpop.f32.mrf.mxu0
    %2510 = vmatprep.mubr.f32.mxu0 0.0
    %2511 = vmatmul.mubr.f32.gmra.mxu0 %v480
    %v2512 = vpop.f32.mrf.mxu0
    %v2513 = vadd.f32 0.0, %v2512
    %v2514 = vpop.f32.mrf.mxu0
    %2515 = vdwg.mxu0
    %v2516 = vmul.f32 %v2213, %v2213
    %v2517 = vmul.f32 %v2218, %v2218
    %v2518 = vmul.f32 %v2326, %v2326
    %v2519 = vmul.f32 %v2331, %v2331
    %v2520 = vsel %vm144, %v2516, 0.0
    %2521 = vadd.xlane.f32.xlu0 %v2520
    %v2522 = vpop.xlane.xlu0 %2521
    %v2523 = vsel %vm580, %v2517, 0.0
    %2524 = vadd.xlane.f32.xlu0 %v2523
    %v2525 = vpop.xlane.xlu0 %2524
    %v2526 = vsel %vm144, %v2518, 0.0
    %2527 = vadd.xlane.f32.xlu0 %v2526
    %v2528 = vpop.xlane.xlu0 %2527
    %v2529 = vsel %vm580, %v2519, 0.0
    %2530 = vadd.xlane.f32.xlu0 %v2529
    %v2531 = vpop.xlane.xlu0 %2530
    %v2532 = vmul.f32 %v2407, 2.0
    %v2533 = vmul.f32 %v2412, 2.0
    %v2534 = vmul.f32 %v2417, 2.0
    %v2535 = vmul.f32 %v2422, 2.0
    %v2536 = vmul.f32 %v2498, 2.0
    %v2537 = vmul.f32 %v2503, 2.0
    %v2538 = vmul.f32 %v2508, 2.0
    %v2539 = vmul.f32 %v2513, 2.0
    %v2540 = vsub.f32 %v147, %v2532
    %v2541 = vsub.f32 %v150, %v2533
    %v2542 = vsub.f32 %v153, %v2534
    %v2543 = vsub.f32 %v157, %v2535
    %v2544 = vsub.f32 %v160, %v2536
    %v2545 = vsub.f32 %v163, %v2537
    %v2546 = vsub.f32 %v166, %v2538
    %v2547 = vsub.f32 %v169, %v2539
    %v2552 = vlaneseq
    %v2553 = vshrl.u32 %v2552, 7
    %v2554 = vsub.s32 %v171, %v2553
    %v2555 = vrot.slane %v2522, %v2554
    %v2556 = vlaneseq
    %v2557 = vshrl.u32 %v2556, 7
    %v2558 = vsub.s32 %v614, %v2557
    %v2559 = vrot.slane %v2525, %v2558
    %v2560 = vsel %vm619, %v2559, %v2555
    %v2561 = vlaneseq
    %v2562 = vshrl.u32 %v2561, 7
    %v2563 = vsub.s32 %v171, %v2562
    %v2564 = vrot.slane %v2528, %v2563
    %v2565 = vlaneseq
    %v2566 = vshrl.u32 %v2565, 7
    %v2567 = vsub.s32 %v614, %v2566
    %v2568 = vrot.slane %v2531, %v2567
    %v2569 = vsel %vm619, %v2568, %v2564
    %v2570 = vsel %vm630, %v2560, %v2560
    %v2571 = vsel %vm632, %v2560, %v2570
    %v2572 = vsel %vm634, %v2560, %v2571
    %v2573 = vsel %vm636, %v2560, %v2572
    %v2574 = vsel %vm638, %v2560, %v2573
    %v2575 = vsel %vm640, %v2560, %v2574
    %v2576 = vsel %vm630, %v2569, %v2569
    %v2577 = vsel %vm632, %v2569, %v2576
    %v2578 = vsel %vm634, %v2569, %v2577
    %v2579 = vsel %vm636, %v2569, %v2578
    %v2580 = vsel %vm638, %v2569, %v2579
    %v2581 = vsel %vm640, %v2569, %v2580
    %v2586 = vadd.f32 %v2540, %v2575
    %v2587 = vadd.f32 %v2541, %v2575
    %v2588 = vadd.f32 %v2542, %v2575
    %v2589 = vadd.f32 %v2543, %v2560
    %v2590 = vadd.f32 %v2544, %v2581
    %v2591 = vadd.f32 %v2545, %v2581
    %v2592 = vadd.f32 %v2546, %v2581
    %v2593 = vadd.f32 %v2547, %v2569
    %v2594 = vmax.f32 %v2586, 0.0
    %v2595 = vmax.f32 %v2587, 0.0
    %v2596 = vmax.f32 %v2588, 0.0
    %v2597 = vmax.f32 %v2589, 0.0
    %v2598 = vmax.f32 %v2590, 0.0
    %v2599 = vmax.f32 %v2591, 0.0
    %v2600 = vmax.f32 %v2592, 0.0
    %v2601 = vmax.f32 %v2593, 0.0
    %v2602 = vrsqrt.pop %v2594
    %v2603 = vmul.f32 %v2594, %v2602
    %vm2604 = vcmp.eq.f32.partialorder %v2594, inf
    %v2605 = vsel %vm2604, %v2594, %v2603
    %vm2606 = vcmp.eq.f32.partialorder %v2594, 0.0
    %v2607 = vand.u32 %v2594, 2147483648
    %v2608 = vsel %vm2606, %v2607, %v2605
    %v2609 = vrsqrt.pop %v2595
    %v2610 = vmul.f32 %v2595, %v2609
    %vm2611 = vcmp.eq.f32.partialorder %v2595, inf
    %v2612 = vsel %vm2611, %v2595, %v2610
    %vm2613 = vcmp.eq.f32.partialorder %v2595, 0.0
    %v2614 = vand.u32 %v2595, 2147483648
    %v2615 = vsel %vm2613, %v2614, %v2612
    %v2616 = vrsqrt.pop %v2596
    %v2617 = vmul.f32 %v2596, %v2616
    %vm2618 = vcmp.eq.f32.partialorder %v2596, inf
    %v2619 = vsel %vm2618, %v2596, %v2617
    %vm2620 = vcmp.eq.f32.partialorder %v2596, 0.0
    %v2621 = vand.u32 %v2596, 2147483648
    %v2622 = vsel %vm2620, %v2621, %v2619
    %v2623 = vrsqrt.pop %v2597
    %v2624 = vmul.f32 %v2597, %v2623
    %vm2625 = vcmp.eq.f32.partialorder %v2597, inf
    %v2626 = vsel %vm2625, %v2597, %v2624
    %vm2627 = vcmp.eq.f32.partialorder %v2597, 0.0
    %v2628 = vand.u32 %v2597, 2147483648
    %v2629 = vsel %vm2627, %v2628, %v2626
    %v2630 = vrsqrt.pop %v2598
    %v2631 = vmul.f32 %v2598, %v2630
    %vm2632 = vcmp.eq.f32.partialorder %v2598, inf
    %v2633 = vsel %vm2632, %v2598, %v2631
    %vm2634 = vcmp.eq.f32.partialorder %v2598, 0.0
    %v2635 = vand.u32 %v2598, 2147483648
    %v2636 = vsel %vm2634, %v2635, %v2633
    %v2637 = vrsqrt.pop %v2599
    %v2638 = vmul.f32 %v2599, %v2637
    %vm2639 = vcmp.eq.f32.partialorder %v2599, inf
    %v2640 = vsel %vm2639, %v2599, %v2638
    %vm2641 = vcmp.eq.f32.partialorder %v2599, 0.0
    %v2642 = vand.u32 %v2599, 2147483648
    %v2643 = vsel %vm2641, %v2642, %v2640
    %v2644 = vrsqrt.pop %v2600
    %v2645 = vmul.f32 %v2600, %v2644
    %vm2646 = vcmp.eq.f32.partialorder %v2600, inf
    %v2647 = vsel %vm2646, %v2600, %v2645
    %vm2648 = vcmp.eq.f32.partialorder %v2600, 0.0
    %v2649 = vand.u32 %v2600, 2147483648
    %v2650 = vsel %vm2648, %v2649, %v2647
    %v2651 = vrsqrt.pop %v2601
    %v2652 = vmul.f32 %v2601, %v2651
    %vm2653 = vcmp.eq.f32.partialorder %v2601, inf
    %v2654 = vsel %vm2653, %v2601, %v2652
    %vm2655 = vcmp.eq.f32.partialorder %v2601, 0.0
    %v2656 = vand.u32 %v2601, 2147483648
    %v2657 = vsel %vm2655, %v2656, %v2654
    %v2658 = vadd.f32 %v2608, %v128
    %v2659 = vadd.f32 %v2615, %v129
    %v2660 = vadd.f32 %v2622, %v130
    %v2661 = vadd.f32 %v2629, %v131
    %v2662 = vadd.f32 %v2636, %v132
    %v2663 = vadd.f32 %v2643, %v133
    %v2664 = vadd.f32 %v2650, %v134
    %v2665 = vadd.f32 %v2657, %v135
    %v2666 = vsel %vm732, %v2658, inf
    %v2667 = vsel %vm732, %v2659, inf
    %v2668 = vsel %vm732, %v2660, inf
    %v2669 = vmin.f32 %v2666, %v2668
    %v2670 = vsel %vm737, %v2661, inf
    %v2671 = vmin.f32 %v2667, %v2670
    %v2672 = vmin.f32 %v2669, %v2671
    %v2673 = vrot.slane %v2672, 4
    %v2674 = vmin.f32 %v2672, %v2673
    %v2675 = vrot.slane %v2674, 2
    %v2676 = vmin.f32 %v2674, %v2675
    %v2677 = vrot.slane %v2676, 1
    %v2678 = vmin.f32 %v2676, %v2677
    %v2679 = vsel %vm732, %v2662, inf
    %v2680 = vsel %vm732, %v2663, inf
    %v2681 = vsel %vm732, %v2664, inf
    %v2682 = vmin.f32 %v2679, %v2681
    %v2683 = vsel %vm737, %v2665, inf
    %v2684 = vmin.f32 %v2680, %v2683
    %v2685 = vmin.f32 %v2682, %v2684
    %v2686 = vrot.slane %v2685, 4
    %v2687 = vmin.f32 %v2685, %v2686
    %v2688 = vrot.slane %v2687, 2
    %v2689 = vmin.f32 %v2687, %v2688
    %v2690 = vrot.slane %v2689, 1
    %v2691 = vmin.f32 %v2689, %v2690
    %v2692 = vsub.f32 %v2678, %v2658
    %v2693 = vsub.f32 %v2678, %v2659
    %v2694 = vsub.f32 %v2678, %v2660
    %v2695 = vsub.f32 %v2678, %v2661
    %v2696 = vsub.f32 %v2691, %v2662
    %v2697 = vsub.f32 %v2691, %v2663
    %v2698 = vsub.f32 %v2691, %v2664
    %v2699 = vsub.f32 %v2691, %v2665
    %v2700 = vmul.f32 %v2692, 1.442695
    %v2701 = vpow.pop %v2700
    %v2702 = vmul.f32 %v2693, 1.442695
    %v2703 = vpow.pop %v2702
    %v2704 = vmul.f32 %v2694, 1.442695
    %v2705 = vpow.pop %v2704
    %v2706 = vmul.f32 %v2695, 1.442695
    %v2707 = vpow.pop %v2706
    %v2708 = vmul.f32 %v2696, 1.442695
    %v2709 = vpow.pop %v2708
    %v2710 = vmul.f32 %v2697, 1.442695
    %v2711 = vpow.pop %v2710
    %v2712 = vmul.f32 %v2698, 1.442695
    %v2713 = vpow.pop %v2712
    %v2714 = vmul.f32 %v2699, 1.442695
    %v2715 = vpow.pop %v2714
    %v2716 = vsel %vm732, %v2701, 0.0
    %v2717 = vsel %vm732, %v2703, 0.0
    %v2718 = vadd.f32 %v2716, %v2717
    %v2719 = vsel %vm732, %v2705, 0.0
    %v2720 = vadd.f32 %v2718, %v2719
    %v2721 = vsel %vm737, %v2707, 0.0
    %v2722 = vadd.f32 %v2720, %v2721
    %v2723 = vrot.slane %v2722, 4
    %v2724 = vadd.f32 %v2722, %v2723
    %v2725 = vrot.slane %v2724, 2
    %v2726 = vadd.f32 %v2724, %v2725
    %v2727 = vrot.slane %v2726, 1
    %v2728 = vadd.f32 %v2726, %v2727
    %v2729 = vsel %vm732, %v2709, 0.0
    %v2730 = vsel %vm732, %v2711, 0.0
    %v2731 = vadd.f32 %v2729, %v2730
    %v2732 = vsel %vm732, %v2713, 0.0
    %v2733 = vadd.f32 %v2731, %v2732
    %v2734 = vsel %vm737, %v2715, 0.0
    %v2735 = vadd.f32 %v2733, %v2734
    %v2736 = vrot.slane %v2735, 4
    %v2737 = vadd.f32 %v2735, %v2736
    %v2738 = vrot.slane %v2737, 2
    %v2739 = vadd.f32 %v2737, %v2738
    %v2740 = vrot.slane %v2739, 1
    %v2741 = vadd.f32 %v2739, %v2740
    %v2742 = vrcp.pop %v2728
    %v2743 = vmul.f32 %v2701, %v2742
    %v2744 = vmul.f32 %v2703, %v2742
    %v2745 = vmul.f32 %v2705, %v2742
    %v2746 = vmul.f32 %v2707, %v2742
    %v2747 = vrcp.pop %v2741
    %v2748 = vmul.f32 %v2709, %v2747
    %v2749 = vmul.f32 %v2711, %v2747
    %v2750 = vmul.f32 %v2713, %v2747
    %v2751 = vmul.f32 %v2715, %v2747
    %2752 = vxpose.xlu0.b32.start [1/16] %v2743, 128
    %2753 = vxpose.xlu0.b32.cont [2/16] %v2744, 128
    %2754 = vxpose.xlu0.b32.cont [3/16] %v2745, 128
    %2755 = vxpose.xlu0.b32.cont [4/16] %v2746, 128
    %2756 = vxpose.xlu0.b32.cont [5/16] 0.0, 128
    %2757 = vxpose.xlu0.b32.cont [6/16] 0.0, 128
    %2758 = vxpose.xlu0.b32.cont [7/16] 0.0, 128
    %2759 = vxpose.xlu0.b32.cont [8/16] 0.0, 128
    %2760 = vxpose.xlu0.b32.cont [9/16] 0.0, 128
    %2761 = vxpose.xlu0.b32.cont [10/16] 0.0, 128
    %2762 = vxpose.xlu0.b32.cont [11/16] 0.0, 128
    %2763 = vxpose.xlu0.b32.cont [12/16] 0.0, 128
    %2764 = vxpose.xlu0.b32.cont [13/16] 0.0, 128
    %2765 = vxpose.xlu0.b32.cont [14/16] 0.0, 128
    %2766 = vxpose.xlu0.b32.cont [15/16] 0.0, 128
    %2767 = vxpose.xlu0.b32.end [16/16] 0.0, 128
    %v2768 = vpop.trf.xlu0
    %v2769 = vpop.trf.xlu0
    %v2770 = vpop.trf.xlu0
    %v2771 = vpop.trf.xlu0
    %v2772 = vpop.trf.xlu0
    %v2773 = vpop.trf.xlu0
    %v2774 = vpop.trf.xlu0
    %v2775 = vpop.trf.xlu0
    %v2776 = vpop.trf.xlu0
    %v2777 = vpop.trf.xlu0
    %v2778 = vpop.trf.xlu0
    %v2779 = vpop.trf.xlu0
    %v2780 = vpop.trf.xlu0
    %v2781 = vpop.trf.xlu0
    %v2782 = vpop.trf.xlu0
    %v2783 = vpop.trf.xlu0
    %v2785 = vsel %vm207, %v2768, 0
    %v2788 = vsel %vm207, %v2769, 0
    %2790 = vmatprep.subr.mxu0 0.0
    %2791 = vmatpush1.msra.mxu0 0.0
    %2792 = vmatprep.subr.mxu0 0.0
    %2793 = vmatpush1.msra.mxu0 0.0
    %2794 = vmatprep.subr.mxu0 0.0
    %2795 = vmatpush1.msra.mxu0 0.0
    %2796 = vmatprep.subr.mxu0 0.0
    %2797 = vmatpush1.msra.mxu0 0.0
    %2798 = vmatprep.subr.mxu0 0.0
    %2799 = vmatpush1.msra.mxu0 0.0
    %2800 = vmatprep.subr.mxu0 0.0
    %2801 = vmatpush1.msra.mxu0 0.0
    %2802 = vmatprep.subr.mxu0 0.0
    %2803 = vmatpush1.msra.mxu0 0.0
    %2804 = vmatprep.subr.mxu0 0.0
    %2805 = vmatpush1.msra.mxu0 0.0
    %2806 = vmatprep.subr.mxu0 0.0
    %2807 = vmatpush1.msra.mxu0 0.0
    %2808 = vmatprep.subr.mxu0 0.0
    %2809 = vmatpush1.msra.mxu0 0.0
    %2810 = vmatprep.subr.mxu0 0.0
    %2811 = vmatpush1.msra.mxu0 0.0
    %2812 = vmatprep.subr.mxu0 0.0
    %2813 = vmatpush1.msra.mxu0 0.0
    %2814 = vmatprep.subr.mxu0 0.0
    %2815 = vmatpush1.msra.mxu0 %v215
    %2816 = vmatprep.subr.mxu0 0.0
    %2817 = vmatpush1.msra.mxu0 %v17
    %2818 = vmatprep.subr.mxu0 0.0
    %2819 = vmatpush1.msra.mxu0 %v16
    %2820 = vmatprep.subr.mxu0 0.0
    %2821 = vmatpush1.msra.mxu0 %v15
    %2822 = vmatprep.subr.mxu0 0.0
    %2823 = vmatpush2.msra.mxu0 0.0
    %2824 = vmatprep.subr.mxu0 0.0
    %2825 = vmatpush2.msra.mxu0 0.0
    %2826 = vmatprep.subr.mxu0 0.0
    %2827 = vmatpush2.msra.mxu0 0.0
    %2828 = vmatprep.subr.mxu0 0.0
    %2829 = vmatpush2.msra.mxu0 0.0
    %2830 = vmatprep.subr.mxu0 0.0
    %2831 = vmatpush2.msra.mxu0 0.0
    %2832 = vmatprep.subr.mxu0 0.0
    %2833 = vmatpush2.msra.mxu0 0.0
    %2834 = vmatprep.subr.mxu0 0.0
    %2835 = vmatpush2.msra.mxu0 0.0
    %2836 = vmatprep.subr.mxu0 0.0
    %2837 = vmatpush2.msra.mxu0 0.0
    %2838 = vmatprep.subr.mxu0 0.0
    %2839 = vmatpush2.msra.mxu0 0.0
    %2840 = vmatprep.subr.mxu0 0.0
    %2841 = vmatpush2.msra.mxu0 0.0
    %2842 = vmatprep.subr.mxu0 0.0
    %2843 = vmatpush2.msra.mxu0 0.0
    %2844 = vmatprep.subr.mxu0 0.0
    %2845 = vmatpush2.msra.mxu0 0.0
    %2846 = vmatprep.subr.mxu0 0.0
    %2847 = vmatpush2.msra.mxu0 0.0
    %2848 = vmatprep.subr.mxu0 0.0
    %2849 = vmatpush2.msra.mxu0 0.0
    %2850 = vmatprep.subr.mxu0 0.0
    %2851 = vmatpush2.msra.mxu0 0.0
    %2852 = vmatprep.subr.mxu0 0.0
    %2853 = vmatpush2.msra.mxu0 0.0
    %2854 = vmatprep.mubr.f32.mxu0 0.0
    %2855 = vmatmul.mubr.f32.gmra.mxu0 %v2785
    %v2856 = vpop.f32.mrf.mxu0
    %v2857 = vadd.f32 0.0, %v2856
    %v2858 = vpop.f32.mrf.mxu0
    %2859 = vmatprep.mubr.f32.mxu0 0.0
    %2860 = vmatmul.mubr.f32.gmra.mxu0 %v2788
    %v2861 = vpop.f32.mrf.mxu0
    %v2862 = vadd.f32 0.0, %v2861
    %v2863 = vpop.f32.mrf.mxu0
    %2864 = vdwg.mxu0
    %2865 = vxpose.xlu0.b32.start [1/16] %v2748, 128
    %2866 = vxpose.xlu0.b32.cont [2/16] %v2749, 128
    %2867 = vxpose.xlu0.b32.cont [3/16] %v2750, 128
    %2868 = vxpose.xlu0.b32.cont [4/16] %v2751, 128
    %2869 = vxpose.xlu0.b32.cont [5/16] 0.0, 128
    %2870 = vxpose.xlu0.b32.cont [6/16] 0.0, 128
    %2871 = vxpose.xlu0.b32.cont [7/16] 0.0, 128
    %2872 = vxpose.xlu0.b32.cont [8/16] 0.0, 128
    %2873 = vxpose.xlu0.b32.cont [9/16] 0.0, 128
    %2874 = vxpose.xlu0.b32.cont [10/16] 0.0, 128
    %2875 = vxpose.xlu0.b32.cont [11/16] 0.0, 128
    %2876 = vxpose.xlu0.b32.cont [12/16] 0.0, 128
    %2877 = vxpose.xlu0.b32.cont [13/16] 0.0, 128
    %2878 = vxpose.xlu0.b32.cont [14/16] 0.0, 128
    %2879 = vxpose.xlu0.b32.cont [15/16] 0.0, 128
    %2880 = vxpose.xlu0.b32.end [16/16] 0.0, 128
    %v2881 = vpop.trf.xlu0
    %v2882 = vpop.trf.xlu0
    %v2883 = vpop.trf.xlu0
    %v2884 = vpop.trf.xlu0
    %v2885 = vpop.trf.xlu0
    %v2886 = vpop.trf.xlu0
    %v2887 = vpop.trf.xlu0
    %v2888 = vpop.trf.xlu0
    %v2889 = vpop.trf.xlu0
    %v2890 = vpop.trf.xlu0
    %v2891 = vpop.trf.xlu0
    %v2892 = vpop.trf.xlu0
    %v2893 = vpop.trf.xlu0
    %v2894 = vpop.trf.xlu0
    %v2895 = vpop.trf.xlu0
    %v2896 = vpop.trf.xlu0
    %v2898 = vsel %vm207, %v2881, 0
    %v2901 = vsel %vm207, %v2882, 0
    %2903 = vmatprep.subr.mxu0 0.0
    %2904 = vmatpush1.msra.mxu0 0.0
    %2905 = vmatprep.subr.mxu0 0.0
    %2906 = vmatpush1.msra.mxu0 0.0
    %2907 = vmatprep.subr.mxu0 0.0
    %2908 = vmatpush1.msra.mxu0 0.0
    %2909 = vmatprep.subr.mxu0 0.0
    %2910 = vmatpush1.msra.mxu0 0.0
    %2911 = vmatprep.subr.mxu0 0.0
    %2912 = vmatpush1.msra.mxu0 0.0
    %2913 = vmatprep.subr.mxu0 0.0
    %2914 = vmatpush1.msra.mxu0 0.0
    %2915 = vmatprep.subr.mxu0 0.0
    %2916 = vmatpush1.msra.mxu0 0.0
    %2917 = vmatprep.subr.mxu0 0.0
    %2918 = vmatpush1.msra.mxu0 0.0
    %2919 = vmatprep.subr.mxu0 0.0
    %2920 = vmatpush1.msra.mxu0 0.0
    %2921 = vmatprep.subr.mxu0 0.0
    %2922 = vmatpush1.msra.mxu0 0.0
    %2923 = vmatprep.subr.mxu0 0.0
    %2924 = vmatpush1.msra.mxu0 0.0
    %2925 = vmatprep.subr.mxu0 0.0
    %2926 = vmatpush1.msra.mxu0 0.0
    %2927 = vmatprep.subr.mxu0 0.0
    %2928 = vmatpush1.msra.mxu0 %v298
    %2929 = vmatprep.subr.mxu0 0.0
    %2930 = vmatpush1.msra.mxu0 %v21
    %2931 = vmatprep.subr.mxu0 0.0
    %2932 = vmatpush1.msra.mxu0 %v20
    %2933 = vmatprep.subr.mxu0 0.0
    %2934 = vmatpush1.msra.mxu0 %v19
    %2935 = vmatprep.subr.mxu0 0.0
    %2936 = vmatpush2.msra.mxu0 0.0
    %2937 = vmatprep.subr.mxu0 0.0
    %2938 = vmatpush2.msra.mxu0 0.0
    %2939 = vmatprep.subr.mxu0 0.0
    %2940 = vmatpush2.msra.mxu0 0.0
    %2941 = vmatprep.subr.mxu0 0.0
    %2942 = vmatpush2.msra.mxu0 0.0
    %2943 = vmatprep.subr.mxu0 0.0
    %2944 = vmatpush2.msra.mxu0 0.0
    %2945 = vmatprep.subr.mxu0 0.0
    %2946 = vmatpush2.msra.mxu0 0.0
    %2947 = vmatprep.subr.mxu0 0.0
    %2948 = vmatpush2.msra.mxu0 0.0
    %2949 = vmatprep.subr.mxu0 0.0
    %2950 = vmatpush2.msra.mxu0 0.0
    %2951 = vmatprep.subr.mxu0 0.0
    %2952 = vmatpush2.msra.mxu0 0.0
    %2953 = vmatprep.subr.mxu0 0.0
    %2954 = vmatpush2.msra.mxu0 0.0
    %2955 = vmatprep.subr.mxu0 0.0
    %2956 = vmatpush2.msra.mxu0 0.0
    %2957 = vmatprep.subr.mxu0 0.0
    %2958 = vmatpush2.msra.mxu0 0.0
    %2959 = vmatprep.subr.mxu0 0.0
    %2960 = vmatpush2.msra.mxu0 0.0
    %2961 = vmatprep.subr.mxu0 0.0
    %2962 = vmatpush2.msra.mxu0 0.0
    %2963 = vmatprep.subr.mxu0 0.0
    %2964 = vmatpush2.msra.mxu0 0.0
    %2965 = vmatprep.subr.mxu0 0.0
    %2966 = vmatpush2.msra.mxu0 0.0
    %2967 = vmatprep.mubr.f32.mxu0 0.0
    %2968 = vmatmul.mubr.f32.gmra.mxu0 %v2898
    %v2969 = vpop.f32.mrf.mxu0
    %v2970 = vadd.f32 0.0, %v2969
    %v2971 = vpop.f32.mrf.mxu0
    %2972 = vmatprep.mubr.f32.mxu0 0.0
    %2973 = vmatmul.mubr.f32.gmra.mxu0 %v2901
    %v2974 = vpop.f32.mrf.mxu0
    %v2975 = vadd.f32 0.0, %v2974
    %v2976 = vpop.f32.mrf.mxu0
    %2977 = vdwg.mxu0
    %v2979 = vsel %vm144, %v2857, 0
    %v2982 = vsel %vm144, %v2862, 0
    %2984 = vmatprep.subr.mxu0 0.0
    %2985 = vmatpush1.xpose.msra.mxu0 0.0
    %2986 = vmatprep.subr.mxu0 0.0
    %2987 = vmatpush1.xpose.msra.mxu0 0.0
    %2988 = vmatprep.subr.mxu0 0.0
    %2989 = vmatpush1.xpose.msra.mxu0 0.0
    %2990 = vmatprep.subr.mxu0 0.0
    %2991 = vmatpush1.xpose.msra.mxu0 0.0
    %2992 = vmatprep.subr.mxu0 0.0
    %2993 = vmatpush1.xpose.msra.mxu0 0.0
    %2994 = vmatprep.subr.mxu0 0.0
    %2995 = vmatpush1.xpose.msra.mxu0 0.0
    %2996 = vmatprep.subr.mxu0 0.0
    %2997 = vmatpush1.xpose.msra.mxu0 0.0
    %2998 = vmatprep.subr.mxu0 0.0
    %2999 = vmatpush1.xpose.msra.mxu0 0.0
    %3000 = vmatprep.subr.mxu0 0.0
    %3001 = vmatpush1.xpose.msra.mxu0 0.0
    %3002 = vmatprep.subr.mxu0 0.0
    %3003 = vmatpush1.xpose.msra.mxu0 0.0
    %3004 = vmatprep.subr.mxu0 0.0
    %3005 = vmatpush1.xpose.msra.mxu0 0.0
    %3006 = vmatprep.subr.mxu0 0.0
    %3007 = vmatpush1.xpose.msra.mxu0 0.0
    %3008 = vmatprep.subr.mxu0 0.0
    %3009 = vmatpush1.xpose.msra.mxu0 0.0
    %3010 = vmatprep.subr.mxu0 0.0
    %3011 = vmatpush1.xpose.msra.mxu0 0.0
    %3012 = vmatprep.subr.mxu0 0.0
    %3013 = vmatpush1.xpose.msra.mxu0 %v2982
    %3014 = vmatprep.subr.mxu0 0.0
    %3015 = vmatpush1.xpose.msra.mxu0 %v2979
    %3016 = vmatprep.subr.mxu0 0.0
    %3017 = vmatpush2.xpose.msra.mxu0 0.0
    %3018 = vmatprep.subr.mxu0 0.0
    %3019 = vmatpush2.xpose.msra.mxu0 0.0
    %3020 = vmatprep.subr.mxu0 0.0
    %3021 = vmatpush2.xpose.msra.mxu0 0.0
    %3022 = vmatprep.subr.mxu0 0.0
    %3023 = vmatpush2.xpose.msra.mxu0 0.0
    %3024 = vmatprep.subr.mxu0 0.0
    %3025 = vmatpush2.xpose.msra.mxu0 0.0
    %3026 = vmatprep.subr.mxu0 0.0
    %3027 = vmatpush2.xpose.msra.mxu0 0.0
    %3028 = vmatprep.subr.mxu0 0.0
    %3029 = vmatpush2.xpose.msra.mxu0 0.0
    %3030 = vmatprep.subr.mxu0 0.0
    %3031 = vmatpush2.xpose.msra.mxu0 0.0
    %3032 = vmatprep.subr.mxu0 0.0
    %3033 = vmatpush2.xpose.msra.mxu0 0.0
    %3034 = vmatprep.subr.mxu0 0.0
    %3035 = vmatpush2.xpose.msra.mxu0 0.0
    %3036 = vmatprep.subr.mxu0 0.0
    %3037 = vmatpush2.xpose.msra.mxu0 0.0
    %3038 = vmatprep.subr.mxu0 0.0
    %3039 = vmatpush2.xpose.msra.mxu0 0.0
    %3040 = vmatprep.subr.mxu0 0.0
    %3041 = vmatpush2.xpose.msra.mxu0 0.0
    %3042 = vmatprep.subr.mxu0 0.0
    %3043 = vmatpush2.xpose.msra.mxu0 0.0
    %3044 = vmatprep.subr.mxu0 0.0
    %3045 = vmatpush2.xpose.msra.mxu0 0.0
    %3046 = vmatprep.subr.mxu0 0.0
    %3047 = vmatpush2.xpose.msra.mxu0 0.0
    %3048 = vmatprep.mubr.f32.mxu0 0.0
    %3049 = vmatmul.mubr.f32.gmra.mxu0 %v375
    %v3050 = vpop.f32.mrf.mxu0
    %v3051 = vadd.f32 0.0, %v3050
    %v3052 = vpop.f32.mrf.mxu0
    %3053 = vmatprep.mubr.f32.mxu0 0.0
    %3054 = vmatmul.mubr.f32.gmra.mxu0 %v377
    %v3055 = vpop.f32.mrf.mxu0
    %v3056 = vadd.f32 0.0, %v3055
    %v3057 = vpop.f32.mrf.mxu0
    %3058 = vmatprep.mubr.f32.mxu0 0.0
    %3059 = vmatmul.mubr.f32.gmra.mxu0 %v379
    %v3060 = vpop.f32.mrf.mxu0
    %v3061 = vadd.f32 0.0, %v3060
    %v3062 = vpop.f32.mrf.mxu0
    %3063 = vmatprep.mubr.f32.mxu0 0.0
    %3064 = vmatmul.mubr.f32.gmra.mxu0 %v381
    %v3065 = vpop.f32.mrf.mxu0
    %v3066 = vadd.f32 0.0, %v3065
    %v3067 = vpop.f32.mrf.mxu0
    %3068 = vdwg.mxu0
    %v3070 = vsel %vm144, %v2970, 0
    %v3073 = vsel %vm144, %v2975, 0
    %3075 = vmatprep.subr.mxu0 0.0
    %3076 = vmatpush1.xpose.msra.mxu0 0.0
    %3077 = vmatprep.subr.mxu0 0.0
    %3078 = vmatpush1.xpose.msra.mxu0 0.0
    %3079 = vmatprep.subr.mxu0 0.0
    %3080 = vmatpush1.xpose.msra.mxu0 0.0
    %3081 = vmatprep.subr.mxu0 0.0
    %3082 = vmatpush1.xpose.msra.mxu0 0.0
    %3083 = vmatprep.subr.mxu0 0.0
    %3084 = vmatpush1.xpose.msra.mxu0 0.0
    %3085 = vmatprep.subr.mxu0 0.0
    %3086 = vmatpush1.xpose.msra.mxu0 0.0
    %3087 = vmatprep.subr.mxu0 0.0
    %3088 = vmatpush1.xpose.msra.mxu0 0.0
    %3089 = vmatprep.subr.mxu0 0.0
    %3090 = vmatpush1.xpose.msra.mxu0 0.0
    %3091 = vmatprep.subr.mxu0 0.0
    %3092 = vmatpush1.xpose.msra.mxu0 0.0
    %3093 = vmatprep.subr.mxu0 0.0
    %3094 = vmatpush1.xpose.msra.mxu0 0.0
    %3095 = vmatprep.subr.mxu0 0.0
    %3096 = vmatpush1.xpose.msra.mxu0 0.0
    %3097 = vmatprep.subr.mxu0 0.0
    %3098 = vmatpush1.xpose.msra.mxu0 0.0
    %3099 = vmatprep.subr.mxu0 0.0
    %3100 = vmatpush1.xpose.msra.mxu0 0.0
    %3101 = vmatprep.subr.mxu0 0.0
    %3102 = vmatpush1.xpose.msra.mxu0 0.0
    %3103 = vmatprep.subr.mxu0 0.0
    %3104 = vmatpush1.xpose.msra.mxu0 %v3073
    %3105 = vmatprep.subr.mxu0 0.0
    %3106 = vmatpush1.xpose.msra.mxu0 %v3070
    %3107 = vmatprep.subr.mxu0 0.0
    %3108 = vmatpush2.xpose.msra.mxu0 0.0
    %3109 = vmatprep.subr.mxu0 0.0
    %3110 = vmatpush2.xpose.msra.mxu0 0.0
    %3111 = vmatprep.subr.mxu0 0.0
    %3112 = vmatpush2.xpose.msra.mxu0 0.0
    %3113 = vmatprep.subr.mxu0 0.0
    %3114 = vmatpush2.xpose.msra.mxu0 0.0
    %3115 = vmatprep.subr.mxu0 0.0
    %3116 = vmatpush2.xpose.msra.mxu0 0.0
    %3117 = vmatprep.subr.mxu0 0.0
    %3118 = vmatpush2.xpose.msra.mxu0 0.0
    %3119 = vmatprep.subr.mxu0 0.0
    %3120 = vmatpush2.xpose.msra.mxu0 0.0
    %3121 = vmatprep.subr.mxu0 0.0
    %3122 = vmatpush2.xpose.msra.mxu0 0.0
    %3123 = vmatprep.subr.mxu0 0.0
    %3124 = vmatpush2.xpose.msra.mxu0 0.0
    %3125 = vmatprep.subr.mxu0 0.0
    %3126 = vmatpush2.xpose.msra.mxu0 0.0
    %3127 = vmatprep.subr.mxu0 0.0
    %3128 = vmatpush2.xpose.msra.mxu0 0.0
    %3129 = vmatprep.subr.mxu0 0.0
    %3130 = vmatpush2.xpose.msra.mxu0 0.0
    %3131 = vmatprep.subr.mxu0 0.0
    %3132 = vmatpush2.xpose.msra.mxu0 0.0
    %3133 = vmatprep.subr.mxu0 0.0
    %3134 = vmatpush2.xpose.msra.mxu0 0.0
    %3135 = vmatprep.subr.mxu0 0.0
    %3136 = vmatpush2.xpose.msra.mxu0 0.0
    %3137 = vmatprep.subr.mxu0 0.0
    %3138 = vmatpush2.xpose.msra.mxu0 0.0
    %3139 = vmatprep.mubr.f32.mxu0 0.0
    %3140 = vmatmul.mubr.f32.gmra.mxu0 %v474
    %v3141 = vpop.f32.mrf.mxu0
    %v3142 = vadd.f32 0.0, %v3141
    %v3143 = vpop.f32.mrf.mxu0
    %3144 = vmatprep.mubr.f32.mxu0 0.0
    %3145 = vmatmul.mubr.f32.gmra.mxu0 %v476
    %v3146 = vpop.f32.mrf.mxu0
    %v3147 = vadd.f32 0.0, %v3146
    %v3148 = vpop.f32.mrf.mxu0
    %3149 = vmatprep.mubr.f32.mxu0 0.0
    %3150 = vmatmul.mubr.f32.gmra.mxu0 %v478
    %v3151 = vpop.f32.mrf.mxu0
    %v3152 = vadd.f32 0.0, %v3151
    %v3153 = vpop.f32.mrf.mxu0
    %3154 = vmatprep.mubr.f32.mxu0 0.0
    %3155 = vmatmul.mubr.f32.gmra.mxu0 %v480
    %v3156 = vpop.f32.mrf.mxu0
    %v3157 = vadd.f32 0.0, %v3156
    %v3158 = vpop.f32.mrf.mxu0
    %3159 = vdwg.mxu0
    %v3160 = vmul.f32 %v2857, %v2857
    %v3161 = vmul.f32 %v2862, %v2862
    %v3162 = vmul.f32 %v2970, %v2970
    %v3163 = vmul.f32 %v2975, %v2975
    %v3164 = vsel %vm144, %v3160, 0.0
    %3165 = vadd.xlane.f32.xlu0 %v3164
    %v3166 = vpop.xlane.xlu0 %3165
    %v3167 = vsel %vm580, %v3161, 0.0
    %3168 = vadd.xlane.f32.xlu0 %v3167
    %v3169 = vpop.xlane.xlu0 %3168
    %v3170 = vsel %vm144, %v3162, 0.0
    %3171 = vadd.xlane.f32.xlu0 %v3170
    %v3172 = vpop.xlane.xlu0 %3171
    %v3173 = vsel %vm580, %v3163, 0.0
    %3174 = vadd.xlane.f32.xlu0 %v3173
    %v3175 = vpop.xlane.xlu0 %3174
    %v3176 = vmul.f32 %v3051, 2.0
    %v3177 = vmul.f32 %v3056, 2.0
    %v3178 = vmul.f32 %v3061, 2.0
    %v3179 = vmul.f32 %v3066, 2.0
    %v3180 = vmul.f32 %v3142, 2.0
    %v3181 = vmul.f32 %v3147, 2.0
    %v3182 = vmul.f32 %v3152, 2.0
    %v3183 = vmul.f32 %v3157, 2.0
    %v3184 = vsub.f32 %v147, %v3176
    %v3185 = vsub.f32 %v150, %v3177
    %v3186 = vsub.f32 %v153, %v3178
    %v3187 = vsub.f32 %v157, %v3179
    %v3188 = vsub.f32 %v160, %v3180
    %v3189 = vsub.f32 %v163, %v3181
    %v3190 = vsub.f32 %v166, %v3182
    %v3191 = vsub.f32 %v169, %v3183
    %v3196 = vlaneseq
    %v3197 = vshrl.u32 %v3196, 7
    %v3198 = vsub.s32 %v171, %v3197
    %v3199 = vrot.slane %v3166, %v3198
    %v3200 = vlaneseq
    %v3201 = vshrl.u32 %v3200, 7
    %v3202 = vsub.s32 %v614, %v3201
    %v3203 = vrot.slane %v3169, %v3202
    %v3204 = vsel %vm619, %v3203, %v3199
    %v3205 = vlaneseq
    %v3206 = vshrl.u32 %v3205, 7
    %v3207 = vsub.s32 %v171, %v3206
    %v3208 = vrot.slane %v3172, %v3207
    %v3209 = vlaneseq
    %v3210 = vshrl.u32 %v3209, 7
    %v3211 = vsub.s32 %v614, %v3210
    %v3212 = vrot.slane %v3175, %v3211
    %v3213 = vsel %vm619, %v3212, %v3208
    %v3214 = vsel %vm630, %v3204, %v3204
    %v3215 = vsel %vm632, %v3204, %v3214
    %v3216 = vsel %vm634, %v3204, %v3215
    %v3217 = vsel %vm636, %v3204, %v3216
    %v3218 = vsel %vm638, %v3204, %v3217
    %v3219 = vsel %vm640, %v3204, %v3218
    %v3220 = vsel %vm630, %v3213, %v3213
    %v3221 = vsel %vm632, %v3213, %v3220
    %v3222 = vsel %vm634, %v3213, %v3221
    %v3223 = vsel %vm636, %v3213, %v3222
    %v3224 = vsel %vm638, %v3213, %v3223
    %v3225 = vsel %vm640, %v3213, %v3224
    %v3230 = vadd.f32 %v3184, %v3219
    %v3231 = vadd.f32 %v3185, %v3219
    %v3232 = vadd.f32 %v3186, %v3219
    %v3233 = vadd.f32 %v3187, %v3204
    %v3234 = vadd.f32 %v3188, %v3225
    %v3235 = vadd.f32 %v3189, %v3225
    %v3236 = vadd.f32 %v3190, %v3225
    %v3237 = vadd.f32 %v3191, %v3213
    %v3238 = vmax.f32 %v3230, 0.0
    %v3239 = vmax.f32 %v3231, 0.0
    %v3240 = vmax.f32 %v3232, 0.0
    %v3241 = vmax.f32 %v3233, 0.0
    %v3242 = vmax.f32 %v3234, 0.0
    %v3243 = vmax.f32 %v3235, 0.0
    %v3244 = vmax.f32 %v3236, 0.0
    %v3245 = vmax.f32 %v3237, 0.0
    %v3246 = vrsqrt.pop %v3238
    %v3247 = vmul.f32 %v3238, %v3246
    %vm3248 = vcmp.eq.f32.partialorder %v3238, inf
    %v3249 = vsel %vm3248, %v3238, %v3247
    %vm3250 = vcmp.eq.f32.partialorder %v3238, 0.0
    %v3251 = vand.u32 %v3238, 2147483648
    %v3252 = vsel %vm3250, %v3251, %v3249
    %v3253 = vrsqrt.pop %v3239
    %v3254 = vmul.f32 %v3239, %v3253
    %vm3255 = vcmp.eq.f32.partialorder %v3239, inf
    %v3256 = vsel %vm3255, %v3239, %v3254
    %vm3257 = vcmp.eq.f32.partialorder %v3239, 0.0
    %v3258 = vand.u32 %v3239, 2147483648
    %v3259 = vsel %vm3257, %v3258, %v3256
    %v3260 = vrsqrt.pop %v3240
    %v3261 = vmul.f32 %v3240, %v3260
    %vm3262 = vcmp.eq.f32.partialorder %v3240, inf
    %v3263 = vsel %vm3262, %v3240, %v3261
    %vm3264 = vcmp.eq.f32.partialorder %v3240, 0.0
    %v3265 = vand.u32 %v3240, 2147483648
    %v3266 = vsel %vm3264, %v3265, %v3263
    %v3267 = vrsqrt.pop %v3241
    %v3268 = vmul.f32 %v3241, %v3267
    %vm3269 = vcmp.eq.f32.partialorder %v3241, inf
    %v3270 = vsel %vm3269, %v3241, %v3268
    %vm3271 = vcmp.eq.f32.partialorder %v3241, 0.0
    %v3272 = vand.u32 %v3241, 2147483648
    %v3273 = vsel %vm3271, %v3272, %v3270
    %v3274 = vrsqrt.pop %v3242
    %v3275 = vmul.f32 %v3242, %v3274
    %vm3276 = vcmp.eq.f32.partialorder %v3242, inf
    %v3277 = vsel %vm3276, %v3242, %v3275
    %vm3278 = vcmp.eq.f32.partialorder %v3242, 0.0
    %v3279 = vand.u32 %v3242, 2147483648
    %v3280 = vsel %vm3278, %v3279, %v3277
    %v3281 = vrsqrt.pop %v3243
    %v3282 = vmul.f32 %v3243, %v3281
    %vm3283 = vcmp.eq.f32.partialorder %v3243, inf
    %v3284 = vsel %vm3283, %v3243, %v3282
    %vm3285 = vcmp.eq.f32.partialorder %v3243, 0.0
    %v3286 = vand.u32 %v3243, 2147483648
    %v3287 = vsel %vm3285, %v3286, %v3284
    %v3288 = vrsqrt.pop %v3244
    %v3289 = vmul.f32 %v3244, %v3288
    %vm3290 = vcmp.eq.f32.partialorder %v3244, inf
    %v3291 = vsel %vm3290, %v3244, %v3289
    %vm3292 = vcmp.eq.f32.partialorder %v3244, 0.0
    %v3293 = vand.u32 %v3244, 2147483648
    %v3294 = vsel %vm3292, %v3293, %v3291
    %v3295 = vrsqrt.pop %v3245
    %v3296 = vmul.f32 %v3245, %v3295
    %vm3297 = vcmp.eq.f32.partialorder %v3245, inf
    %v3298 = vsel %vm3297, %v3245, %v3296
    %vm3299 = vcmp.eq.f32.partialorder %v3245, 0.0
    %v3300 = vand.u32 %v3245, 2147483648
    %v3301 = vsel %vm3299, %v3300, %v3298
    %v3302 = vadd.f32 %v3252, %v128
    %v3303 = vadd.f32 %v3259, %v129
    %v3304 = vadd.f32 %v3266, %v130
    %v3305 = vadd.f32 %v3273, %v131
    %v3306 = vadd.f32 %v3280, %v132
    %v3307 = vadd.f32 %v3287, %v133
    %v3308 = vadd.f32 %v3294, %v134
    %v3309 = vadd.f32 %v3301, %v135
    %v3310 = vsel %vm732, %v3302, inf
    %v3311 = vsel %vm732, %v3303, inf
    %v3312 = vsel %vm732, %v3304, inf
    %v3313 = vmin.f32 %v3310, %v3312
    %v3314 = vsel %vm737, %v3305, inf
    %v3315 = vmin.f32 %v3311, %v3314
    %v3316 = vmin.f32 %v3313, %v3315
    %v3317 = vrot.slane %v3316, 4
    %v3318 = vmin.f32 %v3316, %v3317
    %v3319 = vrot.slane %v3318, 2
    %v3320 = vmin.f32 %v3318, %v3319
    %v3321 = vrot.slane %v3320, 1
    %v3322 = vmin.f32 %v3320, %v3321
    %v3323 = vsel %vm732, %v3306, inf
    %v3324 = vsel %vm732, %v3307, inf
    %v3325 = vsel %vm732, %v3308, inf
    %v3326 = vmin.f32 %v3323, %v3325
    %v3327 = vsel %vm737, %v3309, inf
    %v3328 = vmin.f32 %v3324, %v3327
    %v3329 = vmin.f32 %v3326, %v3328
    %v3330 = vrot.slane %v3329, 4
    %v3331 = vmin.f32 %v3329, %v3330
    %v3332 = vrot.slane %v3331, 2
    %v3333 = vmin.f32 %v3331, %v3332
    %v3334 = vrot.slane %v3333, 1
    %v3335 = vmin.f32 %v3333, %v3334
    %v3336 = vsub.f32 %v3322, %v3302
    %v3337 = vsub.f32 %v3322, %v3303
    %v3338 = vsub.f32 %v3322, %v3304
    %v3339 = vsub.f32 %v3322, %v3305
    %v3340 = vsub.f32 %v3335, %v3306
    %v3341 = vsub.f32 %v3335, %v3307
    %v3342 = vsub.f32 %v3335, %v3308
    %v3343 = vsub.f32 %v3335, %v3309
    %v3344 = vmul.f32 %v3336, 1.442695
    %v3345 = vpow.pop %v3344
    %v3346 = vmul.f32 %v3337, 1.442695
    %v3347 = vpow.pop %v3346
    %v3348 = vmul.f32 %v3338, 1.442695
    %v3349 = vpow.pop %v3348
    %v3350 = vmul.f32 %v3339, 1.442695
    %v3351 = vpow.pop %v3350
    %v3352 = vmul.f32 %v3340, 1.442695
    %v3353 = vpow.pop %v3352
    %v3354 = vmul.f32 %v3341, 1.442695
    %v3355 = vpow.pop %v3354
    %v3356 = vmul.f32 %v3342, 1.442695
    %v3357 = vpow.pop %v3356
    %v3358 = vmul.f32 %v3343, 1.442695
    %v3359 = vpow.pop %v3358
    %v3360 = vsel %vm732, %v3345, 0.0
    %v3361 = vsel %vm732, %v3347, 0.0
    %v3362 = vadd.f32 %v3360, %v3361
    %v3363 = vsel %vm732, %v3349, 0.0
    %v3364 = vadd.f32 %v3362, %v3363
    %v3365 = vsel %vm737, %v3351, 0.0
    %v3366 = vadd.f32 %v3364, %v3365
    %v3367 = vrot.slane %v3366, 4
    %v3368 = vadd.f32 %v3366, %v3367
    %v3369 = vrot.slane %v3368, 2
    %v3370 = vadd.f32 %v3368, %v3369
    %v3371 = vrot.slane %v3370, 1
    %v3372 = vadd.f32 %v3370, %v3371
    %v3373 = vsel %vm732, %v3353, 0.0
    %v3374 = vsel %vm732, %v3355, 0.0
    %v3375 = vadd.f32 %v3373, %v3374
    %v3376 = vsel %vm732, %v3357, 0.0
    %v3377 = vadd.f32 %v3375, %v3376
    %v3378 = vsel %vm737, %v3359, 0.0
    %v3379 = vadd.f32 %v3377, %v3378
    %v3380 = vrot.slane %v3379, 4
    %v3381 = vadd.f32 %v3379, %v3380
    %v3382 = vrot.slane %v3381, 2
    %v3383 = vadd.f32 %v3381, %v3382
    %v3384 = vrot.slane %v3383, 1
    %v3385 = vadd.f32 %v3383, %v3384
    %v3386 = vrcp.pop %v3372
    %v3387 = vmul.f32 %v3345, %v3386
    %v3388 = vmul.f32 %v3347, %v3386
    %v3389 = vmul.f32 %v3349, %v3386
    %v3390 = vmul.f32 %v3351, %v3386
    %v3391 = vrcp.pop %v3385
    %v3392 = vmul.f32 %v3353, %v3391
    %v3393 = vmul.f32 %v3355, %v3391
    %v3394 = vmul.f32 %v3357, %v3391
    %v3395 = vmul.f32 %v3359, %v3391
    %3396 = vxpose.xlu0.b32.start [1/16] %v3387, 128
    %3397 = vxpose.xlu0.b32.cont [2/16] %v3388, 128
    %3398 = vxpose.xlu0.b32.cont [3/16] %v3389, 128
    %3399 = vxpose.xlu0.b32.cont [4/16] %v3390, 128
    %3400 = vxpose.xlu0.b32.cont [5/16] 0.0, 128
    %3401 = vxpose.xlu0.b32.cont [6/16] 0.0, 128
    %3402 = vxpose.xlu0.b32.cont [7/16] 0.0, 128
    %3403 = vxpose.xlu0.b32.cont [8/16] 0.0, 128
    %3404 = vxpose.xlu0.b32.cont [9/16] 0.0, 128
    %3405 = vxpose.xlu0.b32.cont [10/16] 0.0, 128
    %3406 = vxpose.xlu0.b32.cont [11/16] 0.0, 128
    %3407 = vxpose.xlu0.b32.cont [12/16] 0.0, 128
    %3408 = vxpose.xlu0.b32.cont [13/16] 0.0, 128
    %3409 = vxpose.xlu0.b32.cont [14/16] 0.0, 128
    %3410 = vxpose.xlu0.b32.cont [15/16] 0.0, 128
    %3411 = vxpose.xlu0.b32.end [16/16] 0.0, 128
    %v3412 = vpop.trf.xlu0
    %v3413 = vpop.trf.xlu0
    %v3414 = vpop.trf.xlu0
    %v3415 = vpop.trf.xlu0
    %v3416 = vpop.trf.xlu0
    %v3417 = vpop.trf.xlu0
    %v3418 = vpop.trf.xlu0
    %v3419 = vpop.trf.xlu0
    %v3420 = vpop.trf.xlu0
    %v3421 = vpop.trf.xlu0
    %v3422 = vpop.trf.xlu0
    %v3423 = vpop.trf.xlu0
    %v3424 = vpop.trf.xlu0
    %v3425 = vpop.trf.xlu0
    %v3426 = vpop.trf.xlu0
    %v3427 = vpop.trf.xlu0
    %v3429 = vsel %vm207, %v3412, 0
    %v3432 = vsel %vm207, %v3413, 0
    %3434 = vmatprep.subr.mxu0 0.0
    %3435 = vmatpush1.msra.mxu0 0.0
    %3436 = vmatprep.subr.mxu0 0.0
    %3437 = vmatpush1.msra.mxu0 0.0
    %3438 = vmatprep.subr.mxu0 0.0
    %3439 = vmatpush1.msra.mxu0 0.0
    %3440 = vmatprep.subr.mxu0 0.0
    %3441 = vmatpush1.msra.mxu0 0.0
    %3442 = vmatprep.subr.mxu0 0.0
    %3443 = vmatpush1.msra.mxu0 0.0
    %3444 = vmatprep.subr.mxu0 0.0
    %3445 = vmatpush1.msra.mxu0 0.0
    %3446 = vmatprep.subr.mxu0 0.0
    %3447 = vmatpush1.msra.mxu0 0.0
    %3448 = vmatprep.subr.mxu0 0.0
    %3449 = vmatpush1.msra.mxu0 0.0
    %3450 = vmatprep.subr.mxu0 0.0
    %3451 = vmatpush1.msra.mxu0 0.0
    %3452 = vmatprep.subr.mxu0 0.0
    %3453 = vmatpush1.msra.mxu0 0.0
    %3454 = vmatprep.subr.mxu0 0.0
    %3455 = vmatpush1.msra.mxu0 0.0
    %3456 = vmatprep.subr.mxu0 0.0
    %3457 = vmatpush1.msra.mxu0 0.0
    %3458 = vmatprep.subr.mxu0 0.0
    %3459 = vmatpush1.msra.mxu0 %v215
    %3460 = vmatprep.subr.mxu0 0.0
    %3461 = vmatpush1.msra.mxu0 %v17
    %3462 = vmatprep.subr.mxu0 0.0
    %3463 = vmatpush1.msra.mxu0 %v16
    %3464 = vmatprep.subr.mxu0 0.0
    %3465 = vmatpush1.msra.mxu0 %v15
    %3466 = vmatprep.subr.mxu0 0.0
    %3467 = vmatpush2.msra.mxu0 0.0
    %3468 = vmatprep.subr.mxu0 0.0
    %3469 = vmatpush2.msra.mxu0 0.0
    %3470 = vmatprep.subr.mxu0 0.0
    %3471 = vmatpush2.msra.mxu0 0.0
    %3472 = vmatprep.subr.mxu0 0.0
    %3473 = vmatpush2.msra.mxu0 0.0
    %3474 = vmatprep.subr.mxu0 0.0
    %3475 = vmatpush2.msra.mxu0 0.0
    %3476 = vmatprep.subr.mxu0 0.0
    %3477 = vmatpush2.msra.mxu0 0.0
    %3478 = vmatprep.subr.mxu0 0.0
    %3479 = vmatpush2.msra.mxu0 0.0
    %3480 = vmatprep.subr.mxu0 0.0
    %3481 = vmatpush2.msra.mxu0 0.0
    %3482 = vmatprep.subr.mxu0 0.0
    %3483 = vmatpush2.msra.mxu0 0.0
    %3484 = vmatprep.subr.mxu0 0.0
    %3485 = vmatpush2.msra.mxu0 0.0
    %3486 = vmatprep.subr.mxu0 0.0
    %3487 = vmatpush2.msra.mxu0 0.0
    %3488 = vmatprep.subr.mxu0 0.0
    %3489 = vmatpush2.msra.mxu0 0.0
    %3490 = vmatprep.subr.mxu0 0.0
    %3491 = vmatpush2.msra.mxu0 0.0
    %3492 = vmatprep.subr.mxu0 0.0
    %3493 = vmatpush2.msra.mxu0 0.0
    %3494 = vmatprep.subr.mxu0 0.0
    %3495 = vmatpush2.msra.mxu0 0.0
    %3496 = vmatprep.subr.mxu0 0.0
    %3497 = vmatpush2.msra.mxu0 0.0
    %3498 = vmatprep.mubr.f32.mxu0 0.0
    %3499 = vmatmul.mubr.f32.gmra.mxu0 %v3429
    %v3500 = vpop.f32.mrf.mxu0
    %v3501 = vadd.f32 0.0, %v3500
    %v3502 = vpop.f32.mrf.mxu0
    %3503 = vmatprep.mubr.f32.mxu0 0.0
    %3504 = vmatmul.mubr.f32.gmra.mxu0 %v3432
    %v3505 = vpop.f32.mrf.mxu0
    %v3506 = vadd.f32 0.0, %v3505
    %v3507 = vpop.f32.mrf.mxu0
    %3508 = vdwg.mxu0
    %3509 = vxpose.xlu0.b32.start [1/16] %v3392, 128
    %3510 = vxpose.xlu0.b32.cont [2/16] %v3393, 128
    %3511 = vxpose.xlu0.b32.cont [3/16] %v3394, 128
    %3512 = vxpose.xlu0.b32.cont [4/16] %v3395, 128
    %3513 = vxpose.xlu0.b32.cont [5/16] 0.0, 128
    %3514 = vxpose.xlu0.b32.cont [6/16] 0.0, 128
    %3515 = vxpose.xlu0.b32.cont [7/16] 0.0, 128
    %3516 = vxpose.xlu0.b32.cont [8/16] 0.0, 128
    %3517 = vxpose.xlu0.b32.cont [9/16] 0.0, 128
    %3518 = vxpose.xlu0.b32.cont [10/16] 0.0, 128
    %3519 = vxpose.xlu0.b32.cont [11/16] 0.0, 128
    %3520 = vxpose.xlu0.b32.cont [12/16] 0.0, 128
    %3521 = vxpose.xlu0.b32.cont [13/16] 0.0, 128
    %3522 = vxpose.xlu0.b32.cont [14/16] 0.0, 128
    %3523 = vxpose.xlu0.b32.cont [15/16] 0.0, 128
    %3524 = vxpose.xlu0.b32.end [16/16] 0.0, 128
    %v3525 = vpop.trf.xlu0
    %v3526 = vpop.trf.xlu0
    %v3527 = vpop.trf.xlu0
    %v3528 = vpop.trf.xlu0
    %v3529 = vpop.trf.xlu0
    %v3530 = vpop.trf.xlu0
    %v3531 = vpop.trf.xlu0
    %v3532 = vpop.trf.xlu0
    %v3533 = vpop.trf.xlu0
    %v3534 = vpop.trf.xlu0
    %v3535 = vpop.trf.xlu0
    %v3536 = vpop.trf.xlu0
    %v3537 = vpop.trf.xlu0
    %v3538 = vpop.trf.xlu0
    %v3539 = vpop.trf.xlu0
    %v3540 = vpop.trf.xlu0
    %v3542 = vsel %vm207, %v3525, 0
    %v3545 = vsel %vm207, %v3526, 0
    %3547 = vmatprep.subr.mxu0 0.0
    %3548 = vmatpush1.msra.mxu0 0.0
    %3549 = vmatprep.subr.mxu0 0.0
    %3550 = vmatpush1.msra.mxu0 0.0
    %3551 = vmatprep.subr.mxu0 0.0
    %3552 = vmatpush1.msra.mxu0 0.0
    %3553 = vmatprep.subr.mxu0 0.0
    %3554 = vmatpush1.msra.mxu0 0.0
    %3555 = vmatprep.subr.mxu0 0.0
    %3556 = vmatpush1.msra.mxu0 0.0
    %3557 = vmatprep.subr.mxu0 0.0
    %3558 = vmatpush1.msra.mxu0 0.0
    %3559 = vmatprep.subr.mxu0 0.0
    %3560 = vmatpush1.msra.mxu0 0.0
    %3561 = vmatprep.subr.mxu0 0.0
    %3562 = vmatpush1.msra.mxu0 0.0
    %3563 = vmatprep.subr.mxu0 0.0
    %3564 = vmatpush1.msra.mxu0 0.0
    %3565 = vmatprep.subr.mxu0 0.0
    %3566 = vmatpush1.msra.mxu0 0.0
    %3567 = vmatprep.subr.mxu0 0.0
    %3568 = vmatpush1.msra.mxu0 0.0
    %3569 = vmatprep.subr.mxu0 0.0
    %3570 = vmatpush1.msra.mxu0 0.0
    %3571 = vmatprep.subr.mxu0 0.0
    %3572 = vmatpush1.msra.mxu0 %v298
    %3573 = vmatprep.subr.mxu0 0.0
    %3574 = vmatpush1.msra.mxu0 %v21
    %3575 = vmatprep.subr.mxu0 0.0
    %3576 = vmatpush1.msra.mxu0 %v20
    %3577 = vmatprep.subr.mxu0 0.0
    %3578 = vmatpush1.msra.mxu0 %v19
    %3579 = vmatprep.subr.mxu0 0.0
    %3580 = vmatpush2.msra.mxu0 0.0
    %3581 = vmatprep.subr.mxu0 0.0
    %3582 = vmatpush2.msra.mxu0 0.0
    %3583 = vmatprep.subr.mxu0 0.0
    %3584 = vmatpush2.msra.mxu0 0.0
    %3585 = vmatprep.subr.mxu0 0.0
    %3586 = vmatpush2.msra.mxu0 0.0
    %3587 = vmatprep.subr.mxu0 0.0
    %3588 = vmatpush2.msra.mxu0 0.0
    %3589 = vmatprep.subr.mxu0 0.0
    %3590 = vmatpush2.msra.mxu0 0.0
    %3591 = vmatprep.subr.mxu0 0.0
    %3592 = vmatpush2.msra.mxu0 0.0
    %3593 = vmatprep.subr.mxu0 0.0
    %3594 = vmatpush2.msra.mxu0 0.0
    %3595 = vmatprep.subr.mxu0 0.0
    %3596 = vmatpush2.msra.mxu0 0.0
    %3597 = vmatprep.subr.mxu0 0.0
    %3598 = vmatpush2.msra.mxu0 0.0
    %3599 = vmatprep.subr.mxu0 0.0
    %3600 = vmatpush2.msra.mxu0 0.0
    %3601 = vmatprep.subr.mxu0 0.0
    %3602 = vmatpush2.msra.mxu0 0.0
    %3603 = vmatprep.subr.mxu0 0.0
    %3604 = vmatpush2.msra.mxu0 0.0
    %3605 = vmatprep.subr.mxu0 0.0
    %3606 = vmatpush2.msra.mxu0 0.0
    %3607 = vmatprep.subr.mxu0 0.0
    %3608 = vmatpush2.msra.mxu0 0.0
    %3609 = vmatprep.subr.mxu0 0.0
    %3610 = vmatpush2.msra.mxu0 0.0
    %3611 = vmatprep.mubr.f32.mxu0 0.0
    %3612 = vmatmul.mubr.f32.gmra.mxu0 %v3542
    %v3613 = vpop.f32.mrf.mxu0
    %v3614 = vadd.f32 0.0, %v3613
    %v3615 = vpop.f32.mrf.mxu0
    %3616 = vmatprep.mubr.f32.mxu0 0.0
    %3617 = vmatmul.mubr.f32.gmra.mxu0 %v3545
    %v3618 = vpop.f32.mrf.mxu0
    %v3619 = vadd.f32 0.0, %v3618
    %v3620 = vpop.f32.mrf.mxu0
    %3621 = vdwg.mxu0
    %vm3622 = vcmask 285968
    %v3623 = vsel %vm3622, %v15, 0.0
    %v3624 = vsel %vm3622, %v16, 0.0
    %v3625 = vadd.f32 %v3623, %v3624
    %v3626 = vsel %vm3622, %v17, 0.0
    %v3627 = vadd.f32 %v3625, %v3626
    %vm3628 = vcmask 278800
    %v3629 = vsel %vm3628, %v18, 0.0
    %v3630 = vadd.f32 %v3627, %v3629
    %v3631 = vrot.slane %v3630, 4
    %v3632 = vadd.f32 %v3630, %v3631
    %v3633 = vrot.slane %v3632, 2
    %v3634 = vadd.f32 %v3632, %v3633
    %v3635 = vrot.slane %v3634, 1
    %v3636 = vadd.f32 %v3634, %v3635
    %v3637 = vsel %vm3622, %v19, 0.0
    %v3638 = vsel %vm3622, %v20, 0.0
    %v3639 = vadd.f32 %v3637, %v3638
    %v3640 = vsel %vm3622, %v21, 0.0
    %v3641 = vadd.f32 %v3639, %v3640
    %v3642 = vsel %vm3628, %v22, 0.0
    %v3643 = vadd.f32 %v3641, %v3642
    %v3644 = vrot.slane %v3643, 4
    %v3645 = vadd.f32 %v3643, %v3644
    %v3646 = vrot.slane %v3645, 2
    %v3647 = vadd.f32 %v3645, %v3646
    %v3648 = vrot.slane %v3647, 1
    %v3649 = vadd.f32 %v3647, %v3648
    %v3650 = vadd.f32 %v3636, 0.0005
    %v3651 = vadd.f32 %v3649, 0.0005
    %v3652 = vsel %vm3622, %v63, 0.0
    %v3653 = vsel %vm3622, %v64, 0.0
    %v3654 = vadd.f32 %v3652, %v3653
    %v3655 = vsel %vm3622, %v65, 0.0
    %v3656 = vadd.f32 %v3654, %v3655
    %v3657 = vsel %vm3628, %v66, 0.0
    %v3658 = vadd.f32 %v3656, %v3657
    %v3659 = vrot.slane %v3658, 4
    %v3660 = vadd.f32 %v3658, %v3659
    %v3661 = vrot.slane %v3660, 2
    %v3662 = vadd.f32 %v3660, %v3661
    %v3663 = vrot.slane %v3662, 1
    %v3664 = vadd.f32 %v3662, %v3663
    %v3665 = vsel %vm3622, %v67, 0.0
    %v3666 = vsel %vm3622, %v68, 0.0
    %v3667 = vadd.f32 %v3665, %v3666
    %v3668 = vsel %vm3622, %v69, 0.0
    %v3669 = vadd.f32 %v3667, %v3668
    %v3670 = vsel %vm3628, %v70, 0.0
    %v3671 = vadd.f32 %v3669, %v3670
    %v3672 = vrot.slane %v3671, 4
    %v3673 = vadd.f32 %v3671, %v3672
    %v3674 = vrot.slane %v3673, 2
    %v3675 = vadd.f32 %v3673, %v3674
    %v3676 = vrot.slane %v3675, 1
    %v3677 = vadd.f32 %v3675, %v3676
    %v3678 = vadd.f32 %v3664, 0.0005
    %v3679 = vadd.f32 %v3677, 0.0005
    %v3680 = vmul.f32 %v15, %v26
    %v3681 = vmul.f32 %v16, %v31
    %v3682 = vmul.f32 %v17, %v36
    %v3683 = vmul.f32 %v18, %v41
    %v3684 = vmul.f32 %v19, %v46
    %v3685 = vmul.f32 %v20, %v51
    %v3686 = vmul.f32 %v21, %v56
    %v3687 = vmul.f32 %v22, %v61
    %vm3688 = vcmask 261120
    %v3689 = vsel %vm3688, %v3680, 0.0
    %v3690 = vsel %vm3688, %v3681, 0.0
    %v3691 = vadd.f32 %v3689, %v3690
    %v3692 = vsel %vm3688, %v3682, 0.0
    %v3693 = vadd.f32 %v3691, %v3692
    %vm3694 = vcmask 253952
    %v3695 = vsel %vm3694, %v3683, 0.0
    %v3696 = vadd.f32 %v3693, %v3695
    %v3697 = vrot.slane %v3696, 4
    %v3698 = vadd.f32 %v3696, %v3697
    %v3699 = vrot.slane %v3698, 2
    %v3700 = vadd.f32 %v3698, %v3699
    %v3701 = vrot.slane %v3700, 1
    %v3702 = vadd.f32 %v3700, %v3701
    %v3703 = vsel %vm3688, %v3684, 0.0
    %v3704 = vsel %vm3688, %v3685, 0.0
    %v3705 = vadd.f32 %v3703, %v3704
    %v3706 = vsel %vm3688, %v3686, 0.0
    %v3707 = vadd.f32 %v3705, %v3706
    %v3708 = vsel %vm3694, %v3687, 0.0
    %v3709 = vadd.f32 %v3707, %v3708
    %v3710 = vrot.slane %v3709, 4
    %v3711 = vadd.f32 %v3709, %v3710
    %v3712 = vrot.slane %v3711, 2
    %v3713 = vadd.f32 %v3711, %v3712
    %v3714 = vrot.slane %v3713, 1
    %v3715 = vadd.f32 %v3713, %v3714
    %3717 = vset.pattern.permute.xlu0 34
    %3718 = vperm.xlu0 %3717, %v3650
    %v3719 = vpop.permute.xlu0 %3718
    %3722 = vset.pattern.permute.xlu0 34
    %3723 = vperm.xlu0 %3722, %v3651
    %v3724 = vpop.permute.xlu0 %3723
    %v3726 = vrcp.pop %v3719
    %v3727 = vmul.f32 %v3702, %v3726
    %v3728 = vrcp.pop %v3724
    %v3729 = vmul.f32 %v3715, %v3728
    %v3730 = vmul.f32 %v15, %v74
    %v3731 = vmul.f32 %v16, %v79
    %v3732 = vmul.f32 %v17, %v84
    %v3733 = vmul.f32 %v18, %v89
    %v3734 = vmul.f32 %v19, %v94
    %v3735 = vmul.f32 %v20, %v99
    %v3736 = vmul.f32 %v21, %v104
    %v3737 = vmul.f32 %v22, %v109
    %v3738 = vsel %vm3688, %v3730, 0.0
    %v3739 = vsel %vm3688, %v3731, 0.0
    %v3740 = vadd.f32 %v3738, %v3739
    %v3741 = vsel %vm3688, %v3732, 0.0
    %v3742 = vadd.f32 %v3740, %v3741
    %v3743 = vsel %vm3694, %v3733, 0.0
    %v3744 = vadd.f32 %v3742, %v3743
    %v3745 = vrot.slane %v3744, 4
    %v3746 = vadd.f32 %v3744, %v3745
    %v3747 = vrot.slane %v3746, 2
    %v3748 = vadd.f32 %v3746, %v3747
    %v3749 = vrot.slane %v3748, 1
    %v3750 = vadd.f32 %v3748, %v3749
    %v3751 = vsel %vm3688, %v3734, 0.0
    %v3752 = vsel %vm3688, %v3735, 0.0
    %v3753 = vadd.f32 %v3751, %v3752
    %v3754 = vsel %vm3688, %v3736, 0.0
    %v3755 = vadd.f32 %v3753, %v3754
    %v3756 = vsel %vm3694, %v3737, 0.0
    %v3757 = vadd.f32 %v3755, %v3756
    %v3758 = vrot.slane %v3757, 4
    %v3759 = vadd.f32 %v3757, %v3758
    %v3760 = vrot.slane %v3759, 2
    %v3761 = vadd.f32 %v3759, %v3760
    %v3762 = vrot.slane %v3761, 1
    %v3763 = vadd.f32 %v3761, %v3762
    %3765 = vset.pattern.permute.xlu0 34
    %3766 = vperm.xlu0 %3765, %v3678
    %v3767 = vpop.permute.xlu0 %3766
    %3770 = vset.pattern.permute.xlu0 34
    %3771 = vperm.xlu0 %3770, %v3679
    %v3772 = vpop.permute.xlu0 %3771
    %v3774 = vrcp.pop %v3767
    %v3775 = vmul.f32 %v3750, %v3774
    %v3776 = vrcp.pop %v3772
    %v3777 = vmul.f32 %v3763, %v3776
    %vm3778 = vcmask 1044480
    %v3779 = vsel %vm3778, %v3727, %v3775
    %v3780 = vsel %vm3778, %v3729, %v3777
    %v3781 = vld [vmem:[%s2] sm:$0xff]
    %v3782 = vld [vmem:[%s2 + $0x8] sm:$0x3]
    %v3783 = vld [vmem:[%s2 + $0x10] sm:$0xff]
    %v3784 = vld [vmem:[%s2 + $0x18] sm:$0x3]
    %3786 = vset.pattern.permute.xlu0 0
    %3787 = vperm.xlu0 %3786, %v3781
    %v3788 = vpop.permute.xlu0 %3787
    %3791 = vset.pattern.permute.xlu0 0
    %3792 = vperm.xlu0 %3791, %v3782
    %v3793 = vpop.permute.xlu0 %3792
    %3796 = vset.pattern.permute.xlu0 0
    %3797 = vperm.xlu0 %3796, %v3783
    %v3798 = vpop.permute.xlu0 %3797
    %3801 = vset.pattern.permute.xlu0 0
    %3802 = vperm.xlu0 %3801, %v3784
    %v3803 = vpop.permute.xlu0 %3802
    %v3805 = vmul.f32 %v3788, %v3779
    %v3806 = vmul.f32 %v3793, %v3775
    %v3807 = vmul.f32 %v3798, %v3780
    %v3808 = vmul.f32 %v3803, %v3777
    %v3809 = vsub.f32 1.0, %v3781
    %v3810 = vsub.f32 1.0, %v3782
    %v3811 = vsub.f32 1.0, %v3783
    %v3812 = vsub.f32 1.0, %v3784
    %3814 = vset.pattern.permute.xlu0 0
    %3815 = vperm.xlu0 %3814, %v3809
    %v3816 = vpop.permute.xlu0 %3815
    %3819 = vset.pattern.permute.xlu0 0
    %3820 = vperm.xlu0 %3819, %v3810
    %v3821 = vpop.permute.xlu0 %3820
    %3824 = vset.pattern.permute.xlu0 0
    %3825 = vperm.xlu0 %3824, %v3811
    %v3826 = vpop.permute.xlu0 %3825
    %3829 = vset.pattern.permute.xlu0 0
    %3830 = vperm.xlu0 %3829, %v3812
    %v3831 = vpop.permute.xlu0 %3830
    %v3833 = vmul.f32 %v3816, %v3501
    %v3834 = vmul.f32 %v3821, %v3506
    %v3835 = vmul.f32 %v3826, %v3614
    %v3836 = vmul.f32 %v3831, %v3619
    %v3837 = vadd.f32 %v3805, %v3833
    %v3838 = vadd.f32 %v3806, %v3834
    %v3839 = vadd.f32 %v3807, %v3835
    %v3840 = vadd.f32 %v3808, %v3836
    %vm3843 = vcmask 1042432
    %v3844 = vrot.slane %v3837, 5
    %v3845 = vrot.slane %v3838, 5
    %v3846 = vsel %vm3843, %v3844, %v3845
    %3847 = vrot.lane.b32.xlu0 %v3846, 32
    %v3848 = vpop.permute.xlu0 %3847
    %3851 = vrot.lane.b32.xlu0 %v3839, 64
    %v3852 = vpop.permute.xlu0 %3851
    %v3855 = vrot.slane %v3839, 5
    %v3856 = vrot.slane %v3840, 5
    %v3857 = vsel %vm3843, %v3855, %v3856
    %3858 = vrot.lane.b32.xlu0 %v3857, 96
    %v3859 = vpop.permute.xlu0 %3858
    %v3861 = vsel %vm3688, %v3837, %v3848
    %vm3862 = vcmask 523264
    %v3863 = vsel %vm3862, %v3861, %v3852
    %vm3864 = vcmask 785408
    %v3865 = vsel %vm3864, %v3863, %v3859
    %3866 = vst [vmem:[#allocation2] sm:$0x1f] %v3865
    // Predicated region
    $region14: #{_device_forward.3} parent=1 // pred_check
      _
    $region15: #{_device_forward.3} parent=1 // pred_check_branch
      %3868 = sbr.rel (0) target = $region17
    $region16: #{_device_forward.3} parent=1 // pred_region
      %s3870 = ssub.s32 128, 128
      %3871 = vsyncadd [#allocation3], %s3870
      %s3873 = sshll.u32 [#allocation2], 4
      %s3874 = int_to_ptr.vmem [resolvable:$true] %s3873
      %3876 = dma.vmem_to_hbm [thread:$0]  %s3874, 128, %s3, [#allocation3]
    $region17: #{_device_forward.3} parent=1 // pred_fallthru
      _
    // Predicated region
    $region18: #{_device_forward.3} parent=1 // pred_check
      _
    $region19: #{_device_forward.3} parent=1 // pred_check_branch
      %3878 = sbr.rel (0) target = $region21
    $region20: #{_device_forward.3} parent=1 // pred_region
      %3879 = dma.done [#allocation3], 128
    $region21: #{_device_forward.3} parent=1 // pred_fallthru
      _
    %3880 = vsyncpa [#allocation3], 1

</llo_original>
